<compile_context>
chip_gen: v7x
topology: tpu7x:2x2x1
jax: 0.10.0
libtpu: 0.0.40
codegen_flags: <defaults>
</compile_context>

<pallas_src>
import functools
import math

import jax
import jax.numpy as jnp
import numpy as np
from jax.experimental import pallas as pl
from jax.experimental.pallas import tpu as pltpu

LN_EPS = 1e-5                      # torch.nn.LayerNorm default


def _tpu_vmem_capacity():
    try:
        return int(pltpu.get_tpu_info().vmem_capacity_bytes)
    except Exception:
        return 64 * 1024 * 1024    # conservative (v7x-sized) fallback


_VMEM_CAP = _tpu_vmem_capacity()
# Scoped VMEM: ~75% of physical, capped (96 MiB on 128 MiB parts, 48 MiB on 64 MiB parts).
VMEM_LIMIT = max(32 * 1024 * 1024, min(_VMEM_CAP * 3 // 4, 96 * 1024 * 1024))
# Query-tile cap: 256 fills the 256-wide MXU M dim (v6e) when VMEM allows, 128 on
# small-VMEM parts.  TODO(synk): flash-style K-axis tiling for large N on v7x.
TQ_CAP = 256 if _VMEM_CAP >= 100 * 1024 * 1024 else 128
TN_CAP = 512   # kernel A is a plain row-tiled matmul; big tiles amortize step overhead


# ------------------------------ small helpers ------------------------------

def _layernorm(v, w, b):
    mu = jnp.mean(v, axis=-1, keepdims=True)
    var = jnp.mean((v - mu) ** 2, axis=-1, keepdims=True)
    return (v - mu) * jax.lax.rsqrt(var + LN_EPS) * w + b


def _gelu_exact(v):
    # torch.nn.GELU default (erf-based, exact)
    return 0.5 * v * (1.0 + jax.lax.erf(v / jnp.sqrt(2.0).astype(v.dtype)))


def _row_tile(n, cap):
    """Largest multiple of 8 that divides n and is <= cap; fall back to n (full dim)."""
    best = None
    for d in range(8, min(n, cap) + 1, 8):
        if n % d == 0:
            best = d
    return best if best is not None else n


def _const_spec(shape):
    # Full-array block whose index does not change across the grid (no re-DMA).
    return pl.BlockSpec(shape, lambda *_: (0,) * len(shape))


def _round_up(n, m):
    return ((n + m - 1) // m) * m


def _split_heads(t2d, num_heads, head_dim):
    """(T, C) -> (H, T, Dh): static lane slices stacked on a new leading axis."""
    return jnp.stack(
        [t2d[:, h * head_dim:(h + 1) * head_dim] for h in range(num_heads)], axis=0)


# ------------------------------ Pallas kernels ------------------------------

def qkv_kernel(x_ref, ln1w_ref, ln1b_ref, wqkv_ref, qkv_ref):
    """LayerNorm1 + fused QKV projection for one (batch, token-tile)."""
    x = x_ref[0]                                              # (TN, C) f32
    xn = _layernorm(x, ln1w_ref[...], ln1b_ref[...])
    qkv = jnp.dot(xn.astype(jnp.bfloat16), wqkv_ref[...],
                  preferred_element_type=jnp.float32)         # (TN, 3C) f32 acc
    qkv_ref[0] = qkv.astype(jnp.bfloat16)


def attn_mlp_kernel(x_ref, q_ref, k_ref, v_ref,
                    wproj_ref, bproj_ref, ln2w_ref, ln2b_ref,
                    wfc1_ref, bfc1_ref, wfc2_ref, bfc2_ref, o_ref,
                    *, num_heads, head_dim):
    """Attention (all keys vs one query tile) + proj + residual + LN2 + MLP + residual.

    q/k/v arrive as lane-offset views of the (B, N, 3C) QKV buffer; the head-major
    relayout happens here in VMEM (overlaps with MXU work).  The softmax scale is
    already folded into the Q columns of wqkv.
    """
    x = x_ref[0]                                              # (TQ, C) f32 residual

    q = _split_heads(q_ref[0], num_heads, head_dim)           # (H, TQ, Dh) bf16, pre-scaled
    k = _split_heads(k_ref[0], num_heads, head_dim)           # (H, N,  Dh) bf16
    v = _split_heads(v_ref[0], num_heads, head_dim)           # (H, N,  Dh) bf16

    # scores / softmax (stats in f32)
    s = jnp.einsum("hqd,hkd->hqk", q, k,
                   preferred_element_type=jnp.float32)        # (H, TQ, N)
    s = s - jnp.max(s, axis=-1, keepdims=True)
    # TODO(synk): on v6e/v7x the exp can run in bf16 on the EUP (keep the row-sum in
    # f32); kept in f32 here so the same kernel runs on v5e.
    p = jnp.exp(s)
    denom = jnp.sum(p, axis=-1, keepdims=True)                # (H, TQ, 1) f32
    o = jnp.einsum("hqk,hkd->hqd", p.astype(jnp.bfloat16), v,
                   preferred_element_type=jnp.float32)        # (H, TQ, Dh)
    o = o * pl.reciprocal(denom, approx=True)                 # normalize after PV (EUP)

    # Merge heads back to (TQ, C) and run ONE full-width (C-deep) output projection
    # against the original (C, C) weight (full MXU fill, no short-K per-head dots).
    o = jnp.concatenate([o[h] for h in range(num_heads)], axis=-1)
    x1 = x + jnp.dot(o.astype(jnp.bfloat16), wproj_ref[...],
                     preferred_element_type=jnp.float32) + bproj_ref[...]

    # MLP branch
    xn2 = _layernorm(x1, ln2w_ref[...], ln2b_ref[...])
    h1 = jnp.dot(xn2.astype(jnp.bfloat16), wfc1_ref[...],
                 preferred_element_type=jnp.float32) + bfc1_ref[...]
    h1 = _gelu_exact(h1)
    h2 = jnp.dot(h1.astype(jnp.bfloat16), wfc2_ref[...],
                 preferred_element_type=jnp.float32) + bfc2_ref[...]
    o_ref[0] = x1 + h2


def head_kernel(x_ref, lnw_ref, lnb_ref, wh_ref, bh_ref, o_ref):
    x = x_ref[0]                                              # (T, C) f32
    xn = _layernorm(x, lnw_ref[...], lnb_ref[...])
    o_ref[0] = jnp.dot(xn.astype(jnp.bfloat16), wh_ref[...],
                       preferred_element_type=jnp.float32) + bh_ref[...]


# ------------------------------ wrappers ------------------------------

def run_block(x, params, *, num_heads, head_dim):
    (ln1w, ln1b, wqkv, wproj, bproj,
     ln2w, ln2b, wfc1, bfc1, wfc2, bfc2) = params
    B, N, C = x.shape
    scale = head_dim ** -0.5

    # Fold the 1/sqrt(Dh) softmax scale into the Q columns of wqkv (one-time constant
    # weight transform, fused with the bf16 cast).
    wqkv_bf = jnp.concatenate([wqkv[:, :C] * scale, wqkv[:, C:]],
                              axis=1).astype(jnp.bfloat16)
    wproj_bf = wproj.astype(jnp.bfloat16)
    wfc1_bf = wfc1.astype(jnp.bfloat16)
    wfc2_bf = wfc2.astype(jnp.bfloat16)

    # ---- kernel A: LN1 + QKV projection, row-tiled over tokens ----
    TN = _row_tile(N, TN_CAP)
    qkv = pl.pallas_call(
        qkv_kernel,
        out_shape=jax.ShapeDtypeStruct((B, N, 3 * C), jnp.bfloat16),
        grid=(B, N // TN),
        in_specs=[pl.BlockSpec((1, TN, C), lambda b, t: (b, t, 0)),
                  _const_spec(ln1w.shape),
                  _const_spec(ln1b.shape),
                  _const_spec(wqkv_bf.shape)],
        out_specs=pl.BlockSpec((1, TN, 3 * C), lambda b, t: (b, t, 0)),
        compiler_params=pltpu.CompilerParams(
            dimension_semantics=("parallel", "parallel"),
            vmem_limit_bytes=VMEM_LIMIT),
    )(x, ln1w, ln1b, wqkv_bf)

    # ---- kernel B: attention + proj + residual + LN2 + MLP, query-token tiled ----
    # Q/K/V are read straight out of the (B, N, 3C) QKV buffer via lane-offset
    # BlockSpecs (block index 0/1/2 on the last axis): no XLA transpose and no extra
    # HBM round trip between the two kernels.  K/V block index only changes with b,
    # so they stay resident in VMEM across the query tiles of a batch element.
    TQ = _row_tile(N, TQ_CAP)
    kern = functools.partial(attn_mlp_kernel, num_heads=num_heads, head_dim=head_dim)
    in_specs = [
        pl.BlockSpec((1, TQ, C), lambda b, qi: (b, qi, 0)),   # x (residual)
        pl.BlockSpec((1, TQ, C), lambda b, qi: (b, qi, 0)),   # Q  lanes [0,   C)
        pl.BlockSpec((1, N, C), lambda b, qi: (b, 0, 1)),     # K  lanes [C,  2C)
        pl.BlockSpec((1, N, C), lambda b, qi: (b, 0, 2)),     # V  lanes [2C, 3C)
        _const_spec(wproj_bf.shape),
        _const_spec(bproj.shape),
        _const_spec(ln2w.shape),
        _const_spec(ln2b.shape),
        _const_spec(wfc1_bf.shape),
        _const_spec(bfc1.shape),
        _const_spec(wfc2_bf.shape),
        _const_spec(bfc2.shape),
    ]
    return pl.pallas_call(
        kern,
        out_shape=jax.ShapeDtypeStruct((B, N, C), jnp.float32),
        grid=(B, N // TQ),
        in_specs=in_specs,
        out_specs=pl.BlockSpec((1, TQ, C), lambda b, qi: (b, qi, 0)),
        compiler_params=pltpu.CompilerParams(
            dimension_semantics=("parallel", "parallel"),
            vmem_limit_bytes=VMEM_LIMIT),
    )(x, qkv, qkv, qkv, wproj_bf, bproj, ln2w, ln2b,
      wfc1_bf, bfc1, wfc2_bf, bfc2)


def run_head(x, params, num_classes):
    lnw, lnb, wh, bh = params
    B, T, C = x.shape
    cpad = _round_up(num_classes, 128)            # lane-dense output stores
    pad = cpad - num_classes
    wh_p = jnp.pad(wh, ((0, 0), (0, pad))).astype(jnp.bfloat16)
    bh_p = jnp.pad(bh, ((0, 0), (0, pad)))
    out = pl.pallas_call(
        head_kernel,
        out_shape=jax.ShapeDtypeStruct((B, T, cpad), jnp.float32),
        grid=(B,),
        in_specs=[pl.BlockSpec((1, T, C), lambda b: (b, 0, 0)),
                  _const_spec(lnw.shape),
                  _const_spec(lnb.shape),
                  _const_spec(wh_p.shape),
                  _const_spec(bh_p.shape)],
        out_specs=pl.BlockSpec((1, T, cpad), lambda b: (b, 0, 0)),
        compiler_params=pltpu.CompilerParams(
            dimension_semantics=("parallel",),
            vmem_limit_bytes=VMEM_LIMIT),
    )(x, lnw, lnb, wh_p, bh_p)
    return out[:, :, :num_classes]


@functools.partial(jax.jit, static_argnames=("return_token_num", "num_heads",
                                             "head_dim", "num_classes"))
def decoder_forward(x, blocks, head_params, *, return_token_num,
                    num_heads, head_dim, num_classes):
    for p in blocks:
        x = run_block(x, p, num_heads=num_heads, head_dim=head_dim)
    if return_token_num > 0:
        x = x[:, -return_token_num:]
    return run_head(x, head_params, num_classes)


# ----------------------- parameter init (torch-equivalent) -----------------------

def xavier_uniform(key, out_f, in_f):
    # torch weight shape (out, in); return transpose (in, out) so y = x @ W_t
    a = math.sqrt(6.0 / (in_f + out_f))
    w = jax.random.uniform(key, (out_f, in_f), jnp.float32, -a, a)
    return w.T


def init_decoder_params(key, *, embed_dim, num_heads, mlp_ratio, depth, num_classes):
    hidden = int(embed_dim * mlp_ratio)
    blocks = []
    for _ in range(depth):
        keys = jax.random.split(key, 5)
        key = keys[0]
        p = [
            jnp.ones((1, embed_dim), jnp.float32),                 # ln1 w
            jnp.zeros((1, embed_dim), jnp.float32),                # ln1 b
            xavier_uniform(keys[1], 3 * embed_dim, embed_dim),     # qkv W^T (no bias)
            xavier_uniform(keys[2], embed_dim, embed_dim),         # proj W^T
            jnp.zeros((1, embed_dim), jnp.float32),                # proj b
            jnp.ones((1, embed_dim), jnp.float32),                 # ln2 w
            jnp.zeros((1, embed_dim), jnp.float32),                # ln2 b
            xavier_uniform(keys[3], hidden, embed_dim),            # fc1 W^T
            jnp.zeros((1, hidden), jnp.float32),                   # fc1 b
            xavier_uniform(keys[4], embed_dim, hidden),            # fc2 W^T
            jnp.zeros((1, embed_dim), jnp.float32),                # fc2 b
        ]
        blocks.append(p)
    k_head, _ = jax.random.split(key)
    head = [
        jnp.ones((1, embed_dim), jnp.float32),                     # final norm w
        jnp.zeros((1, embed_dim), jnp.float32),                    # final norm b
        xavier_uniform(k_head, num_classes, embed_dim),            # head W^T
        jnp.zeros((1, num_classes), jnp.float32),                  # head b
    ]
    return blocks, head


# ------------------------------ pure-JAX f32 reference -------------------------------

def reference_forward(x, blocks, head_params, return_token_num, *, num_heads, head_dim):
    C = num_heads * head_dim
    scale = head_dim ** -0.5
    for (ln1w, ln1b, wqkv, wproj, bproj, ln2w, ln2b, wfc1, bfc1, wfc2, bfc2) in blocks:
        xn = _layernorm(x, ln1w, ln1b)
        qkv = xn @ wqkv                                          # (B, N, 3C)
        B, N, _ = x.shape
        qkv = qkv.reshape(B, N, 3, num_heads, head_dim).transpose(2, 0, 3, 1, 4)
        q, k, v = qkv[0], qkv[1], qkv[2]                         # (B, H, N, Dh)
        s = jnp.einsum("bhnd,bhmd->bhnm", q, k) * scale
        p = jax.nn.softmax(s, axis=-1)
        o = jnp.einsum("bhnm,bhmd->bhnd", p, v)
        o = o.transpose(0, 2, 1, 3).reshape(B, N, C)
        x = x + (o @ wproj + bproj)
        xn2 = _layernorm(x, ln2w, ln2b)
        h = _gelu_exact(xn2 @ wfc1 + bfc1)
        x = x + (h @ wfc2 + bfc2)
    lnw, lnb, wh, bh = head_params
    if return_token_num > 0:
        x = x[:, -return_token_num:]
    return _layernorm(x, lnw, lnb) @ wh + bh


if __name__ == "__main__":
    # Small, module-consistent config (embed_dim a multiple of 128 so the lane-offset
    # Q/K/V BlockSpecs are 128-lane aligned).
    B, N = 2, 8                 # batch, num tokens (num_patches)
    embed_dim = 128
    num_heads = 4
    head_dim = embed_dim // num_heads
    mlp_ratio = 4.0
    depth = 2
    num_classes = 48            # e.g. tubelet_size * patch_size**2 * 3 for a tiny patch
    return_token_num = 4

    key = jax.random.PRNGKey(0)
    k_x, k_p = jax.random.split(key)
    x = jax.random.normal(k_x, (B, N, embed_dim), jnp.float32)

    blocks, head_params = init_decoder_params(
        k_p, embed_dim=embed_dim, num_heads=num_heads, mlp_ratio=mlp_ratio,
        depth=depth, num_classes=num_classes)

    out = decoder_forward(x, blocks, head_params,
                          return_token_num=return_token_num,
                          num_heads=num_heads, head_dim=head_dim,
                          num_classes=num_classes)
    out = jax.block_until_ready(out)

    ref = reference_forward(x, blocks, head_params, return_token_num,
                            num_heads=num_heads, head_dim=head_dim)
    assert out.shape == (B, return_token_num, num_classes)
    # bf16 MXU operands (f32 accumulation) across two blocks + head need a looser
    # tolerance than pure f32 (typical max abs error observed is well below 5e-2).
    np.testing.assert_allclose(np.asarray(out), np.asarray(ref), rtol=1e-1, atol=1e-1)

    print("KERNEL_OK")
</pallas_src>

<mosaic_0001>
module attributes {stable_mosaic.version = 11 : i64} {
  func.func @qkv_kernel(%arg0: i32, %arg1: i32, %arg2: memref<1x8x128xf32, #tpu.memory_space<vmem>>, %arg3: memref<1x128xf32, #tpu.memory_space<vmem>>, %arg4: memref<1x128xf32, #tpu.memory_space<vmem>>, %arg5: memref<128x384xbf16, #tpu.memory_space<vmem>>, %arg6: memref<1x8x384xbf16, #tpu.memory_space<vmem>>) attributes {dimension_semantics = [#tpu.dimension_semantics<parallel>, #tpu.dimension_semantics<parallel>], iteration_bounds = array<i64: 2, 1>, scalar_prefetch = 0 : i64, scratch_operands = 0 : i64, tpu.core_type = #tpu.core_type<tc>, window_params = [{transform_indices = @transform_0, window_bounds = array<i64: 1, 8, 128>}, {pipeline_mode = #tpu.pipeline_mode<synchronous>, transform_indices = @transform_1, window_bounds = array<i64: 1, 128>}, {pipeline_mode = #tpu.pipeline_mode<synchronous>, transform_indices = @transform_2, window_bounds = array<i64: 1, 128>}, {pipeline_mode = #tpu.pipeline_mode<synchronous>, transform_indices = @transform_3, window_bounds = array<i64: 128, 384>}, {transform_indices = @transform_4, window_bounds = array<i64: 1, 8, 384>}]} {
    %c0 = arith.constant 0 : index
    %c0_0 = arith.constant 0 : index
    %c0_1 = arith.constant 0 : index
    %0 = vector.load %arg2[%c0, %c0_0, %c0_1] : memref<1x8x128xf32, #tpu.memory_space<vmem>>, vector<1x8x128xf32>
    %1 = vector.shape_cast %0 : vector<1x8x128xf32> to vector<8x128xf32>
    %c0_2 = arith.constant 0 : index
    %c0_3 = arith.constant 0 : index
    %2 = vector.load %arg3[%c0_2, %c0_3] : memref<1x128xf32, #tpu.memory_space<vmem>>, vector<1x128xf32>
    %c0_4 = arith.constant 0 : index
    %c0_5 = arith.constant 0 : index
    %3 = vector.load %arg4[%c0_4, %c0_5] : memref<1x128xf32, #tpu.memory_space<vmem>>, vector<1x128xf32>
    %cst = arith.constant dense<0.000000e+00> : vector<8xf32>
    %4 = vector.multi_reduction <add>, %1, %cst [1] : vector<8x128xf32> to vector<8xf32>
    %5 = vector.shape_cast %4 : vector<8xf32> to vector<8x1xf32>
    %cst_6 = arith.constant 1.280000e+02 : f32
    %6 = vector.broadcast %cst_6 : f32 to vector<8x1xf32>
    %7 = arith.divf %5, %6 : vector<8x1xf32>
    %8 = vector.broadcast %7 : vector<8x1xf32> to vector<8x128xf32>
    %9 = arith.subf %1, %8 : vector<8x128xf32>
    %10 = arith.mulf %9, %9 : vector<8x128xf32>
    %cst_7 = arith.constant dense<0.000000e+00> : vector<8xf32>
    %11 = vector.multi_reduction <add>, %10, %cst_7 [1] : vector<8x128xf32> to vector<8xf32>
    %12 = vector.shape_cast %11 : vector<8xf32> to vector<8x1xf32>
    %cst_8 = arith.constant 1.280000e+02 : f32
    %13 = vector.broadcast %cst_8 : f32 to vector<8x1xf32>
    %14 = arith.divf %12, %13 : vector<8x1xf32>
    %15 = vector.broadcast %7 : vector<8x1xf32> to vector<8x128xf32>
    %16 = arith.subf %1, %15 : vector<8x128xf32>
    %cst_9 = arith.constant 9.99999974E-6 : f32
    %17 = vector.broadcast %cst_9 : f32 to vector<8x1xf32>
    %18 = arith.addf %14, %17 : vector<8x1xf32>
    %19 = math.rsqrt %18 : vector<8x1xf32>
    %20 = vector.broadcast %19 : vector<8x1xf32> to vector<8x128xf32>
    %21 = arith.mulf %16, %20 : vector<8x128xf32>
    %22 = vector.broadcast %2 : vector<1x128xf32> to vector<8x128xf32>
    %23 = arith.mulf %21, %22 : vector<8x128xf32>
    %24 = vector.broadcast %3 : vector<1x128xf32> to vector<8x128xf32>
    %25 = arith.addf %23, %24 : vector<8x128xf32>
    %26 = arith.truncf %25 : vector<8x128xf32> to vector<8x128xbf16>
    %c0_10 = arith.constant 0 : index
    %c0_11 = arith.constant 0 : index
    %27 = vector.load %arg5[%c0_10, %c0_11] : memref<128x384xbf16, #tpu.memory_space<vmem>>, vector<128x384xbf16>
    %cst_12 = arith.constant dense<0.000000e+00> : vector<8x384xf32>
    %28 = tpu.matmul %26, %27, %cst_12 {dimension_numbers = #tpu.dot_dimension_numbers<[1], [0], [0], [1], [0, 0, 1, 1], [], []>} : vector<8x128xbf16>, vector<128x384xbf16>, vector<8x384xf32> -> vector<8x384xf32>
    %29 = arith.truncf %28 : vector<8x384xf32> to vector<8x384xbf16>
    %c0_13 = arith.constant 0 : index
    %c0_14 = arith.constant 0 : index
    %c0_15 = arith.constant 0 : index
    %30 = vector.load %arg6[%c0_13, %c0_14, %c0_15] : memref<1x8x384xbf16, #tpu.memory_space<vmem>>, vector<1x8x384xbf16>
    %31 = vector.shape_cast %30 : vector<1x8x384xbf16> to vector<8x384xbf16>
    %32 = vector.shape_cast %29 : vector<8x384xbf16> to vector<1x8x384xbf16>
    tpu.vector_store %arg6[%c0_13, %c0_14, %c0_15], %32 {strides = array<i32>} : memref<1x8x384xbf16, #tpu.memory_space<vmem>>, vector<1x8x384xbf16>,
    return
  }
  func.func @transform_0(%arg0: i32, %arg1: i32) -> (i32, i32, i32) {
    %c0_i32 = arith.constant 0 : i32
    %c0_i32_0 = arith.constant 0 : i32
    return %arg0, %arg1, %c0_i32 : i32, i32, i32
  }
  func.func @transform_1(%arg0: i32, %arg1: i32) -> (i32, i32) {
    %c0_i32 = arith.constant 0 : i32
    %c0_i32_0 = arith.constant 0 : i32
    %c0_i32_1 = arith.constant 0 : i32
    return %c0_i32, %c0_i32_0 : i32, i32
  }
  func.func @transform_2(%arg0: i32, %arg1: i32) -> (i32, i32) {
    %c0_i32 = arith.constant 0 : i32
    %c0_i32_0 = arith.constant 0 : i32
    %c0_i32_1 = arith.constant 0 : i32
    return %c0_i32, %c0_i32_0 : i32, i32
  }
  func.func @transform_3(%arg0: i32, %arg1: i32) -> (i32, i32) {
    %c0_i32 = arith.constant 0 : i32
    %c0_i32_0 = arith.constant 0 : i32
    %c0_i32_1 = arith.constant 0 : i32
    return %c0_i32, %c0_i32_0 : i32, i32
  }
  func.func @transform_4(%arg0: i32, %arg1: i32) -> (i32, i32, i32) {
    %c0_i32 = arith.constant 0 : i32
    %c0_i32_0 = arith.constant 0 : i32
    return %arg0, %arg1, %c0_i32 : i32, i32, i32
  }
}

module attributes {stable_mosaic.version = 11 : i64} {
  func.func @attn_mlp_kernel(%arg0: i32, %arg1: i32, %arg2: memref<1x8x128xf32, #tpu.memory_space<vmem>>, %arg3: memref<1x8x128xbf16, #tpu.memory_space<vmem>>, %arg4: memref<1x8x128xbf16, #tpu.memory_space<vmem>>, %arg5: memref<1x8x128xbf16, #tpu.memory_space<vmem>>, %arg6: memref<128x128xbf16, #tpu.memory_space<vmem>>, %arg7: memref<1x128xf32, #tpu.memory_space<vmem>>, %arg8: memref<1x128xf32, #tpu.memory_space<vmem>>, %arg9: memref<1x128xf32, #tpu.memory_space<vmem>>, %arg10: memref<128x512xbf16, #tpu.memory_space<vmem>>, %arg11: memref<1x512xf32, #tpu.memory_space<vmem>>, %arg12: memref<512x128xbf16, #tpu.memory_space<vmem>>, %arg13: memref<1x128xf32, #tpu.memory_space<vmem>>, %arg14: memref<1x8x128xf32, #tpu.memory_space<vmem>>) attributes {dimension_semantics = [#tpu.dimension_semantics<parallel>, #tpu.dimension_semantics<parallel>], iteration_bounds = array<i64: 2, 1>, scalar_prefetch = 0 : i64, scratch_operands = 0 : i64, tpu.core_type = #tpu.core_type<tc>, window_params = [{transform_indices = @transform_0, window_bounds = array<i64: 1, 8, 128>}, {transform_indices = @transform_1, window_bounds = array<i64: 1, 8, 128>}, {transform_indices = @transform_2, window_bounds = array<i64: 1, 8, 128>}, {transform_indices = @transform_3, window_bounds = array<i64: 1, 8, 128>}, {pipeline_mode = #tpu.pipeline_mode<synchronous>, transform_indices = @transform_4, window_bounds = array<i64: 128, 128>}, {pipeline_mode = #tpu.pipeline_mode<synchronous>, transform_indices = @transform_5, window_bounds = array<i64: 1, 128>}, {pipeline_mode = #tpu.pipeline_mode<synchronous>, transform_indices = @transform_6, window_bounds = array<i64: 1, 128>}, {pipeline_mode = #tpu.pipeline_mode<synchronous>, transform_indices = @transform_7, window_bounds = array<i64: 1, 128>}, {pipeline_mode = #tpu.pipeline_mode<synchronous>, transform_indices = @transform_8, window_bounds = array<i64: 128, 512>}, {pipeline_mode = #tpu.pipeline_mode<synchronous>, transform_indices = @transform_9, window_bounds = array<i64: 1, 512>}, {pipeline_mode = #tpu.pipeline_mode<synchronous>, transform_indices = @transform_10, window_bounds = array<i64: 512, 128>}, {pipeline_mode = #tpu.pipeline_mode<synchronous>, transform_indices = @transform_11, window_bounds = array<i64: 1, 128>}, {transform_indices = @transform_12, window_bounds = array<i64: 1, 8, 128>}]} {
    %c0 = arith.constant 0 : index
    %c0_0 = arith.constant 0 : index
    %c0_1 = arith.constant 0 : index
    %0 = vector.load %arg2[%c0, %c0_0, %c0_1] : memref<1x8x128xf32, #tpu.memory_space<vmem>>, vector<1x8x128xf32>
    %1 = vector.shape_cast %0 : vector<1x8x128xf32> to vector<8x128xf32>
    %c0_2 = arith.constant 0 : index
    %c0_3 = arith.constant 0 : index
    %c0_4 = arith.constant 0 : index
    %2 = vector.load %arg3[%c0_2, %c0_3, %c0_4] : memref<1x8x128xbf16, #tpu.memory_space<vmem>>, vector<1x8x128xbf16>
    %3 = vector.shape_cast %2 : vector<1x8x128xbf16> to vector<8x128xbf16>
    %4 = vector.extract_strided_slice %3 {offsets = [0, 0], sizes = [8, 32], strides = [1, 1]} : vector<8x128xbf16> to vector<8x32xbf16>
    %5 = vector.extract_strided_slice %3 {offsets = [0, 32], sizes = [8, 32], strides = [1, 1]} : vector<8x128xbf16> to vector<8x32xbf16>
    %6 = vector.extract_strided_slice %3 {offsets = [0, 64], sizes = [8, 32], strides = [1, 1]} : vector<8x128xbf16> to vector<8x32xbf16>
    %7 = vector.extract_strided_slice %3 {offsets = [0, 96], sizes = [8, 32], strides = [1, 1]} : vector<8x128xbf16> to vector<8x32xbf16>
    %8 = vector.shape_cast %4 : vector<8x32xbf16> to vector<1x8x32xbf16>
    %9 = vector.shape_cast %5 : vector<8x32xbf16> to vector<1x8x32xbf16>
    %10 = vector.shape_cast %6 : vector<8x32xbf16> to vector<1x8x32xbf16>
    %11 = vector.shape_cast %7 : vector<8x32xbf16> to vector<1x8x32xbf16>
    %12 = tpu.concatenate %8, %9, %10, %11 in 0 : vector<1x8x32xbf16>, vector<1x8x32xbf16>, vector<1x8x32xbf16>, vector<1x8x32xbf16> -> vector<4x8x32xbf16>
    %c0_5 = arith.constant 0 : index
    %c0_6 = arith.constant 0 : index
    %c0_7 = arith.constant 0 : index
    %13 = vector.load %arg4[%c0_5, %c0_6, %c0_7] : memref<1x8x128xbf16, #tpu.memory_space<vmem>>, vector<1x8x128xbf16>
    %14 = vector.shape_cast %13 : vector<1x8x128xbf16> to vector<8x128xbf16>
    %15 = vector.extract_strided_slice %14 {offsets = [0, 0], sizes = [8, 32], strides = [1, 1]} : vector<8x128xbf16> to vector<8x32xbf16>
    %16 = vector.extract_strided_slice %14 {offsets = [0, 32], sizes = [8, 32], strides = [1, 1]} : vector<8x128xbf16> to vector<8x32xbf16>
    %17 = vector.extract_strided_slice %14 {offsets = [0, 64], sizes = [8, 32], strides = [1, 1]} : vector<8x128xbf16> to vector<8x32xbf16>
    %18 = vector.extract_strided_slice %14 {offsets = [0, 96], sizes = [8, 32], strides = [1, 1]} : vector<8x128xbf16> to vector<8x32xbf16>
    %19 = vector.shape_cast %15 : vector<8x32xbf16> to vector<1x8x32xbf16>
    %20 = vector.shape_cast %16 : vector<8x32xbf16> to vector<1x8x32xbf16>
    %21 = vector.shape_cast %17 : vector<8x32xbf16> to vector<1x8x32xbf16>
    %22 = vector.shape_cast %18 : vector<8x32xbf16> to vector<1x8x32xbf16>
    %23 = tpu.concatenate %19, %20, %21, %22 in 0 : vector<1x8x32xbf16>, vector<1x8x32xbf16>, vector<1x8x32xbf16>, vector<1x8x32xbf16> -> vector<4x8x32xbf16>
    %c0_8 = arith.constant 0 : index
    %c0_9 = arith.constant 0 : index
    %c0_10 = arith.constant 0 : index
    %24 = vector.load %arg5[%c0_8, %c0_9, %c0_10] : memref<1x8x128xbf16, #tpu.memory_space<vmem>>, vector<1x8x128xbf16>
    %25 = vector.shape_cast %24 : vector<1x8x128xbf16> to vector<8x128xbf16>
    %26 = vector.extract_strided_slice %25 {offsets = [0, 0], sizes = [8, 32], strides = [1, 1]} : vector<8x128xbf16> to vector<8x32xbf16>
    %27 = vector.extract_strided_slice %25 {offsets = [0, 32], sizes = [8, 32], strides = [1, 1]} : vector<8x128xbf16> to vector<8x32xbf16>
    %28 = vector.extract_strided_slice %25 {offsets = [0, 64], sizes = [8, 32], strides = [1, 1]} : vector<8x128xbf16> to vector<8x32xbf16>
    %29 = vector.extract_strided_slice %25 {offsets = [0, 96], sizes = [8, 32], strides = [1, 1]} : vector<8x128xbf16> to vector<8x32xbf16>
    %30 = vector.shape_cast %26 : vector<8x32xbf16> to vector<1x8x32xbf16>
    %31 = vector.shape_cast %27 : vector<8x32xbf16> to vector<1x8x32xbf16>
    %32 = vector.shape_cast %28 : vector<8x32xbf16> to vector<1x8x32xbf16>
    %33 = vector.shape_cast %29 : vector<8x32xbf16> to vector<1x8x32xbf16>
    %34 = tpu.concatenate %30, %31, %32, %33 in 0 : vector<1x8x32xbf16>, vector<1x8x32xbf16>, vector<1x8x32xbf16>, vector<1x8x32xbf16> -> vector<4x8x32xbf16>
    "tpu.trace_start"() <{level = 10 : i32, message = "hqd,hkd->hqk"}> : () -> ()
    %cst = arith.constant dense<0.000000e+00> : vector<4x8x8xf32>
    %35 = tpu.matmul %12, %23, %cst {dimension_numbers = #tpu.dot_dimension_numbers<[2], [2], [1], [1], [0, 0, 0, 1, 1, 1], [0], [0]>} : vector<4x8x32xbf16>, vector<4x8x32xbf16>, vector<4x8x8xf32> -> vector<4x8x8xf32>
    "tpu.trace_stop"() : () -> ()
    %cst_11 = arith.constant dense<0xFF800000> : vector<4x8xf32>
    %36 = vector.multi_reduction <maximumf>, %35, %cst_11 [2] : vector<4x8x8xf32> to vector<4x8xf32>
    %37 = vector.shape_cast %36 : vector<4x8xf32> to vector<4x8x1xf32>
    %38 = vector.broadcast %37 : vector<4x8x1xf32> to vector<4x8x8xf32>
    %39 = arith.subf %35, %38 : vector<4x8x8xf32>
    %40 = math.exp %39 : vector<4x8x8xf32>
    %cst_12 = arith.constant dense<0.000000e+00> : vector<4x8xf32>
    %41 = vector.multi_reduction <add>, %40, %cst_12 [2] : vector<4x8x8xf32> to vector<4x8xf32>
    %42 = vector.shape_cast %41 : vector<4x8xf32> to vector<4x8x1xf32>
    %43 = arith.truncf %40 : vector<4x8x8xf32> to vector<4x8x8xbf16>
    "tpu.trace_start"() <{level = 10 : i32, message = "hqk,hkd->hqd"}> : () -> ()
    %cst_13 = arith.constant dense<0.000000e+00> : vector<4x8x32xf32>
    %44 = tpu.matmul %43, %34, %cst_13 {dimension_numbers = #tpu.dot_dimension_numbers<[2], [1], [1], [2], [0, 0, 0, 1, 1, 2], [0], [0]>} : vector<4x8x8xbf16>, vector<4x8x32xbf16>, vector<4x8x32xf32> -> vector<4x8x32xf32>
    "tpu.trace_stop"() : () -> ()
    %45 = tpu.reciprocal %42 {approx = true} : vector<4x8x1xf32> -> vector<4x8x1xf32>
    %46 = vector.broadcast %45 : vector<4x8x1xf32> to vector<4x8x32xf32>
    %47 = arith.mulf %44, %46 : vector<4x8x32xf32>
    %48 = vector.extract_strided_slice %47 {offsets = [0, 0, 0], sizes = [1, 8, 32], strides = [1, 1, 1]} : vector<4x8x32xf32> to vector<1x8x32xf32>
    %49 = vector.shape_cast %48 : vector<1x8x32xf32> to vector<8x32xf32>
    %50 = vector.extract_strided_slice %47 {offsets = [1, 0, 0], sizes = [1, 8, 32], strides = [1, 1, 1]} : vector<4x8x32xf32> to vector<1x8x32xf32>
    %51 = vector.shape_cast %50 : vector<1x8x32xf32> to vector<8x32xf32>
    %52 = vector.extract_strided_slice %47 {offsets = [2, 0, 0], sizes = [1, 8, 32], strides = [1, 1, 1]} : vector<4x8x32xf32> to vector<1x8x32xf32>
    %53 = vector.shape_cast %52 : vector<1x8x32xf32> to vector<8x32xf32>
    %54 = vector.extract_strided_slice %47 {offsets = [3, 0, 0], sizes = [1, 8, 32], strides = [1, 1, 1]} : vector<4x8x32xf32> to vector<1x8x32xf32>
    %55 = vector.shape_cast %54 : vector<1x8x32xf32> to vector<8x32xf32>
    %56 = tpu.concatenate %49, %51, %53, %55 in 1 : vector<8x32xf32>, vector<8x32xf32>, vector<8x32xf32>, vector<8x32xf32> -> vector<8x128xf32>
    %57 = arith.truncf %56 : vector<8x128xf32> to vector<8x128xbf16>
    %c0_14 = arith.constant 0 : index
    %c0_15 = arith.constant 0 : index
    %58 = vector.load %arg6[%c0_14, %c0_15] : memref<128x128xbf16, #tpu.memory_space<vmem>>, vector<128x128xbf16>
    %cst_16 = arith.constant dense<0.000000e+00> : vector<8x128xf32>
    %59 = tpu.matmul %57, %58, %cst_16 {dimension_numbers = #tpu.dot_dimension_numbers<[1], [0], [0], [1], [0, 0, 1, 1], [], []>} : vector<8x128xbf16>, vector<128x128xbf16>, vector<8x128xf32> -> vector<8x128xf32>
    %60 = arith.addf %1, %59 : vector<8x128xf32>
    %c0_17 = arith.constant 0 : index
    %c0_18 = arith.constant 0 : index
    %61 = vector.load %arg7[%c0_17, %c0_18] : memref<1x128xf32, #tpu.memory_space<vmem>>, vector<1x128xf32>
    %62 = vector.broadcast %61 : vector<1x128xf32> to vector<8x128xf32>
    %63 = arith.addf %60, %62 : vector<8x128xf32>
    %c0_19 = arith.constant 0 : index
    %c0_20 = arith.constant 0 : index
    %64 = vector.load %arg8[%c0_19, %c0_20] : memref<1x128xf32, #tpu.memory_space<vmem>>, vector<1x128xf32>
    %c0_21 = arith.constant 0 : index
    %c0_22 = arith.constant 0 : index
    %65 = vector.load %arg9[%c0_21, %c0_22] : memref<1x128xf32, #tpu.memory_space<vmem>>, vector<1x128xf32>
    %cst_23 = arith.constant dense<0.000000e+00> : vector<8xf32>
    %66 = vector.multi_reduction <add>, %63, %cst_23 [1] : vector<8x128xf32> to vector<8xf32>
    %67 = vector.shape_cast %66 : vector<8xf32> to vector<8x1xf32>
    %cst_24 = arith.constant 1.280000e+02 : f32
    %68 = vector.broadcast %cst_24 : f32 to vector<8x1xf32>
    %69 = arith.divf %67, %68 : vector<8x1xf32>
    %70 = vector.broadcast %69 : vector<8x1xf32> to vector<8x128xf32>
    %71 = arith.subf %63, %70 : vector<8x128xf32>
    %72 = arith.mulf %71, %71 : vector<8x128xf32>
    %cst_25 = arith.constant dense<0.000000e+00> : vector<8xf32>
    %73 = vector.multi_reduction <add>, %72, %cst_25 [1] : vector<8x128xf32> to vector<8xf32>
    %74 = vector.shape_cast %73 : vector<8xf32> to vector<8x1xf32>
    %cst_26 = arith.constant 1.280000e+02 : f32
    %75 = vector.broadcast %cst_26 : f32 to vector<8x1xf32>
    %76 = arith.divf %74, %75 : vector<8x1xf32>
    %77 = vector.broadcast %69 : vector<8x1xf32> to vector<8x128xf32>
    %78 = arith.subf %63, %77 : vector<8x128xf32>
    %cst_27 = arith.constant 9.99999974E-6 : f32
    %79 = vector.broadcast %cst_27 : f32 to vector<8x1xf32>
    %80 = arith.addf %76, %79 : vector<8x1xf32>
    %81 = math.rsqrt %80 : vector<8x1xf32>
    %82 = vector.broadcast %81 : vector<8x1xf32> to vector<8x128xf32>
    %83 = arith.mulf %78, %82 : vector<8x128xf32>
    %84 = vector.broadcast %64 : vector<1x128xf32> to vector<8x128xf32>
    %85 = arith.mulf %83, %84 : vector<8x128xf32>
    %86 = vector.broadcast %65 : vector<1x128xf32> to vector<8x128xf32>
    %87 = arith.addf %85, %86 : vector<8x128xf32>
    %88 = arith.truncf %87 : vector<8x128xf32> to vector<8x128xbf16>
    %c0_28 = arith.constant 0 : index
    %c0_29 = arith.constant 0 : index
    %89 = vector.load %arg10[%c0_28, %c0_29] : memref<128x512xbf16, #tpu.memory_space<vmem>>, vector<128x512xbf16>
    %cst_30 = arith.constant dense<0.000000e+00> : vector<8x512xf32>
    %90 = tpu.matmul %88, %89, %cst_30 {dimension_numbers = #tpu.dot_dimension_numbers<[1], [0], [0], [1], [0, 0, 1, 1], [], []>} : vector<8x128xbf16>, vector<128x512xbf16>, vector<8x512xf32> -> vector<8x512xf32>
    %c0_31 = arith.constant 0 : index
    %c0_32 = arith.constant 0 : index
    %91 = vector.load %arg11[%c0_31, %c0_32] : memref<1x512xf32, #tpu.memory_space<vmem>>, vector<1x512xf32>
    %92 = vector.broadcast %91 : vector<1x512xf32> to vector<8x512xf32>
    %93 = arith.addf %90, %92 : vector<8x512xf32>
    %cst_33 = arith.constant 5.000000e-01 : f32
    %94 = vector.broadcast %cst_33 : f32 to vector<8x512xf32>
    %95 = arith.mulf %94, %93 : vector<8x512xf32>
    %cst_34 = arith.constant 2.000000e+00 : f32
    %96 = math.sqrt %cst_34 : f32
    %97 = vector.broadcast %96 : f32 to vector<8x512xf32>
    %98 = arith.divf %93, %97 : vector<8x512xf32>
    %99 = math.erf %98 : vector<8x512xf32>
    %cst_35 = arith.constant 1.000000e+00 : f32
    %100 = vector.broadcast %cst_35 : f32 to vector<8x512xf32>
    %101 = arith.addf %100, %99 : vector<8x512xf32>
    %102 = arith.mulf %95, %101 : vector<8x512xf32>
    %103 = arith.truncf %102 : vector<8x512xf32> to vector<8x512xbf16>
    %c0_36 = arith.constant 0 : index
    %c0_37 = arith.constant 0 : index
    %104 = vector.load %arg12[%c0_36, %c0_37] : memref<512x128xbf16, #tpu.memory_space<vmem>>, vector<512x128xbf16>
    %cst_38 = arith.constant dense<0.000000e+00> : vector<8x128xf32>
    %105 = tpu.matmul %103, %104, %cst_38 {dimension_numbers = #tpu.dot_dimension_numbers<[1], [0], [0], [1], [0, 0, 1, 1], [], []>} : vector<8x512xbf16>, vector<512x128xbf16>, vector<8x128xf32> -> vector<8x128xf32>
    %c0_39 = arith.constant 0 : index
    %c0_40 = arith.constant 0 : index
    %106 = vector.load %arg13[%c0_39, %c0_40] : memref<1x128xf32, #tpu.memory_space<vmem>>, vector<1x128xf32>
    %107 = vector.broadcast %106 : vector<1x128xf32> to vector<8x128xf32>
    %108 = arith.addf %105, %107 : vector<8x128xf32>
    %109 = arith.addf %63, %108 : vector<8x128xf32>
    %c0_41 = arith.constant 0 : index
    %c0_42 = arith.constant 0 : index
    %c0_43 = arith.constant 0 : index
    %110 = vector.load %arg14[%c0_41, %c0_42, %c0_43] : memref<1x8x128xf32, #tpu.memory_space<vmem>>, vector<1x8x128xf32>
    %111 = vector.shape_cast %110 : vector<1x8x128xf32> to vector<8x128xf32>
    %112 = vector.shape_cast %109 : vector<8x128xf32> to vector<1x8x128xf32>
    tpu.vector_store %arg14[%c0_41, %c0_42, %c0_43], %112 {strides = array<i32>} : memref<1x8x128xf32, #tpu.memory_space<vmem>>, vector<1x8x128xf32>,
    return
  }
  func.func @transform_0(%arg0: i32, %arg1: i32) -> (i32, i32, i32) {
    %c0_i32 = arith.constant 0 : i32
    %c0_i32_0 = arith.constant 0 : i32
    return %arg0, %arg1, %c0_i32 : i32, i32, i32
  }
  func.func @transform_1(%arg0: i32, %arg1: i32) -> (i32, i32, i32) {
    %c0_i32 = arith.constant 0 : i32
    %c0_i32_0 = arith.constant 0 : i32
    return %arg0, %arg1, %c0_i32 : i32, i32, i32
  }
  func.func @transform_2(%arg0: i32, %arg1: i32) -> (i32, i32, i32) {
    %c0_i32 = arith.constant 0 : i32
    %c1_i32 = arith.constant 1 : i32
    %c0_i32_0 = arith.constant 0 : i32
    return %arg0, %c0_i32, %c1_i32 : i32, i32, i32
  }
  func.func @transform_3(%arg0: i32, %arg1: i32) -> (i32, i32, i32) {
    %c0_i32 = arith.constant 0 : i32
    %c2_i32 = arith.constant 2 : i32
    %c0_i32_0 = arith.constant 0 : i32
    return %arg0, %c0_i32, %c2_i32 : i32, i32, i32
  }
  func.func @transform_4(%arg0: i32, %arg1: i32) -> (i32, i32) {
    %c0_i32 = arith.constant 0 : i32
    %c0_i32_0 = arith.constant 0 : i32
    %c0_i32_1 = arith.constant 0 : i32
    return %c0_i32, %c0_i32_0 : i32, i32
  }
  func.func @transform_5(%arg0: i32, %arg1: i32) -> (i32, i32) {
    %c0_i32 = arith.constant 0 : i32
    %c0_i32_0 = arith.constant 0 : i32
    %c0_i32_1 = arith.constant 0 : i32
    return %c0_i32, %c0_i32_0 : i32, i32
  }
  func.func @transform_6(%arg0: i32, %arg1: i32) -> (i32, i32) {
    %c0_i32 = arith.constant 0 : i32
    %c0_i32_0 = arith.constant 0 : i32
    %c0_i32_1 = arith.constant 0 : i32
    return %c0_i32, %c0_i32_0 : i32, i32
  }
  func.func @transform_7(%arg0: i32, %arg1: i32) -> (i32, i32) {
    %c0_i32 = arith.constant 0 : i32
    %c0_i32_0 = arith.constant 0 : i32
    %c0_i32_1 = arith.constant 0 : i32
    return %c0_i32, %c0_i32_0 : i32, i32
  }
  func.func @transform_8(%arg0: i32, %arg1: i32) -> (i32, i32) {
    %c0_i32 = arith.constant 0 : i32
    %c0_i32_0 = arith.constant 0 : i32
    %c0_i32_1 = arith.constant 0 : i32
    return %c0_i32, %c0_i32_0 : i32, i32
  }
  func.func @transform_9(%arg0: i32, %arg1: i32) -> (i32, i32) {
    %c0_i32 = arith.constant 0 : i32
    %c0_i32_0 = arith.constant 0 : i32
    %c0_i32_1 = arith.constant 0 : i32
    return %c0_i32, %c0_i32_0 : i32, i32
  }
  func.func @transform_10(%arg0: i32, %arg1: i32) -> (i32, i32) {
    %c0_i32 = arith.constant 0 : i32
    %c0_i32_0 = arith.constant 0 : i32
    %c0_i32_1 = arith.constant 0 : i32
    return %c0_i32, %c0_i32_0 : i32, i32
  }
  func.func @transform_11(%arg0: i32, %arg1: i32) -> (i32, i32) {
    %c0_i32 = arith.constant 0 : i32
    %c0_i32_0 = arith.constant 0 : i32
    %c0_i32_1 = arith.constant 0 : i32
    return %c0_i32, %c0_i32_0 : i32, i32
  }
  func.func @transform_12(%arg0: i32, %arg1: i32) -> (i32, i32, i32) {
    %c0_i32 = arith.constant 0 : i32
    %c0_i32_0 = arith.constant 0 : i32
    return %arg0, %arg1, %c0_i32 : i32, i32, i32
  }
}

module attributes {stable_mosaic.version = 11 : i64} {
  func.func @head_kernel(%arg0: i32, %arg1: memref<1x4x128xf32, #tpu.memory_space<vmem>>, %arg2: memref<1x128xf32, #tpu.memory_space<vmem>>, %arg3: memref<1x128xf32, #tpu.memory_space<vmem>>, %arg4: memref<128x128xbf16, #tpu.memory_space<vmem>>, %arg5: memref<1x128xf32, #tpu.memory_space<vmem>>, %arg6: memref<1x4x128xf32, #tpu.memory_space<vmem>>) attributes {dimension_semantics = [#tpu.dimension_semantics<parallel>], iteration_bounds = array<i64: 2>, scalar_prefetch = 0 : i64, scratch_operands = 0 : i64, tpu.core_type = #tpu.core_type<tc>, window_params = [{transform_indices = @transform_0, window_bounds = array<i64: 1, 4, 128>}, {pipeline_mode = #tpu.pipeline_mode<synchronous>, transform_indices = @transform_1, window_bounds = array<i64: 1, 128>}, {pipeline_mode = #tpu.pipeline_mode<synchronous>, transform_indices = @transform_2, window_bounds = array<i64: 1, 128>}, {pipeline_mode = #tpu.pipeline_mode<synchronous>, transform_indices = @transform_3, window_bounds = array<i64: 128, 128>}, {pipeline_mode = #tpu.pipeline_mode<synchronous>, transform_indices = @transform_4, window_bounds = array<i64: 1, 128>}, {transform_indices = @transform_5, window_bounds = array<i64: 1, 4, 128>}]} {
    %c0 = arith.constant 0 : index
    %c0_0 = arith.constant 0 : index
    %c0_1 = arith.constant 0 : index
    %0 = vector.load %arg1[%c0, %c0_0, %c0_1] : memref<1x4x128xf32, #tpu.memory_space<vmem>>, vector<1x4x128xf32>
    %1 = vector.shape_cast %0 : vector<1x4x128xf32> to vector<4x128xf32>
    %c0_2 = arith.constant 0 : index
    %c0_3 = arith.constant 0 : index
    %2 = vector.load %arg2[%c0_2, %c0_3] : memref<1x128xf32, #tpu.memory_space<vmem>>, vector<1x128xf32>
    %c0_4 = arith.constant 0 : index
    %c0_5 = arith.constant 0 : index
    %3 = vector.load %arg3[%c0_4, %c0_5] : memref<1x128xf32, #tpu.memory_space<vmem>>, vector<1x128xf32>
    %cst = arith.constant dense<0.000000e+00> : vector<4xf32>
    %4 = vector.multi_reduction <add>, %1, %cst [1] : vector<4x128xf32> to vector<4xf32>
    %5 = vector.shape_cast %4 : vector<4xf32> to vector<4x1xf32>
    %cst_6 = arith.constant 1.280000e+02 : f32
    %6 = vector.broadcast %cst_6 : f32 to vector<4x1xf32>
    %7 = arith.divf %5, %6 : vector<4x1xf32>
    %8 = vector.broadcast %7 : vector<4x1xf32> to vector<4x128xf32>
    %9 = arith.subf %1, %8 : vector<4x128xf32>
    %10 = arith.mulf %9, %9 : vector<4x128xf32>
    %cst_7 = arith.constant dense<0.000000e+00> : vector<4xf32>
    %11 = vector.multi_reduction <add>, %10, %cst_7 [1] : vector<4x128xf32> to vector<4xf32>
    %12 = vector.shape_cast %11 : vector<4xf32> to vector<4x1xf32>
    %cst_8 = arith.constant 1.280000e+02 : f32
    %13 = vector.broadcast %cst_8 : f32 to vector<4x1xf32>
    %14 = arith.divf %12, %13 : vector<4x1xf32>
    %15 = vector.broadcast %7 : vector<4x1xf32> to vector<4x128xf32>
    %16 = arith.subf %1, %15 : vector<4x128xf32>
    %cst_9 = arith.constant 9.99999974E-6 : f32
    %17 = vector.broadcast %cst_9 : f32 to vector<4x1xf32>
    %18 = arith.addf %14, %17 : vector<4x1xf32>
    %19 = math.rsqrt %18 : vector<4x1xf32>
    %20 = vector.broadcast %19 : vector<4x1xf32> to vector<4x128xf32>
    %21 = arith.mulf %16, %20 : vector<4x128xf32>
    %22 = vector.broadcast %2 : vector<1x128xf32> to vector<4x128xf32>
    %23 = arith.mulf %21, %22 : vector<4x128xf32>
    %24 = vector.broadcast %3 : vector<1x128xf32> to vector<4x128xf32>
    %25 = arith.addf %23, %24 : vector<4x128xf32>
    %26 = arith.truncf %25 : vector<4x128xf32> to vector<4x128xbf16>
    %c0_10 = arith.constant 0 : index
    %c0_11 = arith.constant 0 : index
    %27 = vector.load %arg4[%c0_10, %c0_11] : memref<128x128xbf16, #tpu.memory_space<vmem>>, vector<128x128xbf16>
    %cst_12 = arith.constant dense<0.000000e+00> : vector<4x128xf32>
    %28 = tpu.matmul %26, %27, %cst_12 {dimension_numbers = #tpu.dot_dimension_numbers<[1], [0], [0], [1], [0, 0, 1, 1], [], []>} : vector<4x128xbf16>, vector<128x128xbf16>, vector<4x128xf32> -> vector<4x128xf32>
    %c0_13 = arith.constant 0 : index
    %c0_14 = arith.constant 0 : index
    %29 = vector.load %arg5[%c0_13, %c0_14] : memref<1x128xf32, #tpu.memory_space<vmem>>, vector<1x128xf32>
    %30 = vector.broadcast %29 : vector<1x128xf32> to vector<4x128xf32>
    %31 = arith.addf %28, %30 : vector<4x128xf32>
    %c0_15 = arith.constant 0 : index
    %c0_16 = arith.constant 0 : index
    %c0_17 = arith.constant 0 : index
    %32 = vector.load %arg6[%c0_15, %c0_16, %c0_17] : memref<1x4x128xf32, #tpu.memory_space<vmem>>, vector<1x4x128xf32>
    %33 = vector.shape_cast %32 : vector<1x4x128xf32> to vector<4x128xf32>
    %34 = vector.shape_cast %31 : vector<4x128xf32> to vector<1x4x128xf32>
    tpu.vector_store %arg6[%c0_15, %c0_16, %c0_17], %34 {strides = array<i32>} : memref<1x4x128xf32, #tpu.memory_space<vmem>>, vector<1x4x128xf32>,
    return
  }
  func.func @transform_0(%arg0: i32) -> (i32, i32, i32) {
    %c0_i32 = arith.constant 0 : i32
    %c0_i32_0 = arith.constant 0 : i32
    %c0_i32_1 = arith.constant 0 : i32
    return %arg0, %c0_i32, %c0_i32_0 : i32, i32, i32
  }
  func.func @transform_1(%arg0: i32) -> (i32, i32) {
    %c0_i32 = arith.constant 0 : i32
    %c0_i32_0 = arith.constant 0 : i32
    %c0_i32_1 = arith.constant 0 : i32
    return %c0_i32, %c0_i32_0 : i32, i32
  }
  func.func @transform_2(%arg0: i32) -> (i32, i32) {
    %c0_i32 = arith.constant 0 : i32
    %c0_i32_0 = arith.constant 0 : i32
    %c0_i32_1 = arith.constant 0 : i32
    return %c0_i32, %c0_i32_0 : i32, i32
  }
  func.func @transform_3(%arg0: i32) -> (i32, i32) {
    %c0_i32 = arith.constant 0 : i32
    %c0_i32_0 = arith.constant 0 : i32
    %c0_i32_1 = arith.constant 0 : i32
    return %c0_i32, %c0_i32_0 : i32, i32
  }
  func.func @transform_4(%arg0: i32) -> (i32, i32) {
    %c0_i32 = arith.constant 0 : i32
    %c0_i32_0 = arith.constant 0 : i32
    %c0_i32_1 = arith.constant 0 : i32
    return %c0_i32, %c0_i32_0 : i32, i32
  }
  func.func @transform_5(%arg0: i32) -> (i32, i32, i32) {
    %c0_i32 = arith.constant 0 : i32
    %c0_i32_0 = arith.constant 0 : i32
    %c0_i32_1 = arith.constant 0 : i32
    return %arg0, %c0_i32, %c0_i32_0 : i32, i32, i32
  }
}

</mosaic_0001>

<llo_original>
// kernel: decoder_forward.5
$region0: #{decoder_forward.5}
  #allocation0 [shape = 'u32[]', space=smem, size = 0x4, offset = 0x4, fixed_abs, tag = 'smem constant byte address 0x4 - core index']
  #allocation1 [shape = 'u32[144,128]{1,0:T(1,128)}', space=vmem, size = 0x12000, scoped, tag = 'internal scratch']
  %s0 = inlined_call_operand.vmem [shape: f32[2,8,128], index: 0, kind: input, shape index: {}]
  %s1 = inlined_call_operand.vmem [shape: f32[1,128], index: 1, kind: input, shape index: {}]
  %s2 = inlined_call_operand.vmem [shape: f32[1,128], index: 2, kind: input, shape index: {}]
  %s3 = inlined_call_operand.vmem [shape: bf16[128,384], index: 3, kind: input, shape index: {}]
  %s4 = inlined_call_operand.vmem [shape: bf16[2,8,384], index: 4, kind: output, shape index: {}]
  %s5 = sld [smem:[#allocation0]]
  $region49: #{decoder_forward.5} parent=0
    _
  %s7 = ssub.s32 1, %s5
  %s8 = scalar_select 0, %s7, %s5
  loop: start=0, step=1, limit=4
  $region2: #{decoder_forward.5} parent=0 // loop_pre_header
    _
  $region3: #{decoder_forward.5} parent=0 // loop_header
    %s10 = sphi 0, %s14
    %p11 = scmp.ge.s32.totalorder %s10, 4
    %s17 = sphi 0, %s29
    %s18 = sphi 0, %s25
    %s19 = sphi 0, %s17
    %s20 = sphi 0, %s18
    %s21 = sphi 0, %s19
    %s22 = sphi 0, %s20
    %s34 = sphi 0, %s36
    %s37 = sphi 0, %s34
    %s38 = sphi 0, %s37
    %s54 = sphi 0, %s38
    %s58 = sphi 0, %s58
    %s60 = sphi 0, %s58
    %s61 = sphi 0, %s60
    %s75 = sphi 0, %s61
    %s79 = sphi 0, %s79
    %s81 = sphi 0, %s79
    %s82 = sphi 0, %s81
    %s96 = sphi 0, %s82
    %s100 = sphi 0, %s100
    %s102 = sphi 0, %s100
    %s103 = sphi 0, %s102
    %s117 = sphi 0, %s103
    %s125 = sphi 0, %s127
    %s128 = sphi 0, %s125
    %s129 = sphi 0, %s128
    %s145 = sphi 0, %s129
  $region4: #{decoder_forward.5} parent=0 // loop_header_branch
    %13 = sbr.rel (%p11) target = $region8
  $region5: #{decoder_forward.5} parent=0 // loop_body
    %s15 = ssub.s32 %s10, 1
    %s16 = ssub.s32 %s10, 2
    %s23 = sadd.s32 1, %s18
    %p24 = scmp.ge.s32.totalorder %s23, 1
    %s25 = scalar_select %p24, 0, %s23
    %s26 = sadd.s32 1, %s17
    %s27 = scalar_select %p24, %s26, %s17
    %p28 = scmp.ge.s32.totalorder %s27, 2
    %s29 = scalar_select %p28, 0, %s27
    %s30 = ssub.s32 %s17, %s29
    %s31 = ssub.s32 %s18, %s25
    %s32 = sor.u32 %s30, %s31
    %p33 = scmp.eq.s32.totalorder %s32, 0
    %s35 = sadd.s32 %s34, 1
    %s36 = scalar_select %p33, %s34, %s35
    %p39 = pneg %p33
    %p40 = scmp.eq.s32.totalorder %s10, 1
    %p41 = por %p39, %p40
    %p42 = scmp.ne.s32.totalorder %s34, %s37
    %p43 = scmp.eq.s32.totalorder %s10, 0
    %p44 = por %p42, %p43
    %p45 = scmp.ne.s32.totalorder %s34, %s37
    %p46 = scmp.eq.s32.totalorder %s15, 1
    %p47 = por %p45, %p46
    %p48 = scmp.ne.s32.totalorder %s37, %s38
    %p49 = scmp.eq.s32.totalorder %s15, 0
    %p50 = por %p48, %p49
    %p51 = scmp.ne.s32.totalorder %s37, %s38
    %p52 = scmp.eq.s32.totalorder %s16, 1
    %p53 = por %p51, %p52
    %p55 = scmp.ne.s32.totalorder %s38, %s54
    %p56 = scmp.eq.s32.totalorder %s16, 0
    %p57 = por %p55, %p56
    %s59 = sadd.s32 %s58, 1
    %p62 = scmp.eq.s32.totalorder %s10, 1
    %p63 = scmp.ne.s32.totalorder %s58, %s60
    %p64 = scmp.eq.s32.totalorder %s10, 0
    %p65 = por %p63, %p64
    %p66 = scmp.ne.s32.totalorder %s58, %s60
    %p67 = scmp.eq.s32.totalorder %s15, 1
    %p68 = por %p66, %p67
    %p69 = scmp.ne.s32.totalorder %s60, %s61
    %p70 = scmp.eq.s32.totalorder %s15, 0
    %p71 = por %p69, %p70
    %p72 = scmp.ne.s32.totalorder %s60, %s61
    %p73 = scmp.eq.s32.totalorder %s16, 1
    %p74 = por %p72, %p73
    %p76 = scmp.ne.s32.totalorder %s61, %s75
    %p77 = scmp.eq.s32.totalorder %s16, 0
    %p78 = por %p76, %p77
    %s80 = sadd.s32 %s79, 1
    %p83 = scmp.eq.s32.totalorder %s10, 1
    %p84 = scmp.ne.s32.totalorder %s79, %s81
    %p85 = scmp.eq.s32.totalorder %s10, 0
    %p86 = por %p84, %p85
    %p87 = scmp.ne.s32.totalorder %s79, %s81
    %p88 = scmp.eq.s32.totalorder %s15, 1
    %p89 = por %p87, %p88
    %p90 = scmp.ne.s32.totalorder %s81, %s82
    %p91 = scmp.eq.s32.totalorder %s15, 0
    %p92 = por %p90, %p91
    %p93 = scmp.ne.s32.totalorder %s81, %s82
    %p94 = scmp.eq.s32.totalorder %s16, 1
    %p95 = por %p93, %p94
    %p97 = scmp.ne.s32.totalorder %s82, %s96
    %p98 = scmp.eq.s32.totalorder %s16, 0
    %p99 = por %p97, %p98
    %s101 = sadd.s32 %s100, 1
    %p104 = scmp.eq.s32.totalorder %s10, 1
    %p105 = scmp.ne.s32.totalorder %s100, %s102
    %p106 = scmp.eq.s32.totalorder %s10, 0
    %p107 = por %p105, %p106
    %p108 = scmp.ne.s32.totalorder %s100, %s102
    %p109 = scmp.eq.s32.totalorder %s15, 1
    %p110 = por %p108, %p109
    %p111 = scmp.ne.s32.totalorder %s102, %s103
    %p112 = scmp.eq.s32.totalorder %s15, 0
    %p113 = por %p111, %p112
    %p114 = scmp.ne.s32.totalorder %s102, %s103
    %p115 = scmp.eq.s32.totalorder %s16, 1
    %p116 = por %p114, %p115
    %p118 = scmp.ne.s32.totalorder %s103, %s117
    %p119 = scmp.eq.s32.totalorder %s16, 0
    %p120 = por %p118, %p119
    %s121 = ssub.s32 %s17, %s29
    %s122 = ssub.s32 %s18, %s25
    %s123 = sor.u32 %s121, %s122
    %p124 = scmp.eq.s32.totalorder %s123, 0
    %s126 = sadd.s32 %s125, 1
    %s127 = scalar_select %p124, %s125, %s126
    %p130 = pneg %p124
    %p131 = scmp.eq.s32.totalorder %s10, 1
    %p132 = por %p130, %p131
    %p133 = scmp.ne.s32.totalorder %s125, %s128
    %p134 = scmp.eq.s32.totalorder %s10, 0
    %p135 = por %p133, %p134
    %p136 = scmp.ne.s32.totalorder %s125, %s128
    %p137 = scmp.eq.s32.totalorder %s15, 1
    %p138 = por %p136, %p137
    %p139 = scmp.ne.s32.totalorder %s128, %s129
    %p140 = scmp.eq.s32.totalorder %s15, 0
    %p141 = por %p139, %p140
    %p142 = scmp.ne.s32.totalorder %s128, %s129
    %p143 = scmp.eq.s32.totalorder %s16, 1
    %p144 = por %p142, %p143
    %p146 = scmp.ne.s32.totalorder %s129, %s145
    %p147 = scmp.eq.s32.totalorder %s16, 0
    %p148 = por %p146, %p147
    %p149 = scmp.le.s32.totalorder 1, %s10
    %p150 = scmp.lt.s32.totalorder %s10, 3
    %p151 = pnand %p149, %p150
    %p152 = pneg %p151
    // Predicated region
    $region9: #{decoder_forward.5} parent=5 // pred_check
      _
    $region10: #{decoder_forward.5} parent=5 // pred_check_branch
      %154 = sbr.rel (%p151) target = $region12
    $region11: #{decoder_forward.5} parent=5 // pred_region
      %s155 = ssub.s32 %s10, 1
      // Predicated region
      $region13: #{decoder_forward.5} parent=11 // pred_check
        %p156 = pneg %p71
      $region14: #{decoder_forward.5} parent=11 // pred_check_branch
        %158 = sbr.rel (%p156) target = $region16
      $region15: #{decoder_forward.5} parent=11 // pred_region
        _
      $region16: #{decoder_forward.5} parent=11 // pred_fallthru
        _
      // Predicated region
      $region17: #{decoder_forward.5} parent=11 // pred_check
        %p159 = pneg %p92
      $region18: #{decoder_forward.5} parent=11 // pred_check_branch
        %161 = sbr.rel (%p159) target = $region20
      $region19: #{decoder_forward.5} parent=11 // pred_region
        _
      $region20: #{decoder_forward.5} parent=11 // pred_fallthru
        _
      // Predicated region
      $region21: #{decoder_forward.5} parent=11 // pred_check
        %p162 = pneg %p113
      $region22: #{decoder_forward.5} parent=11 // pred_check_branch
        %164 = sbr.rel (%p162) target = $region24
      $region23: #{decoder_forward.5} parent=11 // pred_region
        _
      $region24: #{decoder_forward.5} parent=11 // pred_fallthru
        _
    $region12: #{decoder_forward.5} parent=5 // pred_fallthru
      _
    %p165 = scmp.lt.s32.totalorder %s10, 2
    // Predicated region
    $region25: #{decoder_forward.5} parent=5 // pred_check
      %p166 = pneg %p165
    $region26: #{decoder_forward.5} parent=5 // pred_check_branch
      %168 = sbr.rel (%p166) target = $region28
    $region27: #{decoder_forward.5} parent=5 // pred_region
      // Predicated region
      $region29: #{decoder_forward.5} parent=27 // pred_check
        %p169 = pneg %p44
      $region30: #{decoder_forward.5} parent=27 // pred_check_branch
        %171 = sbr.rel (%p169) target = $region32
      $region31: #{decoder_forward.5} parent=27 // pred_region
        %p172 = scmp.lt.s32.totalorder %s17, 1
        %s173 = scalar_select %p172, %s17, 1
        %p174 = scmp.lt.s32.totalorder %s18, 0
        %s175 = scalar_select %p174, %s18, 0
        %s176 = sadd.s32 %s175, %s173
        %s177 = smul.addr %s176, 8
        %s178 = scalar_lea.vmem %s0, %s177
      $region32: #{decoder_forward.5} parent=27 // pred_fallthru
        _
    $region28: #{decoder_forward.5} parent=5 // pred_fallthru
      _
    %p179 = scmp.le.s32.totalorder 1, %s10
    %p180 = scmp.lt.s32.totalorder %s10, 3
    %p181 = pnand %p179, %p180
    %p182 = pneg %p181
    // Predicated region
    $region33: #{decoder_forward.5} parent=5 // pred_check
      _
    $region34: #{decoder_forward.5} parent=5 // pred_check_branch
      %184 = sbr.rel (%p181) target = $region36
    $region35: #{decoder_forward.5} parent=5 // pred_region
      %s185 = ssub.s32 %s10, 1
      %p186 = scmp.lt.s32.totalorder %s19, 1
      %s187 = scalar_select %p186, %s19, 1
      %p188 = scmp.lt.s32.totalorder %s20, 0
      %s189 = scalar_select %p188, %s20, 0
      %s190 = sadd.s32 %s189, %s187
      %s191 = smul.addr %s190, 8
      %s192 = scalar_lea.vmem %s0, %s191
      %p193 = pneg %p50
      %p194 = pneg %p47
      %p195 = pneg %p71
      %p196 = pneg %p68
      %p197 = pneg %p92
      %p198 = pneg %p89
      %p199 = pneg %p113
      %p200 = pneg %p110
      %p201 = pneg %p141
      %p202 = pneg %p138
      %p203 = scmp.lt.s32.totalorder %s19, 1
      %s204 = scalar_select %p203, %s19, 1
      %p205 = scmp.lt.s32.totalorder %s20, 0
      %s206 = scalar_select %p205, %s20, 0
      %s207 = smul.addr %s206, 3
      %s208 = smul.addr %s204, 3
      %s209 = sadd.s32 %s207, %s208
      %s210 = smul.addr %s209, 4
      %s211 = scalar_lea.vmem %s4, %s210
      %p212 = scmp.lt.s32.totalorder %s19, 1
      %s213 = scalar_select %p212, %s19, 1
      %p214 = scmp.lt.s32.totalorder %s20, 0
      %s215 = scalar_select %p214, %s20, 0
      %s216 = sadd.s32 %s215, %s213
      %s217 = smul.addr %s216, 8
      %s218 = scalar_lea.vmem %s0, %s217
      %p219 = scmp.lt.s32.totalorder %s19, 1
      %s220 = scalar_select %p219, %s19, 1
      %p221 = scmp.lt.s32.totalorder %s20, 0
      %s222 = scalar_select %p221, %s20, 0
      %s223 = smul.addr %s222, 3
      %s224 = smul.addr %s220, 3
      %s225 = sadd.s32 %s223, %s224
      %s226 = smul.addr %s225, 4
      %s227 = scalar_lea.vmem %s4, %s226
      %v229 = vld [vmem:[%s218] sm:$0xff]
      %v230 = vld [vmem:[%s1] sm:$0x1]
      %v231 = vld [vmem:[%s2] sm:$0x1]
      %232 = vadd.xlane.f32.xlu0 %v229
      %v233 = vpop.xlane.xlu0 %232
      %v234 = vrcp.pop 128.0
      %v235 = vmul.f32 %v233, %v234
      %v236 = vsub.f32 %v229, %v235
      %v237 = vmul.f32 %v236, %v236
      %238 = vadd.xlane.f32.xlu0 %v237
      %v239 = vpop.xlane.xlu0 %238
      %v240 = vmul.f32 %v239, %v234
      %v241 = vadd.f32 %v240, 1e-05
      %v242 = vrsqrt.pop %v241
      %v243 = vmul.f32 %v236, %v242
      %v245 = vlaneseq
      %v246 = vshrl.u32 %v245, 7
      %v247 = vsub.s32 0, %v246
      %v248 = vrot.slane %v230, %v247
      %v250 = vmul.f32 %v243, %v248
      %v252 = vlaneseq
      %v253 = vshrl.u32 %v252, 7
      %v254 = vsub.s32 0, %v253
      %v255 = vrot.slane %v231, %v254
      %v257 = vadd.f32 %v250, %v255
      %v258 = vpack.c.bf16 %v257, %v257
      %v259 = vld [vmem:[%s3] sm:$0xff]
      %v260 = vld [vmem:[%s3 + $0x8] sm:$0xf]
      %v261 = vld [vmem:[%s3 + $0xc] sm:$0xff]
      %v262 = vld [vmem:[%s3 + $0x14] sm:$0xf]
      %v263 = vld [vmem:[%s3 + $0x18] sm:$0xff]
      %v264 = vld [vmem:[%s3 + $0x20] sm:$0xf]
      %v265 = vld [vmem:[%s3 + $0x24] sm:$0xff]
      %v266 = vld [vmem:[%s3 + $0x2c] sm:$0xf]
      %v267 = vld [vmem:[%s3 + $0x30] sm:$0xff]
      %v268 = vld [vmem:[%s3 + $0x38] sm:$0xf]
      %v269 = vld [vmem:[%s3 + $0x3c] sm:$0xff]
      %v270 = vld [vmem:[%s3 + $0x44] sm:$0xf]
      %v271 = vld [vmem:[%s3 + $0x48] sm:$0xff]
      %v272 = vld [vmem:[%s3 + $0x50] sm:$0xf]
      %v273 = vld [vmem:[%s3 + $0x54] sm:$0xff]
      %v274 = vld [vmem:[%s3 + $0x5c] sm:$0xf]
      %v275 = vld [vmem:[%s3 + $0x60] sm:$0xff]
      %v276 = vld [vmem:[%s3 + $0x68] sm:$0xf]
      %v277 = vld [vmem:[%s3 + $0x6c] sm:$0xff]
      %v278 = vld [vmem:[%s3 + $0x74] sm:$0xf]
      %v279 = vld [vmem:[%s3 + $0x78] sm:$0xff]
      %v280 = vld [vmem:[%s3 + $0x80] sm:$0xf]
      %v281 = vld [vmem:[%s3 + $0x84] sm:$0xff]
      %v282 = vld [vmem:[%s3 + $0x8c] sm:$0xf]
      %v283 = vld [vmem:[%s3 + $0x90] sm:$0xff]
      %v284 = vld [vmem:[%s3 + $0x98] sm:$0xf]
      %v285 = vld [vmem:[%s3 + $0x9c] sm:$0xff]
      %v286 = vld [vmem:[%s3 + $0xa4] sm:$0xf]
      %v287 = vld [vmem:[%s3 + $0xa8] sm:$0xff]
      %v288 = vld [vmem:[%s3 + $0xb0] sm:$0xf]
      %v289 = vld [vmem:[%s3 + $0xb4] sm:$0xff]
      %v290 = vld [vmem:[%s3 + $0xbc] sm:$0xf]
      %v323 = vunpack.c.l.b16 %v259
      %v324 = vunpack.c.h.b16 %v259
      %v325 = vunpack.c.l.b16 %v260
      %v326 = vunpack.c.l.b16 %v261
      %v327 = vunpack.c.h.b16 %v261
      %v328 = vunpack.c.l.b16 %v262
      %v329 = vunpack.c.l.b16 %v263
      %v330 = vunpack.c.h.b16 %v263
      %v331 = vunpack.c.l.b16 %v264
      %v332 = vunpack.c.l.b16 %v265
      %v333 = vunpack.c.h.b16 %v265
      %v334 = vunpack.c.l.b16 %v266
      %v335 = vunpack.c.l.b16 %v267
      %v336 = vunpack.c.h.b16 %v267
      %v337 = vunpack.c.l.b16 %v268
      %v338 = vunpack.c.l.b16 %v269
      %v339 = vunpack.c.h.b16 %v269
      %v340 = vunpack.c.l.b16 %v270
      %v341 = vunpack.c.l.b16 %v271
      %v342 = vunpack.c.h.b16 %v271
      %v343 = vunpack.c.l.b16 %v272
      %v344 = vunpack.c.l.b16 %v273
      %v345 = vunpack.c.h.b16 %v273
      %v346 = vunpack.c.l.b16 %v274
      %v347 = vunpack.c.l.b16 %v275
      %v348 = vunpack.c.h.b16 %v275
      %v349 = vunpack.c.l.b16 %v276
      %v350 = vunpack.c.l.b16 %v277
      %v351 = vunpack.c.h.b16 %v277
      %v352 = vunpack.c.l.b16 %v278
      %v353 = vunpack.c.l.b16 %v279
      %v354 = vunpack.c.h.b16 %v279
      %v355 = vunpack.c.l.b16 %v280
      %v356 = vunpack.c.l.b16 %v281
      %v357 = vunpack.c.h.b16 %v281
      %v358 = vunpack.c.l.b16 %v282
      %v359 = vunpack.c.l.b16 %v283
      %v360 = vunpack.c.h.b16 %v283
      %v361 = vunpack.c.l.b16 %v284
      %v362 = vunpack.c.l.b16 %v285
      %v363 = vunpack.c.h.b16 %v285
      %v364 = vunpack.c.l.b16 %v286
      %v365 = vunpack.c.l.b16 %v287
      %v366 = vunpack.c.h.b16 %v287
      %v367 = vunpack.c.l.b16 %v288
      %v368 = vunpack.c.l.b16 %v289
      %v369 = vunpack.c.h.b16 %v289
      %v370 = vunpack.c.l.b16 %v290
      %v371 = vpack.c.b16 %v326, %v323
      %v372 = vpack.c.b16 %v327, %v324
      %v373 = vpack.c.b16 %v328, %v325
      %v374 = vpack.c.b16 %v332, %v329
      %v375 = vpack.c.b16 %v333, %v330
      %v376 = vpack.c.b16 %v334, %v331
      %v377 = vpack.c.b16 %v338, %v335
      %v378 = vpack.c.b16 %v339, %v336
      %v379 = vpack.c.b16 %v340, %v337
      %v380 = vpack.c.b16 %v344, %v341
      %v381 = vpack.c.b16 %v345, %v342
      %v382 = vpack.c.b16 %v346, %v343
      %v383 = vpack.c.b16 %v350, %v347
      %v384 = vpack.c.b16 %v351, %v348
      %v385 = vpack.c.b16 %v352, %v349
      %v386 = vpack.c.b16 %v356, %v353
      %v387 = vpack.c.b16 %v357, %v354
      %v388 = vpack.c.b16 %v358, %v355
      %v389 = vpack.c.b16 %v362, %v359
      %v390 = vpack.c.b16 %v363, %v360
      %v391 = vpack.c.b16 %v364, %v361
      %v392 = vpack.c.b16 %v368, %v365
      %v393 = vpack.c.b16 %v369, %v366
      %v394 = vpack.c.b16 %v370, %v367
      %419 = vmatprep.subr.bf16.mxu0 %v372
      %420 = vmatpush1.bf16.msra.mxu0 %v371
      %421 = vmatprep.subr.bf16.mxu0 %v375
      %422 = vmatpush1.bf16.msra.mxu0 %v374
      %423 = vmatprep.subr.bf16.mxu0 %v378
      %424 = vmatpush1.bf16.msra.mxu0 %v377
      %425 = vmatprep.subr.bf16.mxu0 %v381
      %426 = vmatpush1.bf16.msra.mxu0 %v380
      %427 = vmatprep.subr.bf16.mxu0 %v384
      %428 = vmatpush1.bf16.msra.mxu0 %v383
      %429 = vmatprep.subr.bf16.mxu0 %v387
      %430 = vmatpush1.bf16.msra.mxu0 %v386
      %431 = vmatprep.subr.bf16.mxu0 %v390
      %432 = vmatpush1.bf16.msra.mxu0 %v389
      %433 = vmatprep.subr.bf16.mxu0 %v393
      %434 = vmatpush1.bf16.msra.mxu0 %v392
      %435 = vmatprep.subr.bf16.mxu0 0
      %436 = vmatpush1.bf16.msra.mxu0 0
      %437 = vmatprep.subr.bf16.mxu0 0
      %438 = vmatpush1.bf16.msra.mxu0 0
      %439 = vmatprep.subr.bf16.mxu0 0
      %440 = vmatpush1.bf16.msra.mxu0 0
      %441 = vmatprep.subr.bf16.mxu0 0
      %442 = vmatpush1.bf16.msra.mxu0 0
      %443 = vmatprep.subr.bf16.mxu0 0
      %444 = vmatpush1.bf16.msra.mxu0 0
      %445 = vmatprep.subr.bf16.mxu0 0
      %446 = vmatpush1.bf16.msra.mxu0 0
      %447 = vmatprep.subr.bf16.mxu0 0
      %448 = vmatpush1.bf16.msra.mxu0 0
      %449 = vmatprep.subr.bf16.mxu0 0
      %450 = vmatpush1.bf16.msra.mxu0 0
      %451 = vmatprep.mubr.bf16.mxu0 0
      %452 = vmatmul.mubr.bf16.gmra.mrb[0].mxu0 %v258
      %v453 = vpop.f32.mrb[0].mxu0
      %v454 = vadd.f32 0.0, %v453
      %v455 = vpop.f32.mrb[0].mxu0
      %v456 = vadd.f32 0.0, %v455
      %v457 = vpop.f32.mrb[0].mxu0
      %v458 = vpop.f32.mrb[0].mxu0
      %459 = vdwg.mxu0
      %460 = vmatprep.subr.bf16.mxu0 0
      %461 = vmatpush1.bf16.msra.mxu0 %v373
      %462 = vmatprep.subr.bf16.mxu0 0
      %463 = vmatpush1.bf16.msra.mxu0 %v376
      %464 = vmatprep.subr.bf16.mxu0 0
      %465 = vmatpush1.bf16.msra.mxu0 %v379
      %466 = vmatprep.subr.bf16.mxu0 0
      %467 = vmatpush1.bf16.msra.mxu0 %v382
      %468 = vmatprep.subr.bf16.mxu0 0
      %469 = vmatpush1.bf16.msra.mxu0 %v385
      %470 = vmatprep.subr.bf16.mxu0 0
      %471 = vmatpush1.bf16.msra.mxu0 %v388
      %472 = vmatprep.subr.bf16.mxu0 0
      %473 = vmatpush1.bf16.msra.mxu0 %v391
      %474 = vmatprep.subr.bf16.mxu0 0
      %475 = vmatpush1.bf16.msra.mxu0 %v394
      %476 = vmatprep.subr.bf16.mxu0 0
      %477 = vmatpush1.bf16.msra.mxu0 0
      %478 = vmatprep.subr.bf16.mxu0 0
      %479 = vmatpush1.bf16.msra.mxu0 0
      %480 = vmatprep.subr.bf16.mxu0 0
      %481 = vmatpush1.bf16.msra.mxu0 0
      %482 = vmatprep.subr.bf16.mxu0 0
      %483 = vmatpush1.bf16.msra.mxu0 0
      %484 = vmatprep.subr.bf16.mxu0 0
      %485 = vmatpush1.bf16.msra.mxu0 0
      %486 = vmatprep.subr.bf16.mxu0 0
      %487 = vmatpush1.bf16.msra.mxu0 0
      %488 = vmatprep.subr.bf16.mxu0 0
      %489 = vmatpush1.bf16.msra.mxu0 0
      %490 = vmatprep.subr.bf16.mxu0 0
      %491 = vmatpush1.bf16.msra.mxu0 0
      %492 = vmatprep.mubr.bf16.mxu0 0
      %493 = vmatmul.mubr.bf16.gmra.mrb[0].mxu0 %v258
      %v494 = vpop.f32.mrb[0].mxu0
      %v495 = vadd.f32 0.0, %v494
      %v496 = vpop.f32.mrb[0].mxu0
      %v497 = vpop.f32.mrb[0].mxu0
      %v498 = vpop.f32.mrb[0].mxu0
      %499 = vdwg.mxu0
      %v500 = vpack.c.bf16 %v454, %v454
      %v501 = vpack.c.bf16 %v456, %v456
      %v502 = vpack.c.bf16 %v495, %v495
      %v506 = vunpack.c.l.b16 %v500
      %v507 = vunpack.c.l.b16 %v501
      %v508 = vunpack.c.l.b16 %v502
      %v509 = vpack.c.b16 %v507, %v506
      %v510 = vpack.c.b16 %v508, %v508
      %513 = vst [vmem:[%s227] sm:$0xff] %v509
      %514 = vst [vmem:[%s227 + $0x8] sm:$0xf] %v510
      %p515 = scmp.lt.s32.totalorder %s19, 1
      %s516 = scalar_select %p515, %s19, 1
      %p517 = scmp.lt.s32.totalorder %s20, 0
      %s518 = scalar_select %p517, %s20, 0
      %s519 = smul.addr %s518, 3
      %s520 = smul.addr %s516, 3
      %s521 = sadd.s32 %s519, %s520
      %s522 = smul.addr %s521, 4
      %s523 = scalar_lea.vmem %s4, %s522
      // Predicated region
      $region37: #{decoder_forward.5} parent=35 // pred_check
        %p524 = pneg %p138
      $region38: #{decoder_forward.5} parent=35 // pred_check_branch
        %526 = sbr.rel (%p524) target = $region40
      $region39: #{decoder_forward.5} parent=35 // pred_region
        _
      $region40: #{decoder_forward.5} parent=35 // pred_fallthru
        _
    $region36: #{decoder_forward.5} parent=5 // pred_fallthru
      _
    %p527 = scmp.le.s32.totalorder 2, %s10
    // Predicated region
    $region41: #{decoder_forward.5} parent=5 // pred_check
      %p528 = pneg %p527
    $region42: #{decoder_forward.5} parent=5 // pred_check_branch
      %530 = sbr.rel (%p528) target = $region44
    $region43: #{decoder_forward.5} parent=5 // pred_region
      %s531 = ssub.s32 %s10, 2
      // Predicated region
      $region45: #{decoder_forward.5} parent=43 // pred_check
        %p532 = pneg %p144
      $region46: #{decoder_forward.5} parent=43 // pred_check_branch
        %534 = sbr.rel (%p532) target = $region48
      $region47: #{decoder_forward.5} parent=43 // pred_region
        %p535 = scmp.lt.s32.totalorder %s21, 1
        %s536 = scalar_select %p535, %s21, 1
        %p537 = scmp.lt.s32.totalorder %s22, 0
        %s538 = scalar_select %p537, %s22, 0
        %s539 = smul.addr %s538, 3
        %s540 = smul.addr %s536, 3
        %s541 = sadd.s32 %s539, %s540
        %s542 = smul.addr %s541, 4
        %s543 = scalar_lea.vmem %s4, %s542
      $region48: #{decoder_forward.5} parent=43 // pred_fallthru
        _
    $region44: #{decoder_forward.5} parent=5 // pred_fallthru
      _
  $region6: #{decoder_forward.5} parent=0 // loop_footer
    %s14 = sadd.s32 1, %s10
  $region7: #{decoder_forward.5} parent=0 // loop_footer_branch
    %9 = sbr.rel target = $region3
  $region8: #{decoder_forward.5} parent=0 // loop_exit
    _

// kernel: decoder_forward.9
$region0: #{decoder_forward.9}
  #allocation0 [shape = 'u32[]', space=smem, size = 0x4, offset = 0x4, fixed_abs, tag = 'smem constant byte address 0x4 - core index']
  #allocation1 [shape = 'u32[144,128]{1,0:T(1,128)}', space=vmem, size = 0x12000, scoped, tag = 'internal scratch']
  %s0 = inlined_call_operand.vmem [shape: f32[2,4,128], index: 0, kind: input, shape index: {}]
  %s1 = inlined_call_operand.vmem [shape: f32[1,128], index: 1, kind: input, shape index: {}]
  %s2 = inlined_call_operand.vmem [shape: f32[1,128], index: 2, kind: input, shape index: {}]
  %s3 = inlined_call_operand.vmem [shape: bf16[128,128], index: 3, kind: input, shape index: {}]
  %s4 = inlined_call_operand.vmem [shape: f32[1,128], index: 4, kind: input, shape index: {}]
  %s5 = inlined_call_operand.hbm [shape: f32[2,4,128], index: 5, kind: output, shape index: {}]
  %s6 = sld [smem:[#allocation0]]
  $region53: #{decoder_forward.9} parent=0
    _
  %s8 = ssub.s32 1, %s6
  %s9 = scalar_select 0, %s8, %s6
  $region1: #{decoder_forward.9} parent=0
    #allocation2 [shape = 'u8[4096]{0}', space=vmem, size = 0x1000, scoped, tag = 'output window, operand 0']
    #allocation3 [shape = 's32[2]{0}', space=sflag, size = 0x8, scoped, tag = 'scoped memory for decoder_forward.9']
    %10 = vsyncpa [#allocation3], 0
    %s11 = scalar_lea.sflag [#allocation3], 1
    %12 = vsyncpa %s11, 0
    loop: start=0, step=1, limit=4
    $region2: #{decoder_forward.9} parent=1 // loop_pre_header
      _
    $region3: #{decoder_forward.9} parent=1 // loop_header
      %s14 = sphi 0, %s18
      %p15 = scmp.ge.s32.totalorder %s14, 4
      %s24 = sphi 0, %s26
      %s27 = sphi 0, %s24
      %s28 = sphi 0, %s27
      %s44 = sphi 0, %s28
      %s48 = sphi 0, %s48
      %s50 = sphi 0, %s48
      %s51 = sphi 0, %s50
      %s65 = sphi 0, %s51
      %s69 = sphi 0, %s69
      %s71 = sphi 0, %s69
      %s72 = sphi 0, %s71
      %s86 = sphi 0, %s72
      %s90 = sphi 0, %s90
      %s92 = sphi 0, %s90
      %s93 = sphi 0, %s92
      %s107 = sphi 0, %s93
      %s111 = sphi 0, %s111
      %s113 = sphi 0, %s111
      %s114 = sphi 0, %s113
      %s128 = sphi 0, %s114
      %s134 = sphi 0, %s136
      %s137 = sphi 0, %s134
      %s138 = sphi 0, %s137
      %s154 = sphi 0, %s138
    $region4: #{decoder_forward.9} parent=1 // loop_header_branch
      %17 = sbr.rel (%p15) target = $region8
    $region5: #{decoder_forward.9} parent=1 // loop_body
      %s19 = ssub.s32 %s14, 1
      %s20 = ssub.s32 %s14, 2
      %s21 = sadd.s32 %s14, 1
      %s22 = ssub.s32 %s14, %s21
      %p23 = scmp.eq.s32.totalorder %s22, 0
      %s25 = sadd.s32 %s24, 1
      %s26 = scalar_select %p23, %s24, %s25
      %p29 = pneg %p23
      %p30 = scmp.eq.s32.totalorder %s14, 1
      %p31 = por %p29, %p30
      %p32 = scmp.ne.s32.totalorder %s24, %s27
      %p33 = scmp.eq.s32.totalorder %s14, 0
      %p34 = por %p32, %p33
      %p35 = scmp.ne.s32.totalorder %s24, %s27
      %p36 = scmp.eq.s32.totalorder %s19, 1
      %p37 = por %p35, %p36
      %p38 = scmp.ne.s32.totalorder %s27, %s28
      %p39 = scmp.eq.s32.totalorder %s19, 0
      %p40 = por %p38, %p39
      %p41 = scmp.ne.s32.totalorder %s27, %s28
      %p42 = scmp.eq.s32.totalorder %s20, 1
      %p43 = por %p41, %p42
      %p45 = scmp.ne.s32.totalorder %s28, %s44
      %p46 = scmp.eq.s32.totalorder %s20, 0
      %p47 = por %p45, %p46
      %s49 = sadd.s32 %s48, 1
      %p52 = scmp.eq.s32.totalorder %s14, 1
      %p53 = scmp.ne.s32.totalorder %s48, %s50
      %p54 = scmp.eq.s32.totalorder %s14, 0
      %p55 = por %p53, %p54
      %p56 = scmp.ne.s32.totalorder %s48, %s50
      %p57 = scmp.eq.s32.totalorder %s19, 1
      %p58 = por %p56, %p57
      %p59 = scmp.ne.s32.totalorder %s50, %s51
      %p60 = scmp.eq.s32.totalorder %s19, 0
      %p61 = por %p59, %p60
      %p62 = scmp.ne.s32.totalorder %s50, %s51
      %p63 = scmp.eq.s32.totalorder %s20, 1
      %p64 = por %p62, %p63
      %p66 = scmp.ne.s32.totalorder %s51, %s65
      %p67 = scmp.eq.s32.totalorder %s20, 0
      %p68 = por %p66, %p67
      %s70 = sadd.s32 %s69, 1
      %p73 = scmp.eq.s32.totalorder %s14, 1
      %p74 = scmp.ne.s32.totalorder %s69, %s71
      %p75 = scmp.eq.s32.totalorder %s14, 0
      %p76 = por %p74, %p75
      %p77 = scmp.ne.s32.totalorder %s69, %s71
      %p78 = scmp.eq.s32.totalorder %s19, 1
      %p79 = por %p77, %p78
      %p80 = scmp.ne.s32.totalorder %s71, %s72
      %p81 = scmp.eq.s32.totalorder %s19, 0
      %p82 = por %p80, %p81
      %p83 = scmp.ne.s32.totalorder %s71, %s72
      %p84 = scmp.eq.s32.totalorder %s20, 1
      %p85 = por %p83, %p84
      %p87 = scmp.ne.s32.totalorder %s72, %s86
      %p88 = scmp.eq.s32.totalorder %s20, 0
      %p89 = por %p87, %p88
      %s91 = sadd.s32 %s90, 1
      %p94 = scmp.eq.s32.totalorder %s14, 1
      %p95 = scmp.ne.s32.totalorder %s90, %s92
      %p96 = scmp.eq.s32.totalorder %s14, 0
      %p97 = por %p95, %p96
      %p98 = scmp.ne.s32.totalorder %s90, %s92
      %p99 = scmp.eq.s32.totalorder %s19, 1
      %p100 = por %p98, %p99
      %p101 = scmp.ne.s32.totalorder %s92, %s93
      %p102 = scmp.eq.s32.totalorder %s19, 0
      %p103 = por %p101, %p102
      %p104 = scmp.ne.s32.totalorder %s92, %s93
      %p105 = scmp.eq.s32.totalorder %s20, 1
      %p106 = por %p104, %p105
      %p108 = scmp.ne.s32.totalorder %s93, %s107
      %p109 = scmp.eq.s32.totalorder %s20, 0
      %p110 = por %p108, %p109
      %s112 = sadd.s32 %s111, 1
      %p115 = scmp.eq.s32.totalorder %s14, 1
      %p116 = scmp.ne.s32.totalorder %s111, %s113
      %p117 = scmp.eq.s32.totalorder %s14, 0
      %p118 = por %p116, %p117
      %p119 = scmp.ne.s32.totalorder %s111, %s113
      %p120 = scmp.eq.s32.totalorder %s19, 1
      %p121 = por %p119, %p120
      %p122 = scmp.ne.s32.totalorder %s113, %s114
      %p123 = scmp.eq.s32.totalorder %s19, 0
      %p124 = por %p122, %p123
      %p125 = scmp.ne.s32.totalorder %s113, %s114
      %p126 = scmp.eq.s32.totalorder %s20, 1
      %p127 = por %p125, %p126
      %p129 = scmp.ne.s32.totalorder %s114, %s128
      %p130 = scmp.eq.s32.totalorder %s20, 0
      %p131 = por %p129, %p130
      %s132 = ssub.s32 %s14, %s21
      %p133 = scmp.eq.s32.totalorder %s132, 0
      %s135 = sadd.s32 %s134, 1
      %s136 = scalar_select %p133, %s134, %s135
      %p139 = pneg %p133
      %p140 = scmp.eq.s32.totalorder %s14, 1
      %p141 = por %p139, %p140
      %p142 = scmp.ne.s32.totalorder %s134, %s137
      %p143 = scmp.eq.s32.totalorder %s14, 0
      %p144 = por %p142, %p143
      %p145 = scmp.ne.s32.totalorder %s134, %s137
      %p146 = scmp.eq.s32.totalorder %s19, 1
      %p147 = por %p145, %p146
      %p148 = scmp.ne.s32.totalorder %s137, %s138
      %p149 = scmp.eq.s32.totalorder %s19, 0
      %p150 = por %p148, %p149
      %p151 = scmp.ne.s32.totalorder %s137, %s138
      %p152 = scmp.eq.s32.totalorder %s20, 1
      %p153 = por %p151, %p152
      %p155 = scmp.ne.s32.totalorder %s138, %s154
      %p156 = scmp.eq.s32.totalorder %s20, 0
      %p157 = por %p155, %p156
      %p158 = scmp.le.s32.totalorder 1, %s14
      %p159 = scmp.lt.s32.totalorder %s14, 3
      %p160 = pnand %p158, %p159
      %p161 = pneg %p160
      // Predicated region
      $region9: #{decoder_forward.9} parent=5 // pred_check
        _
      $region10: #{decoder_forward.9} parent=5 // pred_check_branch
        %163 = sbr.rel (%p160) target = $region12
      $region11: #{decoder_forward.9} parent=5 // pred_region
        %s164 = ssub.s32 %s14, 1
        // Predicated region
        $region13: #{decoder_forward.9} parent=11 // pred_check
          %p165 = pneg %p61
        $region14: #{decoder_forward.9} parent=11 // pred_check_branch
          %167 = sbr.rel (%p165) target = $region16
        $region15: #{decoder_forward.9} parent=11 // pred_region
          _
        $region16: #{decoder_forward.9} parent=11 // pred_fallthru
          _
        // Predicated region
        $region17: #{decoder_forward.9} parent=11 // pred_check
          %p168 = pneg %p82
        $region18: #{decoder_forward.9} parent=11 // pred_check_branch
          %170 = sbr.rel (%p168) target = $region20
        $region19: #{decoder_forward.9} parent=11 // pred_region
          _
        $region20: #{decoder_forward.9} parent=11 // pred_fallthru
          _
        // Predicated region
        $region21: #{decoder_forward.9} parent=11 // pred_check
          %p171 = pneg %p103
        $region22: #{decoder_forward.9} parent=11 // pred_check_branch
          %173 = sbr.rel (%p171) target = $region24
        $region23: #{decoder_forward.9} parent=11 // pred_region
          _
        $region24: #{decoder_forward.9} parent=11 // pred_fallthru
          _
        // Predicated region
        $region25: #{decoder_forward.9} parent=11 // pred_check
          %p174 = pneg %p124
        $region26: #{decoder_forward.9} parent=11 // pred_check_branch
          %176 = sbr.rel (%p174) target = $region28
        $region27: #{decoder_forward.9} parent=11 // pred_region
          _
        $region28: #{decoder_forward.9} parent=11 // pred_fallthru
          _
      $region12: #{decoder_forward.9} parent=5 // pred_fallthru
        _
      %p177 = scmp.lt.s32.totalorder %s14, 2
      // Predicated region
      $region29: #{decoder_forward.9} parent=5 // pred_check
        %p178 = pneg %p177
      $region30: #{decoder_forward.9} parent=5 // pred_check_branch
        %180 = sbr.rel (%p178) target = $region32
      $region31: #{decoder_forward.9} parent=5 // pred_region
        // Predicated region
        $region33: #{decoder_forward.9} parent=31 // pred_check
          %p181 = pneg %p34
        $region34: #{decoder_forward.9} parent=31 // pred_check_branch
          %183 = sbr.rel (%p181) target = $region36
        $region35: #{decoder_forward.9} parent=31 // pred_region
          %p184 = scmp.lt.s32.totalorder %s14, 1
          %s185 = scalar_select %p184, %s14, 1
          %s186 = smul.addr %s185, 4
          %s187 = scalar_lea.vmem %s0, %s186
        $region36: #{decoder_forward.9} parent=31 // pred_fallthru
          _
      $region32: #{decoder_forward.9} parent=5 // pred_fallthru
        _
      %p188 = scmp.le.s32.totalorder 1, %s14
      %p189 = scmp.lt.s32.totalorder %s14, 3
      %p190 = pnand %p188, %p189
      %p191 = pneg %p190
      // Predicated region
      $region37: #{decoder_forward.9} parent=5 // pred_check
        _
      $region38: #{decoder_forward.9} parent=5 // pred_check_branch
        %193 = sbr.rel (%p190) target = $region40
      $region39: #{decoder_forward.9} parent=5 // pred_region
        %s194 = ssub.s32 %s14, 1
        %p195 = scmp.lt.s32.totalorder %s19, 1
        %s196 = scalar_select %p195, %s19, 1
        %s197 = smul.addr %s196, 4
        %s198 = scalar_lea.vmem %s0, %s197
        %p199 = pneg %p40
        %p200 = pneg %p37
        %p201 = pneg %p61
        %p202 = pneg %p58
        %p203 = pneg %p82
        %p204 = pneg %p79
        %p205 = pneg %p103
        %p206 = pneg %p100
        %p207 = pneg %p124
        %p208 = pneg %p121
        %p209 = pneg %p150
        %p210 = pneg %p147
        %s211 = sand.u32 %s137, 1
        %s212 = scalar_lea.sflag [#allocation3], %s211
        %s213 = sand.u32 %s137, 1
        %s214 = smul.addr %s213, 4
        %s215 = scalar_lea.vmem [#allocation2], %s214
        %p216 = scmp.lt.s32.totalorder %s19, 1
        %s217 = scalar_select %p216, %s19, 1
        %s218 = smul.addr %s217, 4
        %s219 = scalar_lea.vmem %s0, %s218
        %v221 = vld [vmem:[%s219] sm:$0xf]
        %v222 = vld [vmem:[%s1] sm:$0x1]
        %v223 = vld [vmem:[%s2] sm:$0x1]
        %vm224 = vcmask 1043456
        %v225 = vsel %vm224, %v221, 0.0
        %226 = vadd.xlane.f32.xlu0 %v225
        %v227 = vpop.xlane.xlu0 %226
        %v228 = vrcp.pop 128.0
        %v229 = vmul.f32 %v227, %v228
        %v230 = vsub.f32 %v221, %v229
        %v231 = vmul.f32 %v230, %v230
        %v232 = vsel %vm224, %v231, 0.0
        %233 = vadd.xlane.f32.xlu0 %v232
        %v234 = vpop.xlane.xlu0 %233
        %v235 = vmul.f32 %v234, %v228
        %v236 = vadd.f32 %v235, 1e-05
        %v237 = vrsqrt.pop %v236
        %v238 = vmul.f32 %v230, %v237
        %v240 = vlaneseq
        %v241 = vshrl.u32 %v240, 7
        %v242 = vsub.s32 0, %v241
        %v243 = vrot.slane %v222, %v242
        %v245 = vmul.f32 %v238, %v243
        %v247 = vlaneseq
        %v248 = vshrl.u32 %v247, 7
        %v249 = vsub.s32 0, %v248
        %v250 = vrot.slane %v223, %v249
        %v252 = vadd.f32 %v245, %v250
        %v253 = vpack.c.bf16 %v252, %v252
        %v254 = vld [vmem:[%s3] sm:$0xf]
        %v255 = vld [vmem:[%s3 + $0x4] sm:$0xf]
        %v256 = vld [vmem:[%s3 + $0x8] sm:$0xf]
        %v257 = vld [vmem:[%s3 + $0xc] sm:$0xf]
        %v258 = vld [vmem:[%s3 + $0x10] sm:$0xf]
        %v259 = vld [vmem:[%s3 + $0x14] sm:$0xf]
        %v260 = vld [vmem:[%s3 + $0x18] sm:$0xf]
        %v261 = vld [vmem:[%s3 + $0x1c] sm:$0xf]
        %v262 = vld [vmem:[%s3 + $0x20] sm:$0xf]
        %v263 = vld [vmem:[%s3 + $0x24] sm:$0xf]
        %v264 = vld [vmem:[%s3 + $0x28] sm:$0xf]
        %v265 = vld [vmem:[%s3 + $0x2c] sm:$0xf]
        %v266 = vld [vmem:[%s3 + $0x30] sm:$0xf]
        %v267 = vld [vmem:[%s3 + $0x34] sm:$0xf]
        %v268 = vld [vmem:[%s3 + $0x38] sm:$0xf]
        %v269 = vld [vmem:[%s3 + $0x3c] sm:$0xf]
        %v270 = vld [vmem:[%s4] sm:$0x1]
        %v272 = vlaneseq
        %v273 = vshrl.u32 %v272, 7
        %v274 = vsub.s32 0, %v273
        %v275 = vrot.slane %v270, %v274
        %v293 = vunpack.c.l.b16 %v254
        %v294 = vunpack.c.l.b16 %v255
        %v295 = vunpack.c.l.b16 %v256
        %v296 = vunpack.c.l.b16 %v257
        %v297 = vunpack.c.l.b16 %v258
        %v298 = vunpack.c.l.b16 %v259
        %v299 = vunpack.c.l.b16 %v260
        %v300 = vunpack.c.l.b16 %v261
        %v301 = vunpack.c.l.b16 %v262
        %v302 = vunpack.c.l.b16 %v263
        %v303 = vunpack.c.l.b16 %v264
        %v304 = vunpack.c.l.b16 %v265
        %v305 = vunpack.c.l.b16 %v266
        %v306 = vunpack.c.l.b16 %v267
        %v307 = vunpack.c.l.b16 %v268
        %v308 = vunpack.c.l.b16 %v269
        %v309 = vpack.c.b16 %v294, %v293
        %v310 = vpack.c.b16 %v296, %v295
        %v311 = vpack.c.b16 %v298, %v297
        %v312 = vpack.c.b16 %v300, %v299
        %v313 = vpack.c.b16 %v302, %v301
        %v314 = vpack.c.b16 %v304, %v303
        %v315 = vpack.c.b16 %v306, %v305
        %v316 = vpack.c.b16 %v308, %v307
        %325 = vmatprep.subr.bf16.mxu0 0
        %326 = vmatpush1.bf16.msra.mxu0 %v309
        %327 = vmatprep.subr.bf16.mxu0 0
        %328 = vmatpush1.bf16.msra.mxu0 %v310
        %329 = vmatprep.subr.bf16.mxu0 0
        %330 = vmatpush1.bf16.msra.mxu0 %v311
        %331 = vmatprep.subr.bf16.mxu0 0
        %332 = vmatpush1.bf16.msra.mxu0 %v312
        %333 = vmatprep.subr.bf16.mxu0 0
        %334 = vmatpush1.bf16.msra.mxu0 %v313
        %335 = vmatprep.subr.bf16.mxu0 0
        %336 = vmatpush1.bf16.msra.mxu0 %v314
        %337 = vmatprep.subr.bf16.mxu0 0
        %338 = vmatpush1.bf16.msra.mxu0 %v315
        %339 = vmatprep.subr.bf16.mxu0 0
        %340 = vmatpush1.bf16.msra.mxu0 %v316
        %341 = vmatprep.subr.bf16.mxu0 0
        %342 = vmatpush1.bf16.msra.mxu0 0
        %343 = vmatprep.subr.bf16.mxu0 0
        %344 = vmatpush1.bf16.msra.mxu0 0
        %345 = vmatprep.subr.bf16.mxu0 0
        %346 = vmatpush1.bf16.msra.mxu0 0
        %347 = vmatprep.subr.bf16.mxu0 0
        %348 = vmatpush1.bf16.msra.mxu0 0
        %349 = vmatprep.subr.bf16.mxu0 0
        %350 = vmatpush1.bf16.msra.mxu0 0
        %351 = vmatprep.subr.bf16.mxu0 0
        %352 = vmatpush1.bf16.msra.mxu0 0
        %353 = vmatprep.subr.bf16.mxu0 0
        %354 = vmatpush1.bf16.msra.mxu0 0
        %355 = vmatprep.subr.bf16.mxu0 0
        %356 = vmatpush1.bf16.msra.mxu0 0
        %357 = vmatprep.mubr.bf16.mxu0 0
        %358 = vmatmul.mubr.bf16.gmra.mrb[0].mxu0 %v253
        %v359 = vpop.f32.mrb[0].mxu0
        %v360 = vadd.f32 %v275, %v359
        %v361 = vpop.f32.mrb[0].mxu0
        %v362 = vpop.f32.mrb[0].mxu0
        %v363 = vpop.f32.mrb[0].mxu0
        %364 = vdwg.mxu0
        %365 = vst [vmem:[%s215] sm:$0xf] %v360
        %s366 = sand.u32 %s137, 1
        %s367 = scalar_lea.sflag [#allocation3], %s366
        %s368 = sand.u32 %s137, 1
        %s369 = smul.addr %s368, 4
        %s370 = scalar_lea.vmem [#allocation2], %s369
        // Predicated region
        $region41: #{decoder_forward.9} parent=39 // pred_check
          %p371 = pneg %p147
        $region42: #{decoder_forward.9} parent=39 // pred_check_branch
          %373 = sbr.rel (%p371) target = $region44
        $region43: #{decoder_forward.9} parent=39 // pred_region
          %s375 = ssub.s32 64, 64
          %376 = vsyncadd %s367, %s375
          %s377 = smul.addr %s19, 64
          %s378 = scalar_lea.hbm %s5, %s377
          %s380 = sshll.u32 %s370, 4
          %s381 = int_to_ptr.vmem [resolvable:$true] %s380
          %383 = dma.vmem_to_hbm [thread:$0]  %s381, 64, %s378, %s367
        $region44: #{decoder_forward.9} parent=39 // pred_fallthru
          _
      $region40: #{decoder_forward.9} parent=5 // pred_fallthru
        _
      %p384 = scmp.le.s32.totalorder 2, %s14
      // Predicated region
      $region45: #{decoder_forward.9} parent=5 // pred_check
        %p385 = pneg %p384
      $region46: #{decoder_forward.9} parent=5 // pred_check_branch
        %387 = sbr.rel (%p385) target = $region48
      $region47: #{decoder_forward.9} parent=5 // pred_region
        %s388 = ssub.s32 %s14, 2
        // Predicated region
        $region49: #{decoder_forward.9} parent=47 // pred_check
          %p389 = pneg %p153
        $region50: #{decoder_forward.9} parent=47 // pred_check_branch
          %391 = sbr.rel (%p389) target = $region52
        $region51: #{decoder_forward.9} parent=47 // pred_region
          %s392 = sand.u32 %s138, 1
          %s393 = scalar_lea.sflag [#allocation3], %s392
          %s394 = sand.u32 %s138, 1
          %s395 = smul.addr %s394, 4
          %s396 = scalar_lea.vmem [#allocation2], %s395
          %397 = dma.done %s393, 64
        $region52: #{decoder_forward.9} parent=47 // pred_fallthru
          _
      $region48: #{decoder_forward.9} parent=5 // pred_fallthru
        _
    $region6: #{decoder_forward.9} parent=1 // loop_footer
      %s18 = sadd.s32 1, %s14
    $region7: #{decoder_forward.9} parent=1 // loop_footer_branch
      %13 = sbr.rel target = $region3
    $region8: #{decoder_forward.9} parent=1 // loop_exit
      _
    %398 = vsyncpa [#allocation3], 1
    %s399 = scalar_lea.sflag [#allocation3], 1
    %400 = vsyncpa %s399, 1

// kernel: decoder_forward.6
$region0: #{decoder_forward.6}
  #allocation0 [shape = 'u32[]', space=smem, size = 0x4, offset = 0x4, fixed_abs, tag = 'smem constant byte address 0x4 - core index']
  #allocation1 [shape = 'u32[144,128]{1,0:T(1,128)}', space=vmem, size = 0x12000, scoped, tag = 'internal scratch']
  %s0 = inlined_call_operand.vmem [shape: f32[2,8,128], index: 0, kind: input, shape index: {}]
  %s1 = inlined_call_operand.vmem [shape: bf16[2,8,384], index: 1, kind: input, shape index: {}, may-alias: {1,2,3}]
  %s2 = inlined_call_operand.vmem [shape: bf16[2,8,384], index: 2, kind: input, shape index: {}, may-alias: {1,2,3}]
  %s3 = inlined_call_operand.vmem [shape: bf16[2,8,384], index: 3, kind: input, shape index: {}, may-alias: {1,2,3}]
  %s4 = inlined_call_operand.vmem [shape: bf16[128,128], index: 4, kind: input, shape index: {}]
  %s5 = inlined_call_operand.vmem [shape: f32[1,128], index: 5, kind: input, shape index: {}]
  %s6 = inlined_call_operand.vmem [shape: f32[1,128], index: 6, kind: input, shape index: {}]
  %s7 = inlined_call_operand.vmem [shape: f32[1,128], index: 7, kind: input, shape index: {}]
  %s8 = inlined_call_operand.vmem [shape: bf16[128,512], index: 8, kind: input, shape index: {}]
  %s9 = inlined_call_operand.vmem [shape: f32[1,512], index: 9, kind: input, shape index: {}]
  %s10 = inlined_call_operand.vmem [shape: bf16[512,128], index: 10, kind: input, shape index: {}]
  %s11 = inlined_call_operand.vmem [shape: f32[1,128], index: 11, kind: input, shape index: {}]
  %s12 = inlined_call_operand.vmem [shape: f32[2,8,128], index: 12, kind: output, shape index: {}]
  %s13 = sld [smem:[#allocation0]]
  $region81: #{decoder_forward.6} parent=0
    _
  %s15 = ssub.s32 1, %s13
  %s16 = scalar_select 0, %s15, %s13
  loop: start=0, step=1, limit=4
  $region2: #{decoder_forward.6} parent=0 // loop_pre_header
    _
  $region3: #{decoder_forward.6} parent=0 // loop_header
    %s18 = sphi 0, %s22
    %p19 = scmp.ge.s32.totalorder %s18, 4
    %s25 = sphi 0, %s37
    %s26 = sphi 0, %s33
    %s27 = sphi 0, %s25
    %s28 = sphi 0, %s26
    %s29 = sphi 0, %s27
    %s30 = sphi 0, %s28
    %s42 = sphi 0, %s44
    %s45 = sphi 0, %s42
    %s46 = sphi 0, %s45
    %s62 = sphi 0, %s46
    %s70 = sphi 0, %s72
    %s73 = sphi 0, %s70
    %s74 = sphi 0, %s73
    %s90 = sphi 0, %s74
    %s96 = sphi 0, %s98
    %s99 = sphi 0, %s96
    %s100 = sphi 0, %s99
    %s116 = sphi 0, %s100
    %s122 = sphi 0, %s124
    %s125 = sphi 0, %s122
    %s126 = sphi 0, %s125
    %s142 = sphi 0, %s126
    %s146 = sphi 0, %s146
    %s148 = sphi 0, %s146
    %s149 = sphi 0, %s148
    %s163 = sphi 0, %s149
    %s167 = sphi 0, %s167
    %s169 = sphi 0, %s167
    %s170 = sphi 0, %s169
    %s184 = sphi 0, %s170
    %s188 = sphi 0, %s188
    %s190 = sphi 0, %s188
    %s191 = sphi 0, %s190
    %s205 = sphi 0, %s191
    %s209 = sphi 0, %s209
    %s211 = sphi 0, %s209
    %s212 = sphi 0, %s211
    %s226 = sphi 0, %s212
    %s230 = sphi 0, %s230
    %s232 = sphi 0, %s230
    %s233 = sphi 0, %s232
    %s247 = sphi 0, %s233
    %s251 = sphi 0, %s251
    %s253 = sphi 0, %s251
    %s254 = sphi 0, %s253
    %s268 = sphi 0, %s254
    %s272 = sphi 0, %s272
    %s274 = sphi 0, %s272
    %s275 = sphi 0, %s274
    %s289 = sphi 0, %s275
    %s293 = sphi 0, %s293
    %s295 = sphi 0, %s293
    %s296 = sphi 0, %s295
    %s310 = sphi 0, %s296
    %s318 = sphi 0, %s320
    %s321 = sphi 0, %s318
    %s322 = sphi 0, %s321
    %s338 = sphi 0, %s322
  $region4: #{decoder_forward.6} parent=0 // loop_header_branch
    %21 = sbr.rel (%p19) target = $region8
  $region5: #{decoder_forward.6} parent=0 // loop_body
    %s23 = ssub.s32 %s18, 1
    %s24 = ssub.s32 %s18, 2
    %s31 = sadd.s32 1, %s26
    %p32 = scmp.ge.s32.totalorder %s31, 1
    %s33 = scalar_select %p32, 0, %s31
    %s34 = sadd.s32 1, %s25
    %s35 = scalar_select %p32, %s34, %s25
    %p36 = scmp.ge.s32.totalorder %s35, 2
    %s37 = scalar_select %p36, 0, %s35
    %s38 = ssub.s32 %s25, %s37
    %s39 = ssub.s32 %s26, %s33
    %s40 = sor.u32 %s38, %s39
    %p41 = scmp.eq.s32.totalorder %s40, 0
    %s43 = sadd.s32 %s42, 1
    %s44 = scalar_select %p41, %s42, %s43
    %p47 = pneg %p41
    %p48 = scmp.eq.s32.totalorder %s18, 1
    %p49 = por %p47, %p48
    %p50 = scmp.ne.s32.totalorder %s42, %s45
    %p51 = scmp.eq.s32.totalorder %s18, 0
    %p52 = por %p50, %p51
    %p53 = scmp.ne.s32.totalorder %s42, %s45
    %p54 = scmp.eq.s32.totalorder %s23, 1
    %p55 = por %p53, %p54
    %p56 = scmp.ne.s32.totalorder %s45, %s46
    %p57 = scmp.eq.s32.totalorder %s23, 0
    %p58 = por %p56, %p57
    %p59 = scmp.ne.s32.totalorder %s45, %s46
    %p60 = scmp.eq.s32.totalorder %s24, 1
    %p61 = por %p59, %p60
    %p63 = scmp.ne.s32.totalorder %s46, %s62
    %p64 = scmp.eq.s32.totalorder %s24, 0
    %p65 = por %p63, %p64
    %s66 = ssub.s32 %s25, %s37
    %s67 = ssub.s32 %s26, %s33
    %s68 = sor.u32 %s66, %s67
    %p69 = scmp.eq.s32.totalorder %s68, 0
    %s71 = sadd.s32 %s70, 1
    %s72 = scalar_select %p69, %s70, %s71
    %p75 = pneg %p69
    %p76 = scmp.eq.s32.totalorder %s18, 1
    %p77 = por %p75, %p76
    %p78 = scmp.ne.s32.totalorder %s70, %s73
    %p79 = scmp.eq.s32.totalorder %s18, 0
    %p80 = por %p78, %p79
    %p81 = scmp.ne.s32.totalorder %s70, %s73
    %p82 = scmp.eq.s32.totalorder %s23, 1
    %p83 = por %p81, %p82
    %p84 = scmp.ne.s32.totalorder %s73, %s74
    %p85 = scmp.eq.s32.totalorder %s23, 0
    %p86 = por %p84, %p85
    %p87 = scmp.ne.s32.totalorder %s73, %s74
    %p88 = scmp.eq.s32.totalorder %s24, 1
    %p89 = por %p87, %p88
    %p91 = scmp.ne.s32.totalorder %s74, %s90
    %p92 = scmp.eq.s32.totalorder %s24, 0
    %p93 = por %p91, %p92
    %s94 = ssub.s32 %s25, %s37
    %p95 = scmp.eq.s32.totalorder %s94, 0
    %s97 = sadd.s32 %s96, 1
    %s98 = scalar_select %p95, %s96, %s97
    %p101 = pneg %p95
    %p102 = scmp.eq.s32.totalorder %s18, 1
    %p103 = por %p101, %p102
    %p104 = scmp.ne.s32.totalorder %s96, %s99
    %p105 = scmp.eq.s32.totalorder %s18, 0
    %p106 = por %p104, %p105
    %p107 = scmp.ne.s32.totalorder %s96, %s99
    %p108 = scmp.eq.s32.totalorder %s23, 1
    %p109 = por %p107, %p108
    %p110 = scmp.ne.s32.totalorder %s99, %s100
    %p111 = scmp.eq.s32.totalorder %s23, 0
    %p112 = por %p110, %p111
    %p113 = scmp.ne.s32.totalorder %s99, %s100
    %p114 = scmp.eq.s32.totalorder %s24, 1
    %p115 = por %p113, %p114
    %p117 = scmp.ne.s32.totalorder %s100, %s116
    %p118 = scmp.eq.s32.totalorder %s24, 0
    %p119 = por %p117, %p118
    %s120 = ssub.s32 %s25, %s37
    %p121 = scmp.eq.s32.totalorder %s120, 0
    %s123 = sadd.s32 %s122, 1
    %s124 = scalar_select %p121, %s122, %s123
    %p127 = pneg %p121
    %p128 = scmp.eq.s32.totalorder %s18, 1
    %p129 = por %p127, %p128
    %p130 = scmp.ne.s32.totalorder %s122, %s125
    %p131 = scmp.eq.s32.totalorder %s18, 0
    %p132 = por %p130, %p131
    %p133 = scmp.ne.s32.totalorder %s122, %s125
    %p134 = scmp.eq.s32.totalorder %s23, 1
    %p135 = por %p133, %p134
    %p136 = scmp.ne.s32.totalorder %s125, %s126
    %p137 = scmp.eq.s32.totalorder %s23, 0
    %p138 = por %p136, %p137
    %p139 = scmp.ne.s32.totalorder %s125, %s126
    %p140 = scmp.eq.s32.totalorder %s24, 1
    %p141 = por %p139, %p140
    %p143 = scmp.ne.s32.totalorder %s126, %s142
    %p144 = scmp.eq.s32.totalorder %s24, 0
    %p145 = por %p143, %p144
    %s147 = sadd.s32 %s146, 1
    %p150 = scmp.eq.s32.totalorder %s18, 1
    %p151 = scmp.ne.s32.totalorder %s146, %s148
    %p152 = scmp.eq.s32.totalorder %s18, 0
    %p153 = por %p151, %p152
    %p154 = scmp.ne.s32.totalorder %s146, %s148
    %p155 = scmp.eq.s32.totalorder %s23, 1
    %p156 = por %p154, %p155
    %p157 = scmp.ne.s32.totalorder %s148, %s149
    %p158 = scmp.eq.s32.totalorder %s23, 0
    %p159 = por %p157, %p158
    %p160 = scmp.ne.s32.totalorder %s148, %s149
    %p161 = scmp.eq.s32.totalorder %s24, 1
    %p162 = por %p160, %p161
    %p164 = scmp.ne.s32.totalorder %s149, %s163
    %p165 = scmp.eq.s32.totalorder %s24, 0
    %p166 = por %p164, %p165
    %s168 = sadd.s32 %s167, 1
    %p171 = scmp.eq.s32.totalorder %s18, 1
    %p172 = scmp.ne.s32.totalorder %s167, %s169
    %p173 = scmp.eq.s32.totalorder %s18, 0
    %p174 = por %p172, %p173
    %p175 = scmp.ne.s32.totalorder %s167, %s169
    %p176 = scmp.eq.s32.totalorder %s23, 1
    %p177 = por %p175, %p176
    %p178 = scmp.ne.s32.totalorder %s169, %s170
    %p179 = scmp.eq.s32.totalorder %s23, 0
    %p180 = por %p178, %p179
    %p181 = scmp.ne.s32.totalorder %s169, %s170
    %p182 = scmp.eq.s32.totalorder %s24, 1
    %p183 = por %p181, %p182
    %p185 = scmp.ne.s32.totalorder %s170, %s184
    %p186 = scmp.eq.s32.totalorder %s24, 0
    %p187 = por %p185, %p186
    %s189 = sadd.s32 %s188, 1
    %p192 = scmp.eq.s32.totalorder %s18, 1
    %p193 = scmp.ne.s32.totalorder %s188, %s190
    %p194 = scmp.eq.s32.totalorder %s18, 0
    %p195 = por %p193, %p194
    %p196 = scmp.ne.s32.totalorder %s188, %s190
    %p197 = scmp.eq.s32.totalorder %s23, 1
    %p198 = por %p196, %p197
    %p199 = scmp.ne.s32.totalorder %s190, %s191
    %p200 = scmp.eq.s32.totalorder %s23, 0
    %p201 = por %p199, %p200
    %p202 = scmp.ne.s32.totalorder %s190, %s191
    %p203 = scmp.eq.s32.totalorder %s24, 1
    %p204 = por %p202, %p203
    %p206 = scmp.ne.s32.totalorder %s191, %s205
    %p207 = scmp.eq.s32.totalorder %s24, 0
    %p208 = por %p206, %p207
    %s210 = sadd.s32 %s209, 1
    %p213 = scmp.eq.s32.totalorder %s18, 1
    %p214 = scmp.ne.s32.totalorder %s209, %s211
    %p215 = scmp.eq.s32.totalorder %s18, 0
    %p216 = por %p214, %p215
    %p217 = scmp.ne.s32.totalorder %s209, %s211
    %p218 = scmp.eq.s32.totalorder %s23, 1
    %p219 = por %p217, %p218
    %p220 = scmp.ne.s32.totalorder %s211, %s212
    %p221 = scmp.eq.s32.totalorder %s23, 0
    %p222 = por %p220, %p221
    %p223 = scmp.ne.s32.totalorder %s211, %s212
    %p224 = scmp.eq.s32.totalorder %s24, 1
    %p225 = por %p223, %p224
    %p227 = scmp.ne.s32.totalorder %s212, %s226
    %p228 = scmp.eq.s32.totalorder %s24, 0
    %p229 = por %p227, %p228
    %s231 = sadd.s32 %s230, 1
    %p234 = scmp.eq.s32.totalorder %s18, 1
    %p235 = scmp.ne.s32.totalorder %s230, %s232
    %p236 = scmp.eq.s32.totalorder %s18, 0
    %p237 = por %p235, %p236
    %p238 = scmp.ne.s32.totalorder %s230, %s232
    %p239 = scmp.eq.s32.totalorder %s23, 1
    %p240 = por %p238, %p239
    %p241 = scmp.ne.s32.totalorder %s232, %s233
    %p242 = scmp.eq.s32.totalorder %s23, 0
    %p243 = por %p241, %p242
    %p244 = scmp.ne.s32.totalorder %s232, %s233
    %p245 = scmp.eq.s32.totalorder %s24, 1
    %p246 = por %p244, %p245
    %p248 = scmp.ne.s32.totalorder %s233, %s247
    %p249 = scmp.eq.s32.totalorder %s24, 0
    %p250 = por %p248, %p249
    %s252 = sadd.s32 %s251, 1
    %p255 = scmp.eq.s32.totalorder %s18, 1
    %p256 = scmp.ne.s32.totalorder %s251, %s253
    %p257 = scmp.eq.s32.totalorder %s18, 0
    %p258 = por %p256, %p257
    %p259 = scmp.ne.s32.totalorder %s251, %s253
    %p260 = scmp.eq.s32.totalorder %s23, 1
    %p261 = por %p259, %p260
    %p262 = scmp.ne.s32.totalorder %s253, %s254
    %p263 = scmp.eq.s32.totalorder %s23, 0
    %p264 = por %p262, %p263
    %p265 = scmp.ne.s32.totalorder %s253, %s254
    %p266 = scmp.eq.s32.totalorder %s24, 1
    %p267 = por %p265, %p266
    %p269 = scmp.ne.s32.totalorder %s254, %s268
    %p270 = scmp.eq.s32.totalorder %s24, 0
    %p271 = por %p269, %p270
    %s273 = sadd.s32 %s272, 1
    %p276 = scmp.eq.s32.totalorder %s18, 1
    %p277 = scmp.ne.s32.totalorder %s272, %s274
    %p278 = scmp.eq.s32.totalorder %s18, 0
    %p279 = por %p277, %p278
    %p280 = scmp.ne.s32.totalorder %s272, %s274
    %p281 = scmp.eq.s32.totalorder %s23, 1
    %p282 = por %p280, %p281
    %p283 = scmp.ne.s32.totalorder %s274, %s275
    %p284 = scmp.eq.s32.totalorder %s23, 0
    %p285 = por %p283, %p284
    %p286 = scmp.ne.s32.totalorder %s274, %s275
    %p287 = scmp.eq.s32.totalorder %s24, 1
    %p288 = por %p286, %p287
    %p290 = scmp.ne.s32.totalorder %s275, %s289
    %p291 = scmp.eq.s32.totalorder %s24, 0
    %p292 = por %p290, %p291
    %s294 = sadd.s32 %s293, 1
    %p297 = scmp.eq.s32.totalorder %s18, 1
    %p298 = scmp.ne.s32.totalorder %s293, %s295
    %p299 = scmp.eq.s32.totalorder %s18, 0
    %p300 = por %p298, %p299
    %p301 = scmp.ne.s32.totalorder %s293, %s295
    %p302 = scmp.eq.s32.totalorder %s23, 1
    %p303 = por %p301, %p302
    %p304 = scmp.ne.s32.totalorder %s295, %s296
    %p305 = scmp.eq.s32.totalorder %s23, 0
    %p306 = por %p304, %p305
    %p307 = scmp.ne.s32.totalorder %s295, %s296
    %p308 = scmp.eq.s32.totalorder %s24, 1
    %p309 = por %p307, %p308
    %p311 = scmp.ne.s32.totalorder %s296, %s310
    %p312 = scmp.eq.s32.totalorder %s24, 0
    %p313 = por %p311, %p312
    %s314 = ssub.s32 %s25, %s37
    %s315 = ssub.s32 %s26, %s33
    %s316 = sor.u32 %s314, %s315
    %p317 = scmp.eq.s32.totalorder %s316, 0
    %s319 = sadd.s32 %s318, 1
    %s320 = scalar_select %p317, %s318, %s319
    %p323 = pneg %p317
    %p324 = scmp.eq.s32.totalorder %s18, 1
    %p325 = por %p323, %p324
    %p326 = scmp.ne.s32.totalorder %s318, %s321
    %p327 = scmp.eq.s32.totalorder %s18, 0
    %p328 = por %p326, %p327
    %p329 = scmp.ne.s32.totalorder %s318, %s321
    %p330 = scmp.eq.s32.totalorder %s23, 1
    %p331 = por %p329, %p330
    %p332 = scmp.ne.s32.totalorder %s321, %s322
    %p333 = scmp.eq.s32.totalorder %s23, 0
    %p334 = por %p332, %p333
    %p335 = scmp.ne.s32.totalorder %s321, %s322
    %p336 = scmp.eq.s32.totalorder %s24, 1
    %p337 = por %p335, %p336
    %p339 = scmp.ne.s32.totalorder %s322, %s338
    %p340 = scmp.eq.s32.totalorder %s24, 0
    %p341 = por %p339, %p340
    %p342 = scmp.le.s32.totalorder 1, %s18
    %p343 = scmp.lt.s32.totalorder %s18, 3
    %p344 = pnand %p342, %p343
    %p345 = pneg %p344
    // Predicated region
    $region9: #{decoder_forward.6} parent=5 // pred_check
      _
    $region10: #{decoder_forward.6} parent=5 // pred_check_branch
      %347 = sbr.rel (%p344) target = $region12
    $region11: #{decoder_forward.6} parent=5 // pred_region
      %s348 = ssub.s32 %s18, 1
      // Predicated region
      $region13: #{decoder_forward.6} parent=11 // pred_check
        %p349 = pneg %p159
      $region14: #{decoder_forward.6} parent=11 // pred_check_branch
        %351 = sbr.rel (%p349) target = $region16
      $region15: #{decoder_forward.6} parent=11 // pred_region
        _
      $region16: #{decoder_forward.6} parent=11 // pred_fallthru
        _
      // Predicated region
      $region17: #{decoder_forward.6} parent=11 // pred_check
        %p352 = pneg %p180
      $region18: #{decoder_forward.6} parent=11 // pred_check_branch
        %354 = sbr.rel (%p352) target = $region20
      $region19: #{decoder_forward.6} parent=11 // pred_region
        _
      $region20: #{decoder_forward.6} parent=11 // pred_fallthru
        _
      // Predicated region
      $region21: #{decoder_forward.6} parent=11 // pred_check
        %p355 = pneg %p201
      $region22: #{decoder_forward.6} parent=11 // pred_check_branch
        %357 = sbr.rel (%p355) target = $region24
      $region23: #{decoder_forward.6} parent=11 // pred_region
        _
      $region24: #{decoder_forward.6} parent=11 // pred_fallthru
        _
      // Predicated region
      $region25: #{decoder_forward.6} parent=11 // pred_check
        %p358 = pneg %p222
      $region26: #{decoder_forward.6} parent=11 // pred_check_branch
        %360 = sbr.rel (%p358) target = $region28
      $region27: #{decoder_forward.6} parent=11 // pred_region
        _
      $region28: #{decoder_forward.6} parent=11 // pred_fallthru
        _
      // Predicated region
      $region29: #{decoder_forward.6} parent=11 // pred_check
        %p361 = pneg %p243
      $region30: #{decoder_forward.6} parent=11 // pred_check_branch
        %363 = sbr.rel (%p361) target = $region32
      $region31: #{decoder_forward.6} parent=11 // pred_region
        _
      $region32: #{decoder_forward.6} parent=11 // pred_fallthru
        _
      // Predicated region
      $region33: #{decoder_forward.6} parent=11 // pred_check
        %p364 = pneg %p264
      $region34: #{decoder_forward.6} parent=11 // pred_check_branch
        %366 = sbr.rel (%p364) target = $region36
      $region35: #{decoder_forward.6} parent=11 // pred_region
        _
      $region36: #{decoder_forward.6} parent=11 // pred_fallthru
        _
      // Predicated region
      $region37: #{decoder_forward.6} parent=11 // pred_check
        %p367 = pneg %p285
      $region38: #{decoder_forward.6} parent=11 // pred_check_branch
        %369 = sbr.rel (%p367) target = $region40
      $region39: #{decoder_forward.6} parent=11 // pred_region
        _
      $region40: #{decoder_forward.6} parent=11 // pred_fallthru
        _
      // Predicated region
      $region41: #{decoder_forward.6} parent=11 // pred_check
        %p370 = pneg %p306
      $region42: #{decoder_forward.6} parent=11 // pred_check_branch
        %372 = sbr.rel (%p370) target = $region44
      $region43: #{decoder_forward.6} parent=11 // pred_region
        _
      $region44: #{decoder_forward.6} parent=11 // pred_fallthru
        _
    $region12: #{decoder_forward.6} parent=5 // pred_fallthru
      _
    %p373 = scmp.lt.s32.totalorder %s18, 2
    // Predicated region
    $region45: #{decoder_forward.6} parent=5 // pred_check
      %p374 = pneg %p373
    $region46: #{decoder_forward.6} parent=5 // pred_check_branch
      %376 = sbr.rel (%p374) target = $region48
    $region47: #{decoder_forward.6} parent=5 // pred_region
      // Predicated region
      $region49: #{decoder_forward.6} parent=47 // pred_check
        %p377 = pneg %p52
      $region50: #{decoder_forward.6} parent=47 // pred_check_branch
        %379 = sbr.rel (%p377) target = $region52
      $region51: #{decoder_forward.6} parent=47 // pred_region
        %p380 = scmp.lt.s32.totalorder %s25, 1
        %s381 = scalar_select %p380, %s25, 1
        %p382 = scmp.lt.s32.totalorder %s26, 0
        %s383 = scalar_select %p382, %s26, 0
        %s384 = sadd.s32 %s383, %s381
        %s385 = smul.addr %s384, 8
        %s386 = scalar_lea.vmem %s0, %s385
      $region52: #{decoder_forward.6} parent=47 // pred_fallthru
        _
      // Predicated region
      $region53: #{decoder_forward.6} parent=47 // pred_check
        %p387 = pneg %p80
      $region54: #{decoder_forward.6} parent=47 // pred_check_branch
        %389 = sbr.rel (%p387) target = $region56
      $region55: #{decoder_forward.6} parent=47 // pred_region
        %p390 = scmp.lt.s32.totalorder %s25, 1
        %s391 = scalar_select %p390, %s25, 1
        %p392 = scmp.lt.s32.totalorder %s26, 0
        %s393 = scalar_select %p392, %s26, 0
        %s394 = smul.addr %s393, 3
        %s395 = smul.addr %s391, 3
        %s396 = sadd.s32 %s394, %s395
        %s397 = smul.addr %s396, 4
        %s398 = scalar_lea.vmem %s1, %s397
      $region56: #{decoder_forward.6} parent=47 // pred_fallthru
        _
      // Predicated region
      $region57: #{decoder_forward.6} parent=47 // pred_check
        %p399 = pneg %p106
      $region58: #{decoder_forward.6} parent=47 // pred_check_branch
        %401 = sbr.rel (%p399) target = $region60
      $region59: #{decoder_forward.6} parent=47 // pred_region
        %p402 = scmp.lt.s32.totalorder %s25, 1
        %s403 = scalar_select %p402, %s25, 1
        %s404 = smul.addr %s403, 3
        %s405 = sadd.s32 1, %s404
        %s406 = smul.addr %s405, 4
        %s407 = scalar_lea.vmem %s2, %s406
      $region60: #{decoder_forward.6} parent=47 // pred_fallthru
        _
      // Predicated region
      $region61: #{decoder_forward.6} parent=47 // pred_check
        %p408 = pneg %p132
      $region62: #{decoder_forward.6} parent=47 // pred_check_branch
        %410 = sbr.rel (%p408) target = $region64
      $region63: #{decoder_forward.6} parent=47 // pred_region
        %p411 = scmp.lt.s32.totalorder %s25, 1
        %s412 = scalar_select %p411, %s25, 1
        %s413 = smul.addr %s412, 3
        %s414 = sadd.s32 2, %s413
        %s415 = smul.addr %s414, 4
        %s416 = scalar_lea.vmem %s3, %s415
      $region64: #{decoder_forward.6} parent=47 // pred_fallthru
        _
    $region48: #{decoder_forward.6} parent=5 // pred_fallthru
      _
    %p417 = scmp.le.s32.totalorder 1, %s18
    %p418 = scmp.lt.s32.totalorder %s18, 3
    %p419 = pnand %p417, %p418
    %p420 = pneg %p419
    // Predicated region
    $region65: #{decoder_forward.6} parent=5 // pred_check
      _
    $region66: #{decoder_forward.6} parent=5 // pred_check_branch
      %422 = sbr.rel (%p419) target = $region68
    $region67: #{decoder_forward.6} parent=5 // pred_region
      %s423 = ssub.s32 %s18, 1
      %p424 = scmp.lt.s32.totalorder %s27, 1
      %s425 = scalar_select %p424, %s27, 1
      %p426 = scmp.lt.s32.totalorder %s28, 0
      %s427 = scalar_select %p426, %s28, 0
      %s428 = sadd.s32 %s427, %s425
      %s429 = smul.addr %s428, 8
      %s430 = scalar_lea.vmem %s0, %s429
      %p431 = pneg %p58
      %p432 = pneg %p55
      %p433 = scmp.lt.s32.totalorder %s27, 1
      %s434 = scalar_select %p433, %s27, 1
      %p435 = scmp.lt.s32.totalorder %s28, 0
      %s436 = scalar_select %p435, %s28, 0
      %s437 = smul.addr %s436, 3
      %s438 = smul.addr %s434, 3
      %s439 = sadd.s32 %s437, %s438
      %s440 = smul.addr %s439, 4
      %s441 = scalar_lea.vmem %s1, %s440
      %p442 = pneg %p86
      %p443 = pneg %p83
      %p444 = scmp.lt.s32.totalorder %s27, 1
      %s445 = scalar_select %p444, %s27, 1
      %s446 = smul.addr %s445, 3
      %s447 = sadd.s32 1, %s446
      %s448 = smul.addr %s447, 4
      %s449 = scalar_lea.vmem %s2, %s448
      %p450 = pneg %p112
      %p451 = pneg %p109
      %p452 = scmp.lt.s32.totalorder %s27, 1
      %s453 = scalar_select %p452, %s27, 1
      %s454 = smul.addr %s453, 3
      %s455 = sadd.s32 2, %s454
      %s456 = smul.addr %s455, 4
      %s457 = scalar_lea.vmem %s3, %s456
      %p458 = pneg %p138
      %p459 = pneg %p135
      %p460 = pneg %p159
      %p461 = pneg %p156
      %p462 = pneg %p180
      %p463 = pneg %p177
      %p464 = pneg %p201
      %p465 = pneg %p198
      %p466 = pneg %p222
      %p467 = pneg %p219
      %p468 = pneg %p243
      %p469 = pneg %p240
      %p470 = pneg %p264
      %p471 = pneg %p261
      %p472 = pneg %p285
      %p473 = pneg %p282
      %p474 = pneg %p306
      %p475 = pneg %p303
      %p476 = pneg %p334
      %p477 = pneg %p331
      %p478 = scmp.lt.s32.totalorder %s27, 1
      %s479 = scalar_select %p478, %s27, 1
      %p480 = scmp.lt.s32.totalorder %s28, 0
      %s481 = scalar_select %p480, %s28, 0
      %s482 = sadd.s32 %s481, %s479
      %s483 = smul.addr %s482, 8
      %s484 = scalar_lea.vmem %s12, %s483
      %p485 = scmp.lt.s32.totalorder %s27, 1
      %s486 = scalar_select %p485, %s27, 1
      %p487 = scmp.lt.s32.totalorder %s28, 0
      %s488 = scalar_select %p487, %s28, 0
      %s489 = sadd.s32 %s488, %s486
      %s490 = smul.addr %s489, 8
      %s491 = scalar_lea.vmem %s0, %s490
      %p492 = scmp.lt.s32.totalorder %s27, 1
      %s493 = scalar_select %p492, %s27, 1
      %p494 = scmp.lt.s32.totalorder %s28, 0
      %s495 = scalar_select %p494, %s28, 0
      %s496 = smul.addr %s495, 3
      %s497 = smul.addr %s493, 3
      %s498 = sadd.s32 %s496, %s497
      %s499 = smul.addr %s498, 4
      %s500 = scalar_lea.vmem %s1, %s499
      %p501 = scmp.lt.s32.totalorder %s27, 1
      %s502 = scalar_select %p501, %s27, 1
      %s503 = smul.addr %s502, 3
      %s504 = sadd.s32 1, %s503
      %s505 = smul.addr %s504, 4
      %s506 = scalar_lea.vmem %s2, %s505
      %p507 = scmp.lt.s32.totalorder %s27, 1
      %s508 = scalar_select %p507, %s27, 1
      %s509 = smul.addr %s508, 3
      %s510 = sadd.s32 2, %s509
      %s511 = smul.addr %s510, 4
      %s512 = scalar_lea.vmem %s3, %s511
      %p513 = scmp.lt.s32.totalorder %s27, 1
      %s514 = scalar_select %p513, %s27, 1
      %p515 = scmp.lt.s32.totalorder %s28, 0
      %s516 = scalar_select %p515, %s28, 0
      %s517 = sadd.s32 %s516, %s514
      %s518 = smul.addr %s517, 8
      %s519 = scalar_lea.vmem %s12, %s518
      %v521 = vld [vmem:[%s491] sm:$0xff]
      %v522 = vld [vmem:[%s500] sm:$0xf]
      %524 = vrot.lane.b32.xlu0 %v522, 96
      %v525 = vpop.permute.xlu0 %524
      %526 = vrot.lane.b32.xlu0 %v522, 64
      %v527 = vpop.permute.xlu0 %526
      %528 = vrot.lane.b32.xlu0 %v522, 32
      %v529 = vpop.permute.xlu0 %528
      %v530 = vld [vmem:[%s506] sm:$0xf]
      %532 = vrot.lane.b32.xlu0 %v530, 96
      %v533 = vpop.permute.xlu0 %532
      %534 = vrot.lane.b32.xlu0 %v530, 64
      %v535 = vpop.permute.xlu0 %534
      %536 = vrot.lane.b32.xlu0 %v530, 32
      %v537 = vpop.permute.xlu0 %536
      %v538 = vld [vmem:[%s512] sm:$0xf]
      %540 = vrot.lane.b32.xlu0 %v538, 96
      %v541 = vpop.permute.xlu0 %540
      %542 = vrot.lane.b32.xlu0 %v538, 64
      %v543 = vpop.permute.xlu0 %542
      %544 = vrot.lane.b32.xlu0 %v538, 32
      %v545 = vpop.permute.xlu0 %544
      %vm546 = vcmask 261120
      %v548 = vsel %vm546, %v522, 0
      %v551 = vsel %vm546, %v530, 0
      %553 = vmatprep.subr.bf16.mxu0 0
      %554 = vmatpush1.bf16.xpose.msra.mxu0 %v551
      %555 = vmatprep.subr.bf16.mxu0 0
      %556 = vmatpush1.bf16.xpose.msra.mxu0 0
      %557 = vmatprep.subr.bf16.mxu0 0
      %558 = vmatpush1.bf16.xpose.msra.mxu0 0
      %559 = vmatprep.subr.bf16.mxu0 0
      %560 = vmatpush1.bf16.xpose.msra.mxu0 0
      %561 = vmatprep.subr.bf16.mxu0 0
      %562 = vmatpush1.bf16.xpose.msra.mxu0 0
      %563 = vmatprep.subr.bf16.mxu0 0
      %564 = vmatpush1.bf16.xpose.msra.mxu0 0
      %565 = vmatprep.subr.bf16.mxu0 0
      %566 = vmatpush1.bf16.xpose.msra.mxu0 0
      %567 = vmatprep.subr.bf16.mxu0 0
      %568 = vmatpush1.bf16.xpose.msra.mxu0 0
      %569 = vmatprep.subr.bf16.mxu0 0
      %570 = vmatpush1.bf16.xpose.msra.mxu0 0
      %571 = vmatprep.subr.bf16.mxu0 0
      %572 = vmatpush1.bf16.xpose.msra.mxu0 0
      %573 = vmatprep.subr.bf16.mxu0 0
      %574 = vmatpush1.bf16.xpose.msra.mxu0 0
      %575 = vmatprep.subr.bf16.mxu0 0
      %576 = vmatpush1.bf16.xpose.msra.mxu0 0
      %577 = vmatprep.subr.bf16.mxu0 0
      %578 = vmatpush1.bf16.xpose.msra.mxu0 0
      %579 = vmatprep.subr.bf16.mxu0 0
      %580 = vmatpush1.bf16.xpose.msra.mxu0 0
      %581 = vmatprep.subr.bf16.mxu0 0
      %582 = vmatpush1.bf16.xpose.msra.mxu0 0
      %583 = vmatprep.subr.bf16.mxu0 0
      %584 = vmatpush1.bf16.xpose.msra.mxu0 0
      %585 = vmatprep.mubr.bf16.mxu0 0
      %586 = vmatmul.mubr.bf16.gmra.mrb[0].mxu0 %v548
      %v587 = vpop.f32.mrb[0].mxu0
      %v588 = vadd.f32 0.0, %v587
      %v589 = vpop.f32.mrb[0].mxu0
      %v590 = vpop.f32.mrb[0].mxu0
      %v591 = vpop.f32.mrb[0].mxu0
      %592 = vdwg.mxu0
      %v594 = vsel %vm546, %v525, 0
      %v597 = vsel %vm546, %v533, 0
      %599 = vmatprep.subr.bf16.mxu0 0
      %600 = vmatpush1.bf16.xpose.msra.mxu0 %v597
      %601 = vmatprep.subr.bf16.mxu0 0
      %602 = vmatpush1.bf16.xpose.msra.mxu0 0
      %603 = vmatprep.subr.bf16.mxu0 0
      %604 = vmatpush1.bf16.xpose.msra.mxu0 0
      %605 = vmatprep.subr.bf16.mxu0 0
      %606 = vmatpush1.bf16.xpose.msra.mxu0 0
      %607 = vmatprep.subr.bf16.mxu0 0
      %608 = vmatpush1.bf16.xpose.msra.mxu0 0
      %609 = vmatprep.subr.bf16.mxu0 0
      %610 = vmatpush1.bf16.xpose.msra.mxu0 0
      %611 = vmatprep.subr.bf16.mxu0 0
      %612 = vmatpush1.bf16.xpose.msra.mxu0 0
      %613 = vmatprep.subr.bf16.mxu0 0
      %614 = vmatpush1.bf16.xpose.msra.mxu0 0
      %615 = vmatprep.subr.bf16.mxu0 0
      %616 = vmatpush1.bf16.xpose.msra.mxu0 0
      %617 = vmatprep.subr.bf16.mxu0 0
      %618 = vmatpush1.bf16.xpose.msra.mxu0 0
      %619 = vmatprep.subr.bf16.mxu0 0
      %620 = vmatpush1.bf16.xpose.msra.mxu0 0
      %621 = vmatprep.subr.bf16.mxu0 0
      %622 = vmatpush1.bf16.xpose.msra.mxu0 0
      %623 = vmatprep.subr.bf16.mxu0 0
      %624 = vmatpush1.bf16.xpose.msra.mxu0 0
      %625 = vmatprep.subr.bf16.mxu0 0
      %626 = vmatpush1.bf16.xpose.msra.mxu0 0
      %627 = vmatprep.subr.bf16.mxu0 0
      %628 = vmatpush1.bf16.xpose.msra.mxu0 0
      %629 = vmatprep.subr.bf16.mxu0 0
      %630 = vmatpush1.bf16.xpose.msra.mxu0 0
      %631 = vmatprep.mubr.bf16.mxu0 0
      %632 = vmatmul.mubr.bf16.gmra.mrb[0].mxu0 %v594
      %v633 = vpop.f32.mrb[0].mxu0
      %v634 = vadd.f32 0.0, %v633
      %v635 = vpop.f32.mrb[0].mxu0
      %v636 = vpop.f32.mrb[0].mxu0
      %v637 = vpop.f32.mrb[0].mxu0
      %638 = vdwg.mxu0
      %v640 = vsel %vm546, %v527, 0
      %v643 = vsel %vm546, %v535, 0
      %645 = vmatprep.subr.bf16.mxu0 0
      %646 = vmatpush1.bf16.xpose.msra.mxu0 %v643
      %647 = vmatprep.subr.bf16.mxu0 0
      %648 = vmatpush1.bf16.xpose.msra.mxu0 0
      %649 = vmatprep.subr.bf16.mxu0 0
      %650 = vmatpush1.bf16.xpose.msra.mxu0 0
      %651 = vmatprep.subr.bf16.mxu0 0
      %652 = vmatpush1.bf16.xpose.msra.mxu0 0
      %653 = vmatprep.subr.bf16.mxu0 0
      %654 = vmatpush1.bf16.xpose.msra.mxu0 0
      %655 = vmatprep.subr.bf16.mxu0 0
      %656 = vmatpush1.bf16.xpose.msra.mxu0 0
      %657 = vmatprep.subr.bf16.mxu0 0
      %658 = vmatpush1.bf16.xpose.msra.mxu0 0
      %659 = vmatprep.subr.bf16.mxu0 0
      %660 = vmatpush1.bf16.xpose.msra.mxu0 0
      %661 = vmatprep.subr.bf16.mxu0 0
      %662 = vmatpush1.bf16.xpose.msra.mxu0 0
      %663 = vmatprep.subr.bf16.mxu0 0
      %664 = vmatpush1.bf16.xpose.msra.mxu0 0
      %665 = vmatprep.subr.bf16.mxu0 0
      %666 = vmatpush1.bf16.xpose.msra.mxu0 0
      %667 = vmatprep.subr.bf16.mxu0 0
      %668 = vmatpush1.bf16.xpose.msra.mxu0 0
      %669 = vmatprep.subr.bf16.mxu0 0
      %670 = vmatpush1.bf16.xpose.msra.mxu0 0
      %671 = vmatprep.subr.bf16.mxu0 0
      %672 = vmatpush1.bf16.xpose.msra.mxu0 0
      %673 = vmatprep.subr.bf16.mxu0 0
      %674 = vmatpush1.bf16.xpose.msra.mxu0 0
      %675 = vmatprep.subr.bf16.mxu0 0
      %676 = vmatpush1.bf16.xpose.msra.mxu0 0
      %677 = vmatprep.mubr.bf16.mxu0 0
      %678 = vmatmul.mubr.bf16.gmra.mrb[0].mxu0 %v640
      %v679 = vpop.f32.mrb[0].mxu0
      %v680 = vadd.f32 0.0, %v679
      %v681 = vpop.f32.mrb[0].mxu0
      %v682 = vpop.f32.mrb[0].mxu0
      %v683 = vpop.f32.mrb[0].mxu0
      %684 = vdwg.mxu0
      %v686 = vsel %vm546, %v529, 0
      %v689 = vsel %vm546, %v537, 0
      %691 = vmatprep.subr.bf16.mxu0 0
      %692 = vmatpush1.bf16.xpose.msra.mxu0 %v689
      %693 = vmatprep.subr.bf16.mxu0 0
      %694 = vmatpush1.bf16.xpose.msra.mxu0 0
      %695 = vmatprep.subr.bf16.mxu0 0
      %696 = vmatpush1.bf16.xpose.msra.mxu0 0
      %697 = vmatprep.subr.bf16.mxu0 0
      %698 = vmatpush1.bf16.xpose.msra.mxu0 0
      %699 = vmatprep.subr.bf16.mxu0 0
      %700 = vmatpush1.bf16.xpose.msra.mxu0 0
      %701 = vmatprep.subr.bf16.mxu0 0
      %702 = vmatpush1.bf16.xpose.msra.mxu0 0
      %703 = vmatprep.subr.bf16.mxu0 0
      %704 = vmatpush1.bf16.xpose.msra.mxu0 0
      %705 = vmatprep.subr.bf16.mxu0 0
      %706 = vmatpush1.bf16.xpose.msra.mxu0 0
      %707 = vmatprep.subr.bf16.mxu0 0
      %708 = vmatpush1.bf16.xpose.msra.mxu0 0
      %709 = vmatprep.subr.bf16.mxu0 0
      %710 = vmatpush1.bf16.xpose.msra.mxu0 0
      %711 = vmatprep.subr.bf16.mxu0 0
      %712 = vmatpush1.bf16.xpose.msra.mxu0 0
      %713 = vmatprep.subr.bf16.mxu0 0
      %714 = vmatpush1.bf16.xpose.msra.mxu0 0
      %715 = vmatprep.subr.bf16.mxu0 0
      %716 = vmatpush1.bf16.xpose.msra.mxu0 0
      %717 = vmatprep.subr.bf16.mxu0 0
      %718 = vmatpush1.bf16.xpose.msra.mxu0 0
      %719 = vmatprep.subr.bf16.mxu0 0
      %720 = vmatpush1.bf16.xpose.msra.mxu0 0
      %721 = vmatprep.subr.bf16.mxu0 0
      %722 = vmatpush1.bf16.xpose.msra.mxu0 0
      %723 = vmatprep.mubr.bf16.mxu0 0
      %724 = vmatmul.mubr.bf16.gmra.mrb[0].mxu0 %v686
      %v725 = vpop.f32.mrb[0].mxu0
      %v726 = vadd.f32 0.0, %v725
      %v727 = vpop.f32.mrb[0].mxu0
      %v728 = vpop.f32.mrb[0].mxu0
      %v729 = vpop.f32.mrb[0].mxu0
      %730 = vdwg.mxu0
      %vm731 = vcmask 64512
      %v732 = vsel %vm731, %v588, -inf
      %733 = vmax.xlane.f32.xlu0 %v732
      %v734 = vpop.xlane.xlu0 %733
      %v735 = vsel %vm731, %v634, -inf
      %736 = vmax.xlane.f32.xlu0 %v735
      %v737 = vpop.xlane.xlu0 %736
      %v738 = vsel %vm731, %v680, -inf
      %739 = vmax.xlane.f32.xlu0 %v738
      %v740 = vpop.xlane.xlu0 %739
      %v741 = vsel %vm731, %v726, -inf
      %742 = vmax.xlane.f32.xlu0 %v741
      %v743 = vpop.xlane.xlu0 %742
      %v744 = vsub.f32 %v588, %v734
      %v745 = vsub.f32 %v634, %v737
      %v746 = vsub.f32 %v680, %v740
      %v747 = vsub.f32 %v726, %v743
      %v748 = vmul.f32 %v744, 1.442695
      %v749 = vpow.pop %v748
      %v750 = vmul.f32 %v745, 1.442695
      %v751 = vpow.pop %v750
      %v752 = vmul.f32 %v746, 1.442695
      %v753 = vpow.pop %v752
      %v754 = vmul.f32 %v747, 1.442695
      %v755 = vpow.pop %v754
      %v756 = vsel %vm731, %v749, 0.0
      %757 = vadd.xlane.f32.xlu0 %v756
      %v758 = vpop.xlane.xlu0 %757
      %v759 = vsel %vm731, %v751, 0.0
      %760 = vadd.xlane.f32.xlu0 %v759
      %v761 = vpop.xlane.xlu0 %760
      %v762 = vsel %vm731, %v753, 0.0
      %763 = vadd.xlane.f32.xlu0 %v762
      %v764 = vpop.xlane.xlu0 %763
      %v765 = vsel %vm731, %v755, 0.0
      %766 = vadd.xlane.f32.xlu0 %v765
      %v767 = vpop.xlane.xlu0 %766
      %v768 = vpack.c.bf16 %v749, %v749
      %v769 = vpack.c.bf16 %v751, %v751
      %v770 = vpack.c.bf16 %v753, %v753
      %v771 = vpack.c.bf16 %v755, %v755
      %v773 = vsel %vm731, %v768, 0
      %vm775 = vcmask 1043456
      %v777 = vsel %vm775, %v538, 0
      %779 = vmatprep.subr.bf16.mxu0 0
      %780 = vmatpush1.bf16.msra.mxu0 %v777
      %781 = vmatprep.subr.bf16.mxu0 0
      %782 = vmatpush1.bf16.msra.mxu0 0
      %783 = vmatprep.subr.bf16.mxu0 0
      %784 = vmatpush1.bf16.msra.mxu0 0
      %785 = vmatprep.subr.bf16.mxu0 0
      %786 = vmatpush1.bf16.msra.mxu0 0
      %787 = vmatprep.subr.bf16.mxu0 0
      %788 = vmatpush1.bf16.msra.mxu0 0
      %789 = vmatprep.subr.bf16.mxu0 0
      %790 = vmatpush1.bf16.msra.mxu0 0
      %791 = vmatprep.subr.bf16.mxu0 0
      %792 = vmatpush1.bf16.msra.mxu0 0
      %793 = vmatprep.subr.bf16.mxu0 0
      %794 = vmatpush1.bf16.msra.mxu0 0
      %795 = vmatprep.subr.bf16.mxu0 0
      %796 = vmatpush1.bf16.msra.mxu0 0
      %797 = vmatprep.subr.bf16.mxu0 0
      %798 = vmatpush1.bf16.msra.mxu0 0
      %799 = vmatprep.subr.bf16.mxu0 0
      %800 = vmatpush1.bf16.msra.mxu0 0
      %801 = vmatprep.subr.bf16.mxu0 0
      %802 = vmatpush1.bf16.msra.mxu0 0
      %803 = vmatprep.subr.bf16.mxu0 0
      %804 = vmatpush1.bf16.msra.mxu0 0
      %805 = vmatprep.subr.bf16.mxu0 0
      %806 = vmatpush1.bf16.msra.mxu0 0
      %807 = vmatprep.subr.bf16.mxu0 0
      %808 = vmatpush1.bf16.msra.mxu0 0
      %809 = vmatprep.subr.bf16.mxu0 0
      %810 = vmatpush1.bf16.msra.mxu0 0
      %811 = vmatprep.mubr.bf16.mxu0 0
      %812 = vmatmul.mubr.bf16.gmra.mrb[0].mxu0 %v773
      %v813 = vpop.f32.mrb[0].mxu0
      %v814 = vadd.f32 0.0, %v813
      %v815 = vpop.f32.mrb[0].mxu0
      %v816 = vpop.f32.mrb[0].mxu0
      %v817 = vpop.f32.mrb[0].mxu0
      %818 = vdwg.mxu0
      %v820 = vsel %vm731, %v769, 0
      %v823 = vsel %vm775, %v541, 0
      %825 = vmatprep.subr.bf16.mxu0 0
      %826 = vmatpush1.bf16.msra.mxu0 %v823
      %827 = vmatprep.subr.bf16.mxu0 0
      %828 = vmatpush1.bf16.msra.mxu0 0
      %829 = vmatprep.subr.bf16.mxu0 0
      %830 = vmatpush1.bf16.msra.mxu0 0
      %831 = vmatprep.subr.bf16.mxu0 0
      %832 = vmatpush1.bf16.msra.mxu0 0
      %833 = vmatprep.subr.bf16.mxu0 0
      %834 = vmatpush1.bf16.msra.mxu0 0
      %835 = vmatprep.subr.bf16.mxu0 0
      %836 = vmatpush1.bf16.msra.mxu0 0
      %837 = vmatprep.subr.bf16.mxu0 0
      %838 = vmatpush1.bf16.msra.mxu0 0
      %839 = vmatprep.subr.bf16.mxu0 0
      %840 = vmatpush1.bf16.msra.mxu0 0
      %841 = vmatprep.subr.bf16.mxu0 0
      %842 = vmatpush1.bf16.msra.mxu0 0
      %843 = vmatprep.subr.bf16.mxu0 0
      %844 = vmatpush1.bf16.msra.mxu0 0
      %845 = vmatprep.subr.bf16.mxu0 0
      %846 = vmatpush1.bf16.msra.mxu0 0
      %847 = vmatprep.subr.bf16.mxu0 0
      %848 = vmatpush1.bf16.msra.mxu0 0
      %849 = vmatprep.subr.bf16.mxu0 0
      %850 = vmatpush1.bf16.msra.mxu0 0
      %851 = vmatprep.subr.bf16.mxu0 0
      %852 = vmatpush1.bf16.msra.mxu0 0
      %853 = vmatprep.subr.bf16.mxu0 0
      %854 = vmatpush1.bf16.msra.mxu0 0
      %855 = vmatprep.subr.bf16.mxu0 0
      %856 = vmatpush1.bf16.msra.mxu0 0
      %857 = vmatprep.mubr.bf16.mxu0 0
      %858 = vmatmul.mubr.bf16.gmra.mrb[0].mxu0 %v820
      %v859 = vpop.f32.mrb[0].mxu0
      %v860 = vadd.f32 0.0, %v859
      %v861 = vpop.f32.mrb[0].mxu0
      %v862 = vpop.f32.mrb[0].mxu0
      %v863 = vpop.f32.mrb[0].mxu0
      %864 = vdwg.mxu0
      %v866 = vsel %vm731, %v770, 0
      %v869 = vsel %vm775, %v543, 0
      %871 = vmatprep.subr.bf16.mxu0 0
      %872 = vmatpush1.bf16.msra.mxu0 %v869
      %873 = vmatprep.subr.bf16.mxu0 0
      %874 = vmatpush1.bf16.msra.mxu0 0
      %875 = vmatprep.subr.bf16.mxu0 0
      %876 = vmatpush1.bf16.msra.mxu0 0
      %877 = vmatprep.subr.bf16.mxu0 0
      %878 = vmatpush1.bf16.msra.mxu0 0
      %879 = vmatprep.subr.bf16.mxu0 0
      %880 = vmatpush1.bf16.msra.mxu0 0
      %881 = vmatprep.subr.bf16.mxu0 0
      %882 = vmatpush1.bf16.msra.mxu0 0
      %883 = vmatprep.subr.bf16.mxu0 0
      %884 = vmatpush1.bf16.msra.mxu0 0
      %885 = vmatprep.subr.bf16.mxu0 0
      %886 = vmatpush1.bf16.msra.mxu0 0
      %887 = vmatprep.subr.bf16.mxu0 0
      %888 = vmatpush1.bf16.msra.mxu0 0
      %889 = vmatprep.subr.bf16.mxu0 0
      %890 = vmatpush1.bf16.msra.mxu0 0
      %891 = vmatprep.subr.bf16.mxu0 0
      %892 = vmatpush1.bf16.msra.mxu0 0
      %893 = vmatprep.subr.bf16.mxu0 0
      %894 = vmatpush1.bf16.msra.mxu0 0
      %895 = vmatprep.subr.bf16.mxu0 0
      %896 = vmatpush1.bf16.msra.mxu0 0
      %897 = vmatprep.subr.bf16.mxu0 0
      %898 = vmatpush1.bf16.msra.mxu0 0
      %899 = vmatprep.subr.bf16.mxu0 0
      %900 = vmatpush1.bf16.msra.mxu0 0
      %901 = vmatprep.subr.bf16.mxu0 0
      %902 = vmatpush1.bf16.msra.mxu0 0
      %903 = vmatprep.mubr.bf16.mxu0 0
      %904 = vmatmul.mubr.bf16.gmra.mrb[0].mxu0 %v866
      %v905 = vpop.f32.mrb[0].mxu0
      %v906 = vadd.f32 0.0, %v905
      %v907 = vpop.f32.mrb[0].mxu0
      %v908 = vpop.f32.mrb[0].mxu0
      %v909 = vpop.f32.mrb[0].mxu0
      %910 = vdwg.mxu0
      %v912 = vsel %vm731, %v771, 0
      %v915 = vsel %vm775, %v545, 0
      %917 = vmatprep.subr.bf16.mxu0 0
      %918 = vmatpush1.bf16.msra.mxu0 %v915
      %919 = vmatprep.subr.bf16.mxu0 0
      %920 = vmatpush1.bf16.msra.mxu0 0
      %921 = vmatprep.subr.bf16.mxu0 0
      %922 = vmatpush1.bf16.msra.mxu0 0
      %923 = vmatprep.subr.bf16.mxu0 0
      %924 = vmatpush1.bf16.msra.mxu0 0
      %925 = vmatprep.subr.bf16.mxu0 0
      %926 = vmatpush1.bf16.msra.mxu0 0
      %927 = vmatprep.subr.bf16.mxu0 0
      %928 = vmatpush1.bf16.msra.mxu0 0
      %929 = vmatprep.subr.bf16.mxu0 0
      %930 = vmatpush1.bf16.msra.mxu0 0
      %931 = vmatprep.subr.bf16.mxu0 0
      %932 = vmatpush1.bf16.msra.mxu0 0
      %933 = vmatprep.subr.bf16.mxu0 0
      %934 = vmatpush1.bf16.msra.mxu0 0
      %935 = vmatprep.subr.bf16.mxu0 0
      %936 = vmatpush1.bf16.msra.mxu0 0
      %937 = vmatprep.subr.bf16.mxu0 0
      %938 = vmatpush1.bf16.msra.mxu0 0
      %939 = vmatprep.subr.bf16.mxu0 0
      %940 = vmatpush1.bf16.msra.mxu0 0
      %941 = vmatprep.subr.bf16.mxu0 0
      %942 = vmatpush1.bf16.msra.mxu0 0
      %943 = vmatprep.subr.bf16.mxu0 0
      %944 = vmatpush1.bf16.msra.mxu0 0
      %945 = vmatprep.subr.bf16.mxu0 0
      %946 = vmatpush1.bf16.msra.mxu0 0
      %947 = vmatprep.subr.bf16.mxu0 0
      %948 = vmatpush1.bf16.msra.mxu0 0
      %949 = vmatprep.mubr.bf16.mxu0 0
      %950 = vmatmul.mubr.bf16.gmra.mrb[0].mxu0 %v912
      %v951 = vpop.f32.mrb[0].mxu0
      %v952 = vadd.f32 0.0, %v951
      %v953 = vpop.f32.mrb[0].mxu0
      %v954 = vpop.f32.mrb[0].mxu0
      %v955 = vpop.f32.mrb[0].mxu0
      %956 = vdwg.mxu0
      %v957 = vrcp.pop %v758
      %v958 = vrcp.pop %v761
      %v959 = vrcp.pop %v764
      %v960 = vrcp.pop %v767
      %v961 = vmul.f32 %v814, %v957
      %v962 = vmul.f32 %v860, %v958
      %v963 = vmul.f32 %v906, %v959
      %v964 = vmul.f32 %v952, %v960
      %966 = vrot.lane.b32.xlu0 %v962, 32
      %v967 = vpop.permute.xlu0 %966
      %970 = vrot.lane.b32.xlu0 %v963, 64
      %v971 = vpop.permute.xlu0 %970
      %974 = vrot.lane.b32.xlu0 %v964, 96
      %v975 = vpop.permute.xlu0 %974
      %v977 = vsel %vm546, %v961, %v967
      %vm978 = vcmask 523264
      %v979 = vsel %vm978, %v977, %v971
      %vm980 = vcmask 785408
      %v981 = vsel %vm980, %v979, %v975
      %v982 = vpack.c.bf16 %v981, %v981
      %v983 = vld [vmem:[%s4] sm:$0xf]
      %v984 = vld [vmem:[%s4 + $0x4] sm:$0xf]
      %v985 = vld [vmem:[%s4 + $0x8] sm:$0xf]
      %v986 = vld [vmem:[%s4 + $0xc] sm:$0xf]
      %v987 = vld [vmem:[%s4 + $0x10] sm:$0xf]
      %v988 = vld [vmem:[%s4 + $0x14] sm:$0xf]
      %v989 = vld [vmem:[%s4 + $0x18] sm:$0xf]
      %v990 = vld [vmem:[%s4 + $0x1c] sm:$0xf]
      %v991 = vld [vmem:[%s4 + $0x20] sm:$0xf]
      %v992 = vld [vmem:[%s4 + $0x24] sm:$0xf]
      %v993 = vld [vmem:[%s4 + $0x28] sm:$0xf]
      %v994 = vld [vmem:[%s4 + $0x2c] sm:$0xf]
      %v995 = vld [vmem:[%s4 + $0x30] sm:$0xf]
      %v996 = vld [vmem:[%s4 + $0x34] sm:$0xf]
      %v997 = vld [vmem:[%s4 + $0x38] sm:$0xf]
      %v998 = vld [vmem:[%s4 + $0x3c] sm:$0xf]
      %v1015 = vunpack.c.l.b16 %v983
      %v1016 = vunpack.c.l.b16 %v984
      %v1017 = vunpack.c.l.b16 %v985
      %v1018 = vunpack.c.l.b16 %v986
      %v1019 = vunpack.c.l.b16 %v987
      %v1020 = vunpack.c.l.b16 %v988
      %v1021 = vunpack.c.l.b16 %v989
      %v1022 = vunpack.c.l.b16 %v990
      %v1023 = vunpack.c.l.b16 %v991
      %v1024 = vunpack.c.l.b16 %v992
      %v1025 = vunpack.c.l.b16 %v993
      %v1026 = vunpack.c.l.b16 %v994
      %v1027 = vunpack.c.l.b16 %v995
      %v1028 = vunpack.c.l.b16 %v996
      %v1029 = vunpack.c.l.b16 %v997
      %v1030 = vunpack.c.l.b16 %v998
      %v1031 = vpack.c.b16 %v1016, %v1015
      %v1032 = vpack.c.b16 %v1018, %v1017
      %v1033 = vpack.c.b16 %v1020, %v1019
      %v1034 = vpack.c.b16 %v1022, %v1021
      %v1035 = vpack.c.b16 %v1024, %v1023
      %v1036 = vpack.c.b16 %v1026, %v1025
      %v1037 = vpack.c.b16 %v1028, %v1027
      %v1038 = vpack.c.b16 %v1030, %v1029
      %1047 = vmatprep.subr.bf16.mxu0 0
      %1048 = vmatpush1.bf16.msra.mxu0 %v1031
      %1049 = vmatprep.subr.bf16.mxu0 0
      %1050 = vmatpush1.bf16.msra.mxu0 %v1032
      %1051 = vmatprep.subr.bf16.mxu0 0
      %1052 = vmatpush1.bf16.msra.mxu0 %v1033
      %1053 = vmatprep.subr.bf16.mxu0 0
      %1054 = vmatpush1.bf16.msra.mxu0 %v1034
      %1055 = vmatprep.subr.bf16.mxu0 0
      %1056 = vmatpush1.bf16.msra.mxu0 %v1035
      %1057 = vmatprep.subr.bf16.mxu0 0
      %1058 = vmatpush1.bf16.msra.mxu0 %v1036
      %1059 = vmatprep.subr.bf16.mxu0 0
      %1060 = vmatpush1.bf16.msra.mxu0 %v1037
      %1061 = vmatprep.subr.bf16.mxu0 0
      %1062 = vmatpush1.bf16.msra.mxu0 %v1038
      %1063 = vmatprep.subr.bf16.mxu0 0
      %1064 = vmatpush1.bf16.msra.mxu0 0
      %1065 = vmatprep.subr.bf16.mxu0 0
      %1066 = vmatpush1.bf16.msra.mxu0 0
      %1067 = vmatprep.subr.bf16.mxu0 0
      %1068 = vmatpush1.bf16.msra.mxu0 0
      %1069 = vmatprep.subr.bf16.mxu0 0
      %1070 = vmatpush1.bf16.msra.mxu0 0
      %1071 = vmatprep.subr.bf16.mxu0 0
      %1072 = vmatpush1.bf16.msra.mxu0 0
      %1073 = vmatprep.subr.bf16.mxu0 0
      %1074 = vmatpush1.bf16.msra.mxu0 0
      %1075 = vmatprep.subr.bf16.mxu0 0
      %1076 = vmatpush1.bf16.msra.mxu0 0
      %1077 = vmatprep.subr.bf16.mxu0 0
      %1078 = vmatpush1.bf16.msra.mxu0 0
      %1079 = vmatprep.mubr.bf16.mxu0 0
      %1080 = vmatmul.mubr.bf16.gmra.mrb[0].mxu0 %v982
      %v1081 = vpop.f32.mrb[0].mxu0
      %v1082 = vadd.f32 0.0, %v1081
      %v1083 = vpop.f32.mrb[0].mxu0
      %v1084 = vpop.f32.mrb[0].mxu0
      %v1085 = vpop.f32.mrb[0].mxu0
      %1086 = vdwg.mxu0
      %v1087 = vadd.f32 %v521, %v1082
      %v1088 = vld [vmem:[%s5] sm:$0x1]
      %v1090 = vlaneseq
      %v1091 = vshrl.u32 %v1090, 7
      %v1092 = vsub.s32 0, %v1091
      %v1093 = vrot.slane %v1088, %v1092
      %v1095 = vadd.f32 %v1087, %v1093
      %v1096 = vld [vmem:[%s6] sm:$0x1]
      %v1097 = vld [vmem:[%s7] sm:$0x1]
      %1098 = vadd.xlane.f32.xlu0 %v1095
      %v1099 = vpop.xlane.xlu0 %1098
      %v1100 = vrcp.pop 128.0
      %v1101 = vmul.f32 %v1099, %v1100
      %v1102 = vsub.f32 %v1095, %v1101
      %v1103 = vmul.f32 %v1102, %v1102
      %1104 = vadd.xlane.f32.xlu0 %v1103
      %v1105 = vpop.xlane.xlu0 %1104
      %v1106 = vmul.f32 %v1105, %v1100
      %v1107 = vadd.f32 %v1106, 1e-05
      %v1108 = vrsqrt.pop %v1107
      %v1109 = vmul.f32 %v1102, %v1108
      %v1111 = vlaneseq
      %v1112 = vshrl.u32 %v1111, 7
      %v1113 = vsub.s32 0, %v1112
      %v1114 = vrot.slane %v1096, %v1113
      %v1116 = vmul.f32 %v1109, %v1114
      %v1118 = vlaneseq
      %v1119 = vshrl.u32 %v1118, 7
      %v1120 = vsub.s32 0, %v1119
      %v1121 = vrot.slane %v1097, %v1120
      %v1123 = vadd.f32 %v1116, %v1121
      %v1124 = vpack.c.bf16 %v1123, %v1123
      %v1125 = vld [vmem:[%s8] sm:$0xff]
      %v1126 = vld [vmem:[%s8 + $0x8] sm:$0xff]
      %v1127 = vld [vmem:[%s8 + $0x10] sm:$0xff]
      %v1128 = vld [vmem:[%s8 + $0x18] sm:$0xff]
      %v1129 = vld [vmem:[%s8 + $0x20] sm:$0xff]
      %v1130 = vld [vmem:[%s8 + $0x28] sm:$0xff]
      %v1131 = vld [vmem:[%s8 + $0x30] sm:$0xff]
      %v1132 = vld [vmem:[%s8 + $0x38] sm:$0xff]
      %v1133 = vld [vmem:[%s8 + $0x40] sm:$0xff]
      %v1134 = vld [vmem:[%s8 + $0x48] sm:$0xff]
      %v1135 = vld [vmem:[%s8 + $0x50] sm:$0xff]
      %v1136 = vld [vmem:[%s8 + $0x58] sm:$0xff]
      %v1137 = vld [vmem:[%s8 + $0x60] sm:$0xff]
      %v1138 = vld [vmem:[%s8 + $0x68] sm:$0xff]
      %v1139 = vld [vmem:[%s8 + $0x70] sm:$0xff]
      %v1140 = vld [vmem:[%s8 + $0x78] sm:$0xff]
      %v1141 = vld [vmem:[%s8 + $0x80] sm:$0xff]
      %v1142 = vld [vmem:[%s8 + $0x88] sm:$0xff]
      %v1143 = vld [vmem:[%s8 + $0x90] sm:$0xff]
      %v1144 = vld [vmem:[%s8 + $0x98] sm:$0xff]
      %v1145 = vld [vmem:[%s8 + $0xa0] sm:$0xff]
      %v1146 = vld [vmem:[%s8 + $0xa8] sm:$0xff]
      %v1147 = vld [vmem:[%s8 + $0xb0] sm:$0xff]
      %v1148 = vld [vmem:[%s8 + $0xb8] sm:$0xff]
      %v1149 = vld [vmem:[%s8 + $0xc0] sm:$0xff]
      %v1150 = vld [vmem:[%s8 + $0xc8] sm:$0xff]
      %v1151 = vld [vmem:[%s8 + $0xd0] sm:$0xff]
      %v1152 = vld [vmem:[%s8 + $0xd8] sm:$0xff]
      %v1153 = vld [vmem:[%s8 + $0xe0] sm:$0xff]
      %v1154 = vld [vmem:[%s8 + $0xe8] sm:$0xff]
      %v1155 = vld [vmem:[%s8 + $0xf0] sm:$0xff]
      %v1156 = vld [vmem:[%s8 + $0xf8] sm:$0xff]
      %v1157 = vld [vmem:[%s9] sm:$0xf]
      %v1159 = vlaneseq
      %v1160 = vshrl.u32 %v1159, 7
      %v1161 = vsub.s32 0, %v1160
      %v1162 = vrot.slane %v1157, %v1161
      %v1163 = vlaneseq
      %v1164 = vshrl.u32 %v1163, 7
      %v1165 = vsub.s32 1, %v1164
      %v1166 = vrot.slane %v1157, %v1165
      %v1167 = vlaneseq
      %v1168 = vshrl.u32 %v1167, 7
      %v1169 = vsub.s32 2, %v1168
      %v1170 = vrot.slane %v1157, %v1169
      %v1171 = vlaneseq
      %v1172 = vshrl.u32 %v1171, 7
      %v1173 = vsub.s32 3, %v1172
      %v1174 = vrot.slane %v1157, %v1173
      %v1211 = vunpack.c.l.b16 %v1125
      %v1212 = vunpack.c.h.b16 %v1125
      %v1213 = vunpack.c.l.b16 %v1126
      %v1214 = vunpack.c.h.b16 %v1126
      %v1215 = vunpack.c.l.b16 %v1127
      %v1216 = vunpack.c.h.b16 %v1127
      %v1217 = vunpack.c.l.b16 %v1128
      %v1218 = vunpack.c.h.b16 %v1128
      %v1219 = vunpack.c.l.b16 %v1129
      %v1220 = vunpack.c.h.b16 %v1129
      %v1221 = vunpack.c.l.b16 %v1130
      %v1222 = vunpack.c.h.b16 %v1130
      %v1223 = vunpack.c.l.b16 %v1131
      %v1224 = vunpack.c.h.b16 %v1131
      %v1225 = vunpack.c.l.b16 %v1132
      %v1226 = vunpack.c.h.b16 %v1132
      %v1227 = vunpack.c.l.b16 %v1133
      %v1228 = vunpack.c.h.b16 %v1133
      %v1229 = vunpack.c.l.b16 %v1134
      %v1230 = vunpack.c.h.b16 %v1134
      %v1231 = vunpack.c.l.b16 %v1135
      %v1232 = vunpack.c.h.b16 %v1135
      %v1233 = vunpack.c.l.b16 %v1136
      %v1234 = vunpack.c.h.b16 %v1136
      %v1235 = vunpack.c.l.b16 %v1137
      %v1236 = vunpack.c.h.b16 %v1137
      %v1237 = vunpack.c.l.b16 %v1138
      %v1238 = vunpack.c.h.b16 %v1138
      %v1239 = vunpack.c.l.b16 %v1139
      %v1240 = vunpack.c.h.b16 %v1139
      %v1241 = vunpack.c.l.b16 %v1140
      %v1242 = vunpack.c.h.b16 %v1140
      %v1243 = vunpack.c.l.b16 %v1141
      %v1244 = vunpack.c.h.b16 %v1141
      %v1245 = vunpack.c.l.b16 %v1142
      %v1246 = vunpack.c.h.b16 %v1142
      %v1247 = vunpack.c.l.b16 %v1143
      %v1248 = vunpack.c.h.b16 %v1143
      %v1249 = vunpack.c.l.b16 %v1144
      %v1250 = vunpack.c.h.b16 %v1144
      %v1251 = vunpack.c.l.b16 %v1145
      %v1252 = vunpack.c.h.b16 %v1145
      %v1253 = vunpack.c.l.b16 %v1146
      %v1254 = vunpack.c.h.b16 %v1146
      %v1255 = vunpack.c.l.b16 %v1147
      %v1256 = vunpack.c.h.b16 %v1147
      %v1257 = vunpack.c.l.b16 %v1148
      %v1258 = vunpack.c.h.b16 %v1148
      %v1259 = vunpack.c.l.b16 %v1149
      %v1260 = vunpack.c.h.b16 %v1149
      %v1261 = vunpack.c.l.b16 %v1150
      %v1262 = vunpack.c.h.b16 %v1150
      %v1263 = vunpack.c.l.b16 %v1151
      %v1264 = vunpack.c.h.b16 %v1151
      %v1265 = vunpack.c.l.b16 %v1152
      %v1266 = vunpack.c.h.b16 %v1152
      %v1267 = vunpack.c.l.b16 %v1153
      %v1268 = vunpack.c.h.b16 %v1153
      %v1269 = vunpack.c.l.b16 %v1154
      %v1270 = vunpack.c.h.b16 %v1154
      %v1271 = vunpack.c.l.b16 %v1155
      %v1272 = vunpack.c.h.b16 %v1155
      %v1273 = vunpack.c.l.b16 %v1156
      %v1274 = vunpack.c.h.b16 %v1156
      %v1275 = vpack.c.b16 %v1215, %v1211
      %v1276 = vpack.c.b16 %v1216, %v1212
      %v1277 = vpack.c.b16 %v1217, %v1213
      %v1278 = vpack.c.b16 %v1218, %v1214
      %v1279 = vpack.c.b16 %v1223, %v1219
      %v1280 = vpack.c.b16 %v1224, %v1220
      %v1281 = vpack.c.b16 %v1225, %v1221
      %v1282 = vpack.c.b16 %v1226, %v1222
      %v1283 = vpack.c.b16 %v1231, %v1227
      %v1284 = vpack.c.b16 %v1232, %v1228
      %v1285 = vpack.c.b16 %v1233, %v1229
      %v1286 = vpack.c.b16 %v1234, %v1230
      %v1287 = vpack.c.b16 %v1239, %v1235
      %v1288 = vpack.c.b16 %v1240, %v1236
      %v1289 = vpack.c.b16 %v1241, %v1237
      %v1290 = vpack.c.b16 %v1242, %v1238
      %v1291 = vpack.c.b16 %v1247, %v1243
      %v1292 = vpack.c.b16 %v1248, %v1244
      %v1293 = vpack.c.b16 %v1249, %v1245
      %v1294 = vpack.c.b16 %v1250, %v1246
      %v1295 = vpack.c.b16 %v1255, %v1251
      %v1296 = vpack.c.b16 %v1256, %v1252
      %v1297 = vpack.c.b16 %v1257, %v1253
      %v1298 = vpack.c.b16 %v1258, %v1254
      %v1299 = vpack.c.b16 %v1263, %v1259
      %v1300 = vpack.c.b16 %v1264, %v1260
      %v1301 = vpack.c.b16 %v1265, %v1261
      %v1302 = vpack.c.b16 %v1266, %v1262
      %v1303 = vpack.c.b16 %v1271, %v1267
      %v1304 = vpack.c.b16 %v1272, %v1268
      %v1305 = vpack.c.b16 %v1273, %v1269
      %v1306 = vpack.c.b16 %v1274, %v1270
      %1339 = vmatprep.subr.bf16.mxu0 %v1276
      %1340 = vmatpush1.bf16.msra.mxu0 %v1275
      %1341 = vmatprep.subr.bf16.mxu0 %v1280
      %1342 = vmatpush1.bf16.msra.mxu0 %v1279
      %1343 = vmatprep.subr.bf16.mxu0 %v1284
      %1344 = vmatpush1.bf16.msra.mxu0 %v1283
      %1345 = vmatprep.subr.bf16.mxu0 %v1288
      %1346 = vmatpush1.bf16.msra.mxu0 %v1287
      %1347 = vmatprep.subr.bf16.mxu0 %v1292
      %1348 = vmatpush1.bf16.msra.mxu0 %v1291
      %1349 = vmatprep.subr.bf16.mxu0 %v1296
      %1350 = vmatpush1.bf16.msra.mxu0 %v1295
      %1351 = vmatprep.subr.bf16.mxu0 %v1300
      %1352 = vmatpush1.bf16.msra.mxu0 %v1299
      %1353 = vmatprep.subr.bf16.mxu0 %v1304
      %1354 = vmatpush1.bf16.msra.mxu0 %v1303
      %1355 = vmatprep.subr.bf16.mxu0 0
      %1356 = vmatpush1.bf16.msra.mxu0 0
      %1357 = vmatprep.subr.bf16.mxu0 0
      %1358 = vmatpush1.bf16.msra.mxu0 0
      %1359 = vmatprep.subr.bf16.mxu0 0
      %1360 = vmatpush1.bf16.msra.mxu0 0
      %1361 = vmatprep.subr.bf16.mxu0 0
      %1362 = vmatpush1.bf16.msra.mxu0 0
      %1363 = vmatprep.subr.bf16.mxu0 0
      %1364 = vmatpush1.bf16.msra.mxu0 0
      %1365 = vmatprep.subr.bf16.mxu0 0
      %1366 = vmatpush1.bf16.msra.mxu0 0
      %1367 = vmatprep.subr.bf16.mxu0 0
      %1368 = vmatpush1.bf16.msra.mxu0 0
      %1369 = vmatprep.subr.bf16.mxu0 0
      %1370 = vmatpush1.bf16.msra.mxu0 0
      %1371 = vmatprep.mubr.bf16.mxu0 0
      %1372 = vmatmul.mubr.bf16.gmra.mrb[0].mxu0 %v1124
      %v1373 = vpop.f32.mrb[0].mxu0
      %v1374 = vadd.f32 %v1162, %v1373
      %v1375 = vpop.f32.mrb[0].mxu0
      %v1376 = vadd.f32 %v1166, %v1375
      %v1377 = vpop.f32.mrb[0].mxu0
      %v1378 = vpop.f32.mrb[0].mxu0
      %1379 = vdwg.mxu0
      %1380 = vmatprep.subr.bf16.mxu0 %v1278
      %1381 = vmatpush1.bf16.msra.mxu0 %v1277
      %1382 = vmatprep.subr.bf16.mxu0 %v1282
      %1383 = vmatpush1.bf16.msra.mxu0 %v1281
      %1384 = vmatprep.subr.bf16.mxu0 %v1286
      %1385 = vmatpush1.bf16.msra.mxu0 %v1285
      %1386 = vmatprep.subr.bf16.mxu0 %v1290
      %1387 = vmatpush1.bf16.msra.mxu0 %v1289
      %1388 = vmatprep.subr.bf16.mxu0 %v1294
      %1389 = vmatpush1.bf16.msra.mxu0 %v1293
      %1390 = vmatprep.subr.bf16.mxu0 %v1298
      %1391 = vmatpush1.bf16.msra.mxu0 %v1297
      %1392 = vmatprep.subr.bf16.mxu0 %v1302
      %1393 = vmatpush1.bf16.msra.mxu0 %v1301
      %1394 = vmatprep.subr.bf16.mxu0 %v1306
      %1395 = vmatpush1.bf16.msra.mxu0 %v1305
      %1396 = vmatprep.subr.bf16.mxu0 0
      %1397 = vmatpush1.bf16.msra.mxu0 0
      %1398 = vmatprep.subr.bf16.mxu0 0
      %1399 = vmatpush1.bf16.msra.mxu0 0
      %1400 = vmatprep.subr.bf16.mxu0 0
      %1401 = vmatpush1.bf16.msra.mxu0 0
      %1402 = vmatprep.subr.bf16.mxu0 0
      %1403 = vmatpush1.bf16.msra.mxu0 0
      %1404 = vmatprep.subr.bf16.mxu0 0
      %1405 = vmatpush1.bf16.msra.mxu0 0
      %1406 = vmatprep.subr.bf16.mxu0 0
      %1407 = vmatpush1.bf16.msra.mxu0 0
      %1408 = vmatprep.subr.bf16.mxu0 0
      %1409 = vmatpush1.bf16.msra.mxu0 0
      %1410 = vmatprep.subr.bf16.mxu0 0
      %1411 = vmatpush1.bf16.msra.mxu0 0
      %1412 = vmatprep.mubr.bf16.mxu0 0
      %1413 = vmatmul.mubr.bf16.gmra.mrb[0].mxu0 %v1124
      %v1414 = vpop.f32.mrb[0].mxu0
      %v1415 = vadd.f32 %v1170, %v1414
      %v1416 = vpop.f32.mrb[0].mxu0
      %v1417 = vadd.f32 %v1174, %v1416
      %v1418 = vpop.f32.mrb[0].mxu0
      %v1419 = vpop.f32.mrb[0].mxu0
      %1420 = vdwg.mxu0
      %v1421 = vmul.f32 %v1374, 0.5
      %v1422 = vmul.f32 %v1376, 0.5
      %v1423 = vmul.f32 %v1415, 0.5
      %v1424 = vmul.f32 %v1417, 0.5
      %v1425 = vrcp.pop 1.4142135
      %v1426 = vmul.f32 %v1374, %v1425
      %v1427 = vmul.f32 %v1376, %v1425
      %v1428 = vmul.f32 %v1415, %v1425
      %v1429 = vmul.f32 %v1417, %v1425
      %v1430 = verf.f32.pop %v1426
      %v1431 = verf.f32.pop %v1427
      %v1432 = verf.f32.pop %v1428
      %v1433 = verf.f32.pop %v1429
      %v1434 = vadd.f32 %v1430, 1.0
      %v1435 = vadd.f32 %v1431, 1.0
      %v1436 = vadd.f32 %v1432, 1.0
      %v1437 = vadd.f32 %v1433, 1.0
      %v1438 = vmul.f32 %v1421, %v1434
      %v1439 = vmul.f32 %v1422, %v1435
      %v1440 = vmul.f32 %v1423, %v1436
      %v1441 = vmul.f32 %v1424, %v1437
      %v1442 = vpack.c.bf16 %v1438, %v1438
      %v1443 = vpack.c.bf16 %v1439, %v1439
      %v1444 = vpack.c.bf16 %v1440, %v1440
      %v1445 = vpack.c.bf16 %v1441, %v1441
      %v1446 = vld [vmem:[%s10] sm:$0xf]
      %v1447 = vld [vmem:[%s10 + $0x4] sm:$0xf]
      %v1448 = vld [vmem:[%s10 + $0x8] sm:$0xf]
      %v1449 = vld [vmem:[%s10 + $0xc] sm:$0xf]
      %v1450 = vld [vmem:[%s10 + $0x10] sm:$0xf]
      %v1451 = vld [vmem:[%s10 + $0x14] sm:$0xf]
      %v1452 = vld [vmem:[%s10 + $0x18] sm:$0xf]
      %v1453 = vld [vmem:[%s10 + $0x1c] sm:$0xf]
      %v1454 = vld [vmem:[%s10 + $0x20] sm:$0xf]
      %v1455 = vld [vmem:[%s10 + $0x24] sm:$0xf]
      %v1456 = vld [vmem:[%s10 + $0x28] sm:$0xf]
      %v1457 = vld [vmem:[%s10 + $0x2c] sm:$0xf]
      %v1458 = vld [vmem:[%s10 + $0x30] sm:$0xf]
      %v1459 = vld [vmem:[%s10 + $0x34] sm:$0xf]
      %v1460 = vld [vmem:[%s10 + $0x38] sm:$0xf]
      %v1461 = vld [vmem:[%s10 + $0x3c] sm:$0xf]
      %v1462 = vld [vmem:[%s10 + $0x40] sm:$0xf]
      %v1463 = vld [vmem:[%s10 + $0x44] sm:$0xf]
      %v1464 = vld [vmem:[%s10 + $0x48] sm:$0xf]
      %v1465 = vld [vmem:[%s10 + $0x4c] sm:$0xf]
      %v1466 = vld [vmem:[%s10 + $0x50] sm:$0xf]
      %v1467 = vld [vmem:[%s10 + $0x54] sm:$0xf]
      %v1468 = vld [vmem:[%s10 + $0x58] sm:$0xf]
      %v1469 = vld [vmem:[%s10 + $0x5c] sm:$0xf]
      %v1470 = vld [vmem:[%s10 + $0x60] sm:$0xf]
      %v1471 = vld [vmem:[%s10 + $0x64] sm:$0xf]
      %v1472 = vld [vmem:[%s10 + $0x68] sm:$0xf]
      %v1473 = vld [vmem:[%s10 + $0x6c] sm:$0xf]
      %v1474 = vld [vmem:[%s10 + $0x70] sm:$0xf]
      %v1475 = vld [vmem:[%s10 + $0x74] sm:$0xf]
      %v1476 = vld [vmem:[%s10 + $0x78] sm:$0xf]
      %v1477 = vld [vmem:[%s10 + $0x7c] sm:$0xf]
      %v1478 = vld [vmem:[%s10 + $0x80] sm:$0xf]
      %v1479 = vld [vmem:[%s10 + $0x84] sm:$0xf]
      %v1480 = vld [vmem:[%s10 + $0x88] sm:$0xf]
      %v1481 = vld [vmem:[%s10 + $0x8c] sm:$0xf]
      %v1482 = vld [vmem:[%s10 + $0x90] sm:$0xf]
      %v1483 = vld [vmem:[%s10 + $0x94] sm:$0xf]
      %v1484 = vld [vmem:[%s10 + $0x98] sm:$0xf]
      %v1485 = vld [vmem:[%s10 + $0x9c] sm:$0xf]
      %v1486 = vld [vmem:[%s10 + $0xa0] sm:$0xf]
      %v1487 = vld [vmem:[%s10 + $0xa4] sm:$0xf]
      %v1488 = vld [vmem:[%s10 + $0xa8] sm:$0xf]
      %v1489 = vld [vmem:[%s10 + $0xac] sm:$0xf]
      %v1490 = vld [vmem:[%s10 + $0xb0] sm:$0xf]
      %v1491 = vld [vmem:[%s10 + $0xb4] sm:$0xf]
      %v1492 = vld [vmem:[%s10 + $0xb8] sm:$0xf]
      %v1493 = vld [vmem:[%s10 + $0xbc] sm:$0xf]
      %v1494 = vld [vmem:[%s10 + $0xc0] sm:$0xf]
      %v1495 = vld [vmem:[%s10 + $0xc4] sm:$0xf]
      %v1496 = vld [vmem:[%s10 + $0xc8] sm:$0xf]
      %v1497 = vld [vmem:[%s10 + $0xcc] sm:$0xf]
      %v1498 = vld [vmem:[%s10 + $0xd0] sm:$0xf]
      %v1499 = vld [vmem:[%s10 + $0xd4] sm:$0xf]
      %v1500 = vld [vmem:[%s10 + $0xd8] sm:$0xf]
      %v1501 = vld [vmem:[%s10 + $0xdc] sm:$0xf]
      %v1502 = vld [vmem:[%s10 + $0xe0] sm:$0xf]
      %v1503 = vld [vmem:[%s10 + $0xe4] sm:$0xf]
      %v1504 = vld [vmem:[%s10 + $0xe8] sm:$0xf]
      %v1505 = vld [vmem:[%s10 + $0xec] sm:$0xf]
      %v1506 = vld [vmem:[%s10 + $0xf0] sm:$0xf]
      %v1507 = vld [vmem:[%s10 + $0xf4] sm:$0xf]
      %v1508 = vld [vmem:[%s10 + $0xf8] sm:$0xf]
      %v1509 = vld [vmem:[%s10 + $0xfc] sm:$0xf]
      %v1510 = vld [vmem:[%s11] sm:$0x1]
      %v1512 = vlaneseq
      %v1513 = vshrl.u32 %v1512, 7
      %v1514 = vsub.s32 0, %v1513
      %v1515 = vrot.slane %v1510, %v1514
      %v1581 = vunpack.c.l.b16 %v1446
      %v1582 = vunpack.c.l.b16 %v1447
      %v1583 = vunpack.c.l.b16 %v1448
      %v1584 = vunpack.c.l.b16 %v1449
      %v1585 = vunpack.c.l.b16 %v1450
      %v1586 = vunpack.c.l.b16 %v1451
      %v1587 = vunpack.c.l.b16 %v1452
      %v1588 = vunpack.c.l.b16 %v1453
      %v1589 = vunpack.c.l.b16 %v1454
      %v1590 = vunpack.c.l.b16 %v1455
      %v1591 = vunpack.c.l.b16 %v1456
      %v1592 = vunpack.c.l.b16 %v1457
      %v1593 = vunpack.c.l.b16 %v1458
      %v1594 = vunpack.c.l.b16 %v1459
      %v1595 = vunpack.c.l.b16 %v1460
      %v1596 = vunpack.c.l.b16 %v1461
      %v1597 = vunpack.c.l.b16 %v1462
      %v1598 = vunpack.c.l.b16 %v1463
      %v1599 = vunpack.c.l.b16 %v1464
      %v1600 = vunpack.c.l.b16 %v1465
      %v1601 = vunpack.c.l.b16 %v1466
      %v1602 = vunpack.c.l.b16 %v1467
      %v1603 = vunpack.c.l.b16 %v1468
      %v1604 = vunpack.c.l.b16 %v1469
      %v1605 = vunpack.c.l.b16 %v1470
      %v1606 = vunpack.c.l.b16 %v1471
      %v1607 = vunpack.c.l.b16 %v1472
      %v1608 = vunpack.c.l.b16 %v1473
      %v1609 = vunpack.c.l.b16 %v1474
      %v1610 = vunpack.c.l.b16 %v1475
      %v1611 = vunpack.c.l.b16 %v1476
      %v1612 = vunpack.c.l.b16 %v1477
      %v1613 = vunpack.c.l.b16 %v1478
      %v1614 = vunpack.c.l.b16 %v1479
      %v1615 = vunpack.c.l.b16 %v1480
      %v1616 = vunpack.c.l.b16 %v1481
      %v1617 = vunpack.c.l.b16 %v1482
      %v1618 = vunpack.c.l.b16 %v1483
      %v1619 = vunpack.c.l.b16 %v1484
      %v1620 = vunpack.c.l.b16 %v1485
      %v1621 = vunpack.c.l.b16 %v1486
      %v1622 = vunpack.c.l.b16 %v1487
      %v1623 = vunpack.c.l.b16 %v1488
      %v1624 = vunpack.c.l.b16 %v1489
      %v1625 = vunpack.c.l.b16 %v1490
      %v1626 = vunpack.c.l.b16 %v1491
      %v1627 = vunpack.c.l.b16 %v1492
      %v1628 = vunpack.c.l.b16 %v1493
      %v1629 = vunpack.c.l.b16 %v1494
      %v1630 = vunpack.c.l.b16 %v1495
      %v1631 = vunpack.c.l.b16 %v1496
      %v1632 = vunpack.c.l.b16 %v1497
      %v1633 = vunpack.c.l.b16 %v1498
      %v1634 = vunpack.c.l.b16 %v1499
      %v1635 = vunpack.c.l.b16 %v1500
      %v1636 = vunpack.c.l.b16 %v1501
      %v1637 = vunpack.c.l.b16 %v1502
      %v1638 = vunpack.c.l.b16 %v1503
      %v1639 = vunpack.c.l.b16 %v1504
      %v1640 = vunpack.c.l.b16 %v1505
      %v1641 = vunpack.c.l.b16 %v1506
      %v1642 = vunpack.c.l.b16 %v1507
      %v1643 = vunpack.c.l.b16 %v1508
      %v1644 = vunpack.c.l.b16 %v1509
      %v1645 = vpack.c.b16 %v1582, %v1581
      %v1646 = vpack.c.b16 %v1584, %v1583
      %v1647 = vpack.c.b16 %v1586, %v1585
      %v1648 = vpack.c.b16 %v1588, %v1587
      %v1649 = vpack.c.b16 %v1590, %v1589
      %v1650 = vpack.c.b16 %v1592, %v1591
      %v1651 = vpack.c.b16 %v1594, %v1593
      %v1652 = vpack.c.b16 %v1596, %v1595
      %v1653 = vpack.c.b16 %v1598, %v1597
      %v1654 = vpack.c.b16 %v1600, %v1599
      %v1655 = vpack.c.b16 %v1602, %v1601
      %v1656 = vpack.c.b16 %v1604, %v1603
      %v1657 = vpack.c.b16 %v1606, %v1605
      %v1658 = vpack.c.b16 %v1608, %v1607
      %v1659 = vpack.c.b16 %v1610, %v1609
      %v1660 = vpack.c.b16 %v1612, %v1611
      %v1661 = vpack.c.b16 %v1614, %v1613
      %v1662 = vpack.c.b16 %v1616, %v1615
      %v1663 = vpack.c.b16 %v1618, %v1617
      %v1664 = vpack.c.b16 %v1620, %v1619
      %v1665 = vpack.c.b16 %v1622, %v1621
      %v1666 = vpack.c.b16 %v1624, %v1623
      %v1667 = vpack.c.b16 %v1626, %v1625
      %v1668 = vpack.c.b16 %v1628, %v1627
      %v1669 = vpack.c.b16 %v1630, %v1629
      %v1670 = vpack.c.b16 %v1632, %v1631
      %v1671 = vpack.c.b16 %v1634, %v1633
      %v1672 = vpack.c.b16 %v1636, %v1635
      %v1673 = vpack.c.b16 %v1638, %v1637
      %v1674 = vpack.c.b16 %v1640, %v1639
      %v1675 = vpack.c.b16 %v1642, %v1641
      %v1676 = vpack.c.b16 %v1644, %v1643
      %1709 = vmatprep.subr.bf16.mxu0 0
      %1710 = vmatpush1.bf16.msra.mxu0 %v1645
      %1711 = vmatprep.subr.bf16.mxu0 0
      %1712 = vmatpush1.bf16.msra.mxu0 %v1646
      %1713 = vmatprep.subr.bf16.mxu0 0
      %1714 = vmatpush1.bf16.msra.mxu0 %v1647
      %1715 = vmatprep.subr.bf16.mxu0 0
      %1716 = vmatpush1.bf16.msra.mxu0 %v1648
      %1717 = vmatprep.subr.bf16.mxu0 0
      %1718 = vmatpush1.bf16.msra.mxu0 %v1649
      %1719 = vmatprep.subr.bf16.mxu0 0
      %1720 = vmatpush1.bf16.msra.mxu0 %v1650
      %1721 = vmatprep.subr.bf16.mxu0 0
      %1722 = vmatpush1.bf16.msra.mxu0 %v1651
      %1723 = vmatprep.subr.bf16.mxu0 0
      %1724 = vmatpush1.bf16.msra.mxu0 %v1652
      %1725 = vmatprep.subr.bf16.mxu0 0
      %1726 = vmatpush1.bf16.msra.mxu0 %v1653
      %1727 = vmatprep.subr.bf16.mxu0 0
      %1728 = vmatpush1.bf16.msra.mxu0 %v1654
      %1729 = vmatprep.subr.bf16.mxu0 0
      %1730 = vmatpush1.bf16.msra.mxu0 %v1655
      %1731 = vmatprep.subr.bf16.mxu0 0
      %1732 = vmatpush1.bf16.msra.mxu0 %v1656
      %1733 = vmatprep.subr.bf16.mxu0 0
      %1734 = vmatpush1.bf16.msra.mxu0 %v1657
      %1735 = vmatprep.subr.bf16.mxu0 0
      %1736 = vmatpush1.bf16.msra.mxu0 %v1658
      %1737 = vmatprep.subr.bf16.mxu0 0
      %1738 = vmatpush1.bf16.msra.mxu0 %v1659
      %1739 = vmatprep.subr.bf16.mxu0 0
      %1740 = vmatpush1.bf16.msra.mxu0 %v1660
      %1741 = vmatprep.mubr.bf16.mxu0 %v1443
      %1742 = vmatmul.mubr.bf16.gmra.mrb[0].mxu0 %v1442
      %v1743 = vpop.f32.mrb[0].mxu0
      %v1744 = vadd.f32 %v1515, %v1743
      %v1745 = vpop.f32.mrb[0].mxu0
      %v1746 = vpop.f32.mrb[0].mxu0
      %v1747 = vpop.f32.mrb[0].mxu0
      %1748 = vdwg.mxu0
      %1749 = vmatprep.subr.bf16.mxu0 0
      %1750 = vmatpush1.bf16.msra.mxu0 %v1661
      %1751 = vmatprep.subr.bf16.mxu0 0
      %1752 = vmatpush1.bf16.msra.mxu0 %v1662
      %1753 = vmatprep.subr.bf16.mxu0 0
      %1754 = vmatpush1.bf16.msra.mxu0 %v1663
      %1755 = vmatprep.subr.bf16.mxu0 0
      %1756 = vmatpush1.bf16.msra.mxu0 %v1664
      %1757 = vmatprep.subr.bf16.mxu0 0
      %1758 = vmatpush1.bf16.msra.mxu0 %v1665
      %1759 = vmatprep.subr.bf16.mxu0 0
      %1760 = vmatpush1.bf16.msra.mxu0 %v1666
      %1761 = vmatprep.subr.bf16.mxu0 0
      %1762 = vmatpush1.bf16.msra.mxu0 %v1667
      %1763 = vmatprep.subr.bf16.mxu0 0
      %1764 = vmatpush1.bf16.msra.mxu0 %v1668
      %1765 = vmatprep.subr.bf16.mxu0 0
      %1766 = vmatpush1.bf16.msra.mxu0 %v1669
      %1767 = vmatprep.subr.bf16.mxu0 0
      %1768 = vmatpush1.bf16.msra.mxu0 %v1670
      %1769 = vmatprep.subr.bf16.mxu0 0
      %1770 = vmatpush1.bf16.msra.mxu0 %v1671
      %1771 = vmatprep.subr.bf16.mxu0 0
      %1772 = vmatpush1.bf16.msra.mxu0 %v1672
      %1773 = vmatprep.subr.bf16.mxu0 0
      %1774 = vmatpush1.bf16.msra.mxu0 %v1673
      %1775 = vmatprep.subr.bf16.mxu0 0
      %1776 = vmatpush1.bf16.msra.mxu0 %v1674
      %1777 = vmatprep.subr.bf16.mxu0 0
      %1778 = vmatpush1.bf16.msra.mxu0 %v1675
      %1779 = vmatprep.subr.bf16.mxu0 0
      %1780 = vmatpush1.bf16.msra.mxu0 %v1676
      %1781 = vmatprep.mubr.bf16.mxu0 %v1445
      %1782 = vmatmul.mubr.bf16.gmra.mrb[0].mxu0 %v1444
      %v1783 = vpop.f32.mrb[0].mxu0
      %v1784 = vadd.f32 %v1744, %v1783
      %v1785 = vpop.f32.mrb[0].mxu0
      %v1786 = vpop.f32.mrb[0].mxu0
      %v1787 = vpop.f32.mrb[0].mxu0
      %1788 = vdwg.mxu0
      %v1789 = vadd.f32 %v1095, %v1784
      %1790 = vst [vmem:[%s519] sm:$0xff] %v1789
      %p1791 = scmp.lt.s32.totalorder %s27, 1
      %s1792 = scalar_select %p1791, %s27, 1
      %p1793 = scmp.lt.s32.totalorder %s28, 0
      %s1794 = scalar_select %p1793, %s28, 0
      %s1795 = sadd.s32 %s1794, %s1792
      %s1796 = smul.addr %s1795, 8
      %s1797 = scalar_lea.vmem %s12, %s1796
      // Predicated region
      $region69: #{decoder_forward.6} parent=67 // pred_check
        %p1798 = pneg %p331
      $region70: #{decoder_forward.6} parent=67 // pred_check_branch
        %1800 = sbr.rel (%p1798) target = $region72
      $region71: #{decoder_forward.6} parent=67 // pred_region
        _
      $region72: #{decoder_forward.6} parent=67 // pred_fallthru
        _
    $region68: #{decoder_forward.6} parent=5 // pred_fallthru
      _
    %p1801 = scmp.le.s32.totalorder 2, %s18
    // Predicated region
    $region73: #{decoder_forward.6} parent=5 // pred_check
      %p1802 = pneg %p1801
    $region74: #{decoder_forward.6} parent=5 // pred_check_branch
      %1804 = sbr.rel (%p1802) target = $region76
    $region75: #{decoder_forward.6} parent=5 // pred_region
      %s1805 = ssub.s32 %s18, 2
      // Predicated region
      $region77: #{decoder_forward.6} parent=75 // pred_check
        %p1806 = pneg %p337
      $region78: #{decoder_forward.6} parent=75 // pred_check_branch
        %1808 = sbr.rel (%p1806) target = $region80
      $region79: #{decoder_forward.6} parent=75 // pred_region
        %p1809 = scmp.lt.s32.totalorder %s29, 1
        %s1810 = scalar_select %p1809, %s29, 1
        %p1811 = scmp.lt.s32.totalorder %s30, 0
        %s1812 = scalar_select %p1811, %s30, 0
        %s1813 = sadd.s32 %s1812, %s1810
        %s1814 = smul.addr %s1813, 8
        %s1815 = scalar_lea.vmem %s12, %s1814
      $region80: #{decoder_forward.6} parent=75 // pred_fallthru
        _
    $region76: #{decoder_forward.6} parent=5 // pred_fallthru
      _
  $region6: #{decoder_forward.6} parent=0 // loop_footer
    %s22 = sadd.s32 1, %s18
  $region7: #{decoder_forward.6} parent=0 // loop_footer_branch
    %17 = sbr.rel target = $region3
  $region8: #{decoder_forward.6} parent=0 // loop_exit
    _

</llo_original>
